<compile_context>
chip_gen: v7x
topology: tpu7x:2x2x1
jax: 0.10.0
libtpu: 0.0.40
codegen_flags: <defaults>
</compile_context>

<pallas_src>
import functools

import jax
import jax.numpy as jnp
import numpy as np
from jax.experimental import pallas as pl
from jax.experimental.pallas import tpu as pltpu

GEN_EPS = 1e-7   # GENConv message epsilon
LANE = 128       # TPU lane width


def _round_up(n, m):
    return ((n + m - 1) // m) * m


def gennet_kernel(x_ref, s_ref, d_ref, p_ref,
                  w1_ref, w1a_ref, b1_ref, w1b_ref,
                  w2a_ref, b2_ref, w2b_ref,
                  wfc_ref, bfc_ref,
                  out_ref, *, hidden):
    f32, bf16 = jnp.float32, jnp.bfloat16
    H = hidden
    Gb, Np, C = x_ref.shape
    Ep = s_ref.shape[1]

    # bf16 one-hot gather/scatter operators used directly as MXU operands
    # (entries are exact 0/1; accumulation is f32, so selection is exact).
    S = s_ref[...]                      # (Gb, Ep, Np) bf16
    D = d_ref[...]                      # (Gb, Np, Ep) bf16
    p = p_ref[...]                      # (Gb, Np, 1)  f32 mean-pool weights

    def genconv(h_src, h_dst, wa, bb, wb):
        # ---- message: relu(x_j) + eps  (gather = batched bf16 one-hot matmul) ----
        xj = jnp.einsum("gen,gnh->geh", S, h_src.astype(bf16),
                        preferred_element_type=f32)            # (Gb, Ep, H)
        m = jnp.maximum(xj, 0.0) + GEN_EPS
        # ---- softmax aggregation (t=1), stabilized: subtracting a per-(graph,
        # feature) constant from every edge leaves each destination's softmax
        # ratio mathematically unchanged (PyG subtracts the segment max). ----
        c = jnp.max(m, axis=1, keepdims=True)                  # (Gb, 1, H)
        em = jnp.exp(m - c)            # f32 exp kept for v5e portability (no bf16 EUP)
        msg = jnp.concatenate([m * em, em], axis=-1)           # (Gb, Ep, 2H)
        nd = jnp.einsum("gne,geh->gnh", D, msg.astype(bf16),
                        preferred_element_type=f32)            # (Gb, Np, 2H) = num|den
        num, den = nd[..., :H], nd[..., H:]
        inv = pl.reciprocal(jnp.where(den > 0.0, den, 1.0), approx=True)
        o = num * inv + h_dst                                  # (Gb, Np, H)
        # ---- MLP: Linear (BN eval-scale pre-folded) -> +bias -> ReLU -> Linear,
        # graph axis folded into the MXU M dimension. ----
        o2 = o.reshape(Gb * Np, H)
        h = jnp.maximum(jnp.dot(o2, wa, preferred_element_type=f32) + bb, 0.0)
        return jnp.dot(h, wb, preferred_element_type=f32).reshape(Gb, Np, H)

    # ---- GENConv #1: fused src|dst projection x @ [W_src | W_dst] over Gb graphs ----
    x2d = x_ref[...].reshape(Gb * Np, C)
    hs = jnp.dot(x2d, w1_ref[...],
                 preferred_element_type=f32).reshape(Gb, Np, 2 * H)
    x1 = genconv(hs[..., :H], hs[..., H:],
                 w1a_ref[...], b1_ref[...], w1b_ref[...])
    x1 = jnp.maximum(x1, 0.0)          # F.relu; dropout = identity (inference)

    # ---- GENConv #2 (hidden -> hidden, shared src/dst features) ----
    x2 = genconv(x1, x1, w2a_ref[...], b2_ref[...], w2b_ref[...])
    x2 = jnp.maximum(x2, 0.0)

    # ---- global_mean_pool (weighted sum; padded node rows have weight 0) +
    # one batched fc (Gb, H) @ (H, 128) per grid step -> dense store ----
    g = jnp.sum(p * x2, axis=1)                                # (Gb, H)
    out_ref[0] = jnp.dot(g, wfc_ref[...], preferred_element_type=f32) + bfc_ref[...]


def _vmem_limit_bytes():
    """Per-generation VMEM budget: ~3/4 of physical, capped at 96 MiB."""
    cap = None
    try:
        info = pltpu.get_tpu_info()
        for name in ("vmem_capacity_bytes", "vmem_size_bytes", "vmem_bytes"):
            cap = getattr(info, name, None)
            if cap:
                break
    except Exception:
        cap = None
    if not cap:
        cap = 64 * 1024 * 1024          # conservative fallback (v7x physical)
    return int(min(int(cap) * 3 // 4, 96 * 1024 * 1024))


def _choose_graphs_per_step(G, Np, Ep, C, H, vmem_limit):
    """Graphs per grid step: target ~256 MXU rows, capped by the VMEM budget."""
    in_bytes = 2 * Ep * Np * 2 + (Np * C + Np) * 4          # bf16 S+D, f32 x+p
    live_f32 = (3 * Ep * 2 * H + 6 * Np * 2 * H) * 4        # rough live intermediates
    per_graph = 2 * in_bytes + live_f32                     # inputs double-buffered
    budget = max(vmem_limit - vmem_limit // 4, 2 * 1024 * 1024)
    by_vmem = max(1, budget // per_graph)
    by_mxu = max(1, 256 // max(Np, 1))
    return int(max(1, min(G, by_mxu, by_vmem)))


def gennet_forward(xb, Sb, Db, pb, params, *, num_classes):
    """xb (G,Np,C) f32, Sb (G,Ep,Np) bf16, Db (G,Np,Ep) bf16, pb (G,Np,1) f32."""
    G, Np, C = xb.shape
    Ep = Sb.shape[1]
    H = params["w1b"].shape[1]
    assert num_classes <= LANE
    assert Np % LANE == 0 and Ep % LANE == 0, "build_dense_batch must tile-pad Np/Ep"

    vmem_limit = _vmem_limit_bytes()
    Gb = _choose_graphs_per_step(G, Np, Ep, C, H, vmem_limit)
    Gn = pl.cdiv(G, Gb)
    G_pad = Gn * Gb
    if G_pad != G:                       # zero-pad the graph axis; sliced off below
        padg = G_pad - G
        xb = jnp.pad(xb, ((0, padg), (0, 0), (0, 0)))
        Sb = jnp.pad(Sb, ((0, padg), (0, 0), (0, 0)))
        Db = jnp.pad(Db, ((0, padg), (0, 0), (0, 0)))
        pb = jnp.pad(pb, ((0, padg), (0, 0), (0, 0)))

    # ---- wrapper-side folds (numerically exact) ----
    w1 = jnp.concatenate([params["w1src"], params["w1dst"]], axis=1)      # (C, 2H)
    w1a = params["w1a"] * params["bn1s"]                                  # fold BN scale
    w2a = params["w2a"] * params["bn2s"]
    wfc = jnp.zeros((H, LANE), jnp.float32).at[:, :num_classes].set(params["wfc"])
    bfc = jnp.zeros((1, LANE), jnp.float32).at[:, :num_classes].set(params["bfc"])

    graph_args = (xb, Sb, Db, pb)
    weight_args = (w1, w1a, params["bn1b"], params["w1b"],
                   w2a, params["bn2b"], params["w2b"], wfc, bfc)

    def graph_spec(a):
        return pl.BlockSpec((Gb,) + tuple(a.shape[1:]), lambda g: (g, 0, 0))

    def weight_spec(a):
        n = a.ndim
        return pl.BlockSpec(tuple(a.shape), lambda g, _n=n: (0,) * _n)

    in_specs = ([graph_spec(a) for a in graph_args]
                + [weight_spec(a) for a in weight_args])

    flops_per_graph = (
        2 * Np * C * (2 * H)                   # fused lin_src|lin_dst projection
        + 2 * (2 * Ep * Np * H                 # one-hot gather
               + 2 * Np * Ep * (2 * H)         # fused num|den scatter
               + 2 * Np * H * (2 * H)          # MLP up (BN folded)
               + 2 * Np * (2 * H) * H)         # MLP down
        + 2 * Np * H                           # mean pool
        + 2 * H * LANE                         # fc (lane padded)
    )
    cost = pl.CostEstimate(
        flops=int(G_pad * flops_per_graph),
        transcendentals=int(G_pad * 2 * Ep * H),
        bytes_accessed=int(sum(int(a.size) * a.dtype.itemsize
                               for a in graph_args + weight_args)
                           + G_pad * LANE * 4),
    )

    out = pl.pallas_call(
        functools.partial(gennet_kernel, hidden=H),
        out_shape=jax.ShapeDtypeStruct((Gn, Gb, LANE), jnp.float32),
        grid_spec=pltpu.PrefetchScalarGridSpec(
            num_scalar_prefetch=0,
            grid=(Gn,),
            in_specs=in_specs,
            out_specs=pl.BlockSpec((1, Gb, LANE), lambda g: (g, 0, 0)),
        ),
        compiler_params=pltpu.CompilerParams(
            dimension_semantics=("parallel",),   # shard graph blocks across TCs
            vmem_limit_bytes=vmem_limit,
        ),
        cost_estimate=cost,
    )(*graph_args, *weight_args)
    return out.reshape(G_pad, LANE)[:G, :num_classes]


# ------------------------- dense per-graph batching -------------------------
def build_dense_batch(x, src, dst, batch, num_graphs):
    """Flat PyG-style graph -> per-graph dense operators, tile-padded for TPU.

    Np / Ep are padded to multiples of 128 so the lane dims (Np for S, Ep for D)
    and sublane dims are (8,128)/bf16-pack aligned.  One-hot operators are
    stored as bf16 (entries exactly 0/1 -> selection is exact).
    """
    x = np.asarray(x, np.float32)
    src = np.asarray(src)
    dst = np.asarray(dst)
    batch = np.asarray(batch)
    C = x.shape[1]
    node_lists = [np.nonzero(batch == g)[0] for g in range(num_graphs)]
    edge_graph = batch[src]
    edge_lists = [np.nonzero(edge_graph == g)[0] for g in range(num_graphs)]
    Np = _round_up(max(max(len(nl) for nl in node_lists), 1), LANE)
    Ep = _round_up(max(max(len(el) for el in edge_lists), 1), LANE)

    xb = np.zeros((num_graphs, Np, C), np.float32)
    Sb = np.zeros((num_graphs, Ep, Np), np.float32)
    Db = np.zeros((num_graphs, Np, Ep), np.float32)
    pb = np.zeros((num_graphs, Np, 1), np.float32)
    for g in range(num_graphs):
        nl, el = node_lists[g], edge_lists[g]
        loc = {int(n): i for i, n in enumerate(nl)}
        xb[g, :len(nl)] = x[nl]
        if len(nl):
            pb[g, :len(nl), 0] = 1.0 / len(nl)
        for j, e in enumerate(el):
            Sb[g, j, loc[int(src[e])]] = 1.0
            Db[g, loc[int(dst[e])], j] = 1.0
        # padding invariants: padded edge rows of S / columns of D and padded
        # node rows of x/p must be exactly zero so padded slots drop out.
        assert not Sb[g, len(el):, :].any()
        assert not Db[g, :, len(el):].any()
        assert not pb[g, len(nl):, :].any()
        assert not xb[g, len(nl):, :].any()
    return (jnp.asarray(xb), jnp.asarray(Sb, dtype=jnp.bfloat16),
            jnp.asarray(Db, dtype=jnp.bfloat16), jnp.asarray(pb))


# ------------------- pure-JAX reference (for checking) -------------------
def gennet_reference(x, src, dst, batch, num_graphs, params):
    N = x.shape[0]

    def genconv(h_src, h_dst, wa, bns, bnb, wb):
        m = jnp.maximum(h_src[src], 0.0) + GEN_EPS                  # (E, H)
        em = jnp.exp(m)
        num = jax.ops.segment_sum(m * em, dst, num_segments=N)
        den = jax.ops.segment_sum(em, dst, num_segments=N)
        agg = num / jnp.where(den > 0.0, den, 1.0)
        o = agg + h_dst
        h = jnp.maximum(o @ wa * bns + bnb, 0.0)
        return h @ wb

    x1 = jnp.maximum(genconv(x @ params["w1src"], x @ params["w1dst"],
                             params["w1a"], params["bn1s"], params["bn1b"],
                             params["w1b"]), 0.0)
    x2 = jnp.maximum(genconv(x1, x1, params["w2a"], params["bn2s"],
                             params["bn2b"], params["w2b"]), 0.0)
    sums = jax.ops.segment_sum(x2, batch, num_segments=num_graphs)
    cnts = jax.ops.segment_sum(jnp.ones((N, 1), jnp.float32), batch,
                               num_segments=num_graphs)
    g = sums / jnp.maximum(cnts, 1.0)
    return g @ params["wfc"] + params["bfc"]


def init_params(key, in_channels, hidden, num_classes):
    ks = jax.random.split(key, 8)

    def lin(k, fan_in, fan_out):
        bound = 1.0 / np.sqrt(fan_in)
        # weights stored already transposed: (in, out), so kernel does x @ W
        return jax.random.uniform(k, (fan_in, fan_out), jnp.float32, -bound, bound)

    bn_eps = 1e-5
    bn_scale = jnp.full((1, 2 * hidden), 1.0 / np.sqrt(1.0 + bn_eps), jnp.float32)
    bn_bias = jnp.zeros((1, 2 * hidden), jnp.float32)

    params = dict(
        # GENConv 1 (in != hidden -> lin_src / lin_dst, bias=False)
        w1src=lin(ks[0], in_channels, hidden),
        w1dst=lin(ks[1], in_channels, hidden),
        w1a=lin(ks[2], hidden, 2 * hidden),
        bn1s=bn_scale, bn1b=bn_bias,
        w1b=lin(ks[3], 2 * hidden, hidden),
        # GENConv 2 (hidden -> hidden)
        w2a=lin(ks[4], hidden, 2 * hidden),
        bn2s=bn_scale, bn2b=bn_bias,
        w2b=lin(ks[5], 2 * hidden, hidden),
        # final fc (with bias)
        wfc=lin(ks[6], hidden, num_classes),
        bfc=jax.random.uniform(ks[7], (1, num_classes), jnp.float32,
                               -1.0 / np.sqrt(hidden), 1.0 / np.sqrt(hidden)),
    )
    return params


if __name__ == "__main__":
    in_channels, hidden, num_classes = 4, 32, 3
    num_nodes, num_graphs = 8, 2

    key = jax.random.PRNGKey(0)
    kx, kp = jax.random.split(key)

    # graph: two 4-node rings (both directions) -> every node has in-degree 2
    src_list, dst_list = [], []
    for g in range(num_graphs):
        base = g * 4
        for i in range(4):
            a, b = base + i, base + (i + 1) % 4
            src_list += [a, b]
            dst_list += [b, a]
    src = jnp.array(src_list, dtype=jnp.int32)     # edge_index[0]
    dst = jnp.array(dst_list, dtype=jnp.int32)     # edge_index[1]
    batch = jnp.array([0, 0, 0, 0, 1, 1, 1, 1], dtype=jnp.int32)

    x = jax.random.normal(kx, (num_nodes, in_channels), jnp.float32)
    params = init_params(kp, in_channels, hidden, num_classes)

    xb, Sb, Db, pb = build_dense_batch(x, src, dst, batch, num_graphs)

    out = gennet_forward(xb, Sb, Db, pb, params, num_classes=num_classes)
    out = jax.block_until_ready(out)

    ref = gennet_reference(x, src, dst, batch, num_graphs, params)
    assert out.shape == (num_graphs, num_classes)
    assert bool(jnp.all(jnp.isfinite(out)))
    # tolerance covers the two intentional approximations vs the pure-f32
    # reference: bf16 operands on the gather/scatter matmuls (~0.4% rel) and
    # the approx EUP reciprocal in the softmax aggregation; all else exact.
    assert bool(jnp.allclose(out, ref, atol=3e-2, rtol=3e-2)), (out, ref)

    print("KERNEL_OK")
</pallas_src>

<mosaic_0001>
module attributes {stable_mosaic.version = 11 : i64} {
  func.func @gennet_kernel(%arg0: i32, %arg1: memref<2x128x4xf32, #tpu.memory_space<vmem>>, %arg2: memref<2x128x128xbf16, #tpu.memory_space<vmem>>, %arg3: memref<2x128x128xbf16, #tpu.memory_space<vmem>>, %arg4: memref<2x128x1xf32, #tpu.memory_space<vmem>>, %arg5: memref<4x64xf32, #tpu.memory_space<vmem>>, %arg6: memref<32x64xf32, #tpu.memory_space<vmem>>, %arg7: memref<1x64xf32, #tpu.memory_space<vmem>>, %arg8: memref<64x32xf32, #tpu.memory_space<vmem>>, %arg9: memref<32x64xf32, #tpu.memory_space<vmem>>, %arg10: memref<1x64xf32, #tpu.memory_space<vmem>>, %arg11: memref<64x32xf32, #tpu.memory_space<vmem>>, %arg12: memref<32x128xf32, #tpu.memory_space<vmem>>, %arg13: memref<1x128xf32, #tpu.memory_space<vmem>>, %arg14: memref<1x2x128xf32, #tpu.memory_space<vmem>>) attributes {dimension_semantics = [#tpu.dimension_semantics<parallel>], iteration_bounds = array<i64: 1>, scalar_prefetch = 0 : i64, scratch_operands = 0 : i64, tpu.core_type = #tpu.core_type<tc>, window_params = [{transform_indices = @transform_0, window_bounds = array<i64: 2, 128, 4>}, {transform_indices = @transform_1, window_bounds = array<i64: 2, 128, 128>}, {transform_indices = @transform_2, window_bounds = array<i64: 2, 128, 128>}, {transform_indices = @transform_3, window_bounds = array<i64: 2, 128, 1>}, {pipeline_mode = #tpu.pipeline_mode<synchronous>, transform_indices = @transform_4, window_bounds = array<i64: 4, 64>}, {pipeline_mode = #tpu.pipeline_mode<synchronous>, transform_indices = @transform_5, window_bounds = array<i64: 32, 64>}, {pipeline_mode = #tpu.pipeline_mode<synchronous>, transform_indices = @transform_6, window_bounds = array<i64: 1, 64>}, {pipeline_mode = #tpu.pipeline_mode<synchronous>, transform_indices = @transform_7, window_bounds = array<i64: 64, 32>}, {pipeline_mode = #tpu.pipeline_mode<synchronous>, transform_indices = @transform_8, window_bounds = array<i64: 32, 64>}, {pipeline_mode = #tpu.pipeline_mode<synchronous>, transform_indices = @transform_9, window_bounds = array<i64: 1, 64>}, {pipeline_mode = #tpu.pipeline_mode<synchronous>, transform_indices = @transform_10, window_bounds = array<i64: 64, 32>}, {pipeline_mode = #tpu.pipeline_mode<synchronous>, transform_indices = @transform_11, window_bounds = array<i64: 32, 128>}, {pipeline_mode = #tpu.pipeline_mode<synchronous>, transform_indices = @transform_12, window_bounds = array<i64: 1, 128>}, {transform_indices = @transform_13, window_bounds = array<i64: 1, 2, 128>}]} {
    %c0 = arith.constant 0 : index
    %c0_0 = arith.constant 0 : index
    %c0_1 = arith.constant 0 : index
    %0 = vector.load %arg2[%c0, %c0_0, %c0_1] : memref<2x128x128xbf16, #tpu.memory_space<vmem>>, vector<2x128x128xbf16>
    %c0_2 = arith.constant 0 : index
    %c0_3 = arith.constant 0 : index
    %c0_4 = arith.constant 0 : index
    %1 = vector.load %arg3[%c0_2, %c0_3, %c0_4] : memref<2x128x128xbf16, #tpu.memory_space<vmem>>, vector<2x128x128xbf16>
    %c0_5 = arith.constant 0 : index
    %c0_6 = arith.constant 0 : index
    %c0_7 = arith.constant 0 : index
    %2 = vector.load %arg4[%c0_5, %c0_6, %c0_7] : memref<2x128x1xf32, #tpu.memory_space<vmem>>, vector<2x128x1xf32>
    %c0_8 = arith.constant 0 : index
    %c0_9 = arith.constant 0 : index
    %c0_10 = arith.constant 0 : index
    %3 = vector.load %arg1[%c0_8, %c0_9, %c0_10] : memref<2x128x4xf32, #tpu.memory_space<vmem>>, vector<2x128x4xf32>
    %4 = vector.shape_cast %3 : vector<2x128x4xf32> to vector<256x4xf32>
    %c0_11 = arith.constant 0 : index
    %c0_12 = arith.constant 0 : index
    %5 = vector.load %arg5[%c0_11, %c0_12] : memref<4x64xf32, #tpu.memory_space<vmem>>, vector<4x64xf32>
    %cst = arith.constant dense<0.000000e+00> : vector<256x64xf32>
    %6 = tpu.matmul %4, %5, %cst {dimension_numbers = #tpu.dot_dimension_numbers<[1], [0], [0], [1], [0, 0, 1, 1], [], []>} : vector<256x4xf32>, vector<4x64xf32>, vector<256x64xf32> -> vector<256x64xf32>
    %7 = vector.shape_cast %6 : vector<256x64xf32> to vector<2x128x64xf32>
    %8 = vector.extract_strided_slice %7 {offsets = [0, 0, 0], sizes = [2, 128, 32], strides = [1, 1, 1]} : vector<2x128x64xf32> to vector<2x128x32xf32>
    %9 = vector.extract_strided_slice %7 {offsets = [0, 0, 32], sizes = [2, 128, 32], strides = [1, 1, 1]} : vector<2x128x64xf32> to vector<2x128x32xf32>
    %c0_13 = arith.constant 0 : index
    %c0_14 = arith.constant 0 : index
    %10 = vector.load %arg6[%c0_13, %c0_14] : memref<32x64xf32, #tpu.memory_space<vmem>>, vector<32x64xf32>
    %c0_15 = arith.constant 0 : index
    %c0_16 = arith.constant 0 : index
    %11 = vector.load %arg7[%c0_15, %c0_16] : memref<1x64xf32, #tpu.memory_space<vmem>>, vector<1x64xf32>
    %c0_17 = arith.constant 0 : index
    %c0_18 = arith.constant 0 : index
    %12 = vector.load %arg8[%c0_17, %c0_18] : memref<64x32xf32, #tpu.memory_space<vmem>>, vector<64x32xf32>
    %13 = arith.truncf %8 : vector<2x128x32xf32> to vector<2x128x32xbf16>
    "tpu.trace_start"() <{level = 10 : i32, message = "gen,gnh->geh"}> : () -> ()
    %cst_19 = arith.constant dense<0.000000e+00> : vector<2x128x32xf32>
    %14 = tpu.matmul %0, %13, %cst_19 {dimension_numbers = #tpu.dot_dimension_numbers<[2], [1], [1], [2], [0, 0, 0, 1, 1, 2], [0], [0]>} : vector<2x128x128xbf16>, vector<2x128x32xbf16>, vector<2x128x32xf32> -> vector<2x128x32xf32>
    "tpu.trace_stop"() : () -> ()
    %cst_20 = arith.constant 0.000000e+00 : f32
    %15 = vector.broadcast %cst_20 : f32 to vector<2x128x32xf32>
    %16 = arith.maximumf %14, %15 : vector<2x128x32xf32>
    %cst_21 = arith.constant 1.000000e-07 : f32
    %17 = vector.broadcast %cst_21 : f32 to vector<2x128x32xf32>
    %18 = arith.addf %16, %17 : vector<2x128x32xf32>
    %cst_22 = arith.constant dense<0xFF800000> : vector<2x32xf32>
    %19 = vector.multi_reduction <maximumf>, %18, %cst_22 [1] : vector<2x128x32xf32> to vector<2x32xf32>
    %20 = vector.shape_cast %19 : vector<2x32xf32> to vector<2x1x32xf32>
    %21 = vector.broadcast %20 : vector<2x1x32xf32> to vector<2x128x32xf32>
    %22 = arith.subf %18, %21 : vector<2x128x32xf32>
    %23 = math.exp %22 : vector<2x128x32xf32>
    %24 = arith.mulf %18, %23 : vector<2x128x32xf32>
    %25 = tpu.concatenate %24, %23 in 2 : vector<2x128x32xf32>, vector<2x128x32xf32> -> vector<2x128x64xf32>
    %26 = arith.truncf %25 : vector<2x128x64xf32> to vector<2x128x64xbf16>
    "tpu.trace_start"() <{level = 10 : i32, message = "gne,geh->gnh"}> : () -> ()
    %cst_23 = arith.constant dense<0.000000e+00> : vector<2x128x64xf32>
    %27 = tpu.matmul %1, %26, %cst_23 {dimension_numbers = #tpu.dot_dimension_numbers<[2], [1], [1], [2], [0, 0, 0, 1, 1, 2], [0], [0]>} : vector<2x128x128xbf16>, vector<2x128x64xbf16>, vector<2x128x64xf32> -> vector<2x128x64xf32>
    "tpu.trace_stop"() : () -> ()
    %28 = vector.extract_strided_slice %27 {offsets = [0, 0, 0], sizes = [2, 128, 32], strides = [1, 1, 1]} : vector<2x128x64xf32> to vector<2x128x32xf32>
    %29 = vector.extract_strided_slice %27 {offsets = [0, 0, 32], sizes = [2, 128, 32], strides = [1, 1, 1]} : vector<2x128x64xf32> to vector<2x128x32xf32>
    %cst_24 = arith.constant 0.000000e+00 : f32
    %30 = vector.broadcast %cst_24 : f32 to vector<2x128x32xf32>
    %31 = arith.cmpf ogt, %29, %30 : vector<2x128x32xf32>
    %cst_25 = arith.constant 1.000000e+00 : f32
    %32 = vector.broadcast %cst_25 : f32 to vector<2x128x32xf32>
    %33 = arith.select %31, %29, %32 : vector<2x128x32xi1>, vector<2x128x32xf32>
    %34 = tpu.reciprocal %33 {approx = true} : vector<2x128x32xf32> -> vector<2x128x32xf32>
    %35 = arith.mulf %28, %34 : vector<2x128x32xf32>
    %36 = arith.addf %35, %9 : vector<2x128x32xf32>
    %37 = vector.shape_cast %36 : vector<2x128x32xf32> to vector<256x32xf32>
    %cst_26 = arith.constant dense<0.000000e+00> : vector<256x64xf32>
    %38 = tpu.matmul %37, %10, %cst_26 {dimension_numbers = #tpu.dot_dimension_numbers<[1], [0], [0], [1], [0, 0, 1, 1], [], []>} : vector<256x32xf32>, vector<32x64xf32>, vector<256x64xf32> -> vector<256x64xf32>
    %39 = vector.broadcast %11 : vector<1x64xf32> to vector<256x64xf32>
    %40 = arith.addf %38, %39 : vector<256x64xf32>
    %cst_27 = arith.constant 0.000000e+00 : f32
    %41 = vector.broadcast %cst_27 : f32 to vector<256x64xf32>
    %42 = arith.maximumf %40, %41 : vector<256x64xf32>
    %cst_28 = arith.constant dense<0.000000e+00> : vector<256x32xf32>
    %43 = tpu.matmul %42, %12, %cst_28 {dimension_numbers = #tpu.dot_dimension_numbers<[1], [0], [0], [1], [0, 0, 1, 1], [], []>} : vector<256x64xf32>, vector<64x32xf32>, vector<256x32xf32> -> vector<256x32xf32>
    %44 = vector.shape_cast %43 : vector<256x32xf32> to vector<2x128x32xf32>
    %cst_29 = arith.constant 0.000000e+00 : f32
    %45 = vector.broadcast %cst_29 : f32 to vector<2x128x32xf32>
    %46 = arith.maximumf %44, %45 : vector<2x128x32xf32>
    %c0_30 = arith.constant 0 : index
    %c0_31 = arith.constant 0 : index
    %47 = vector.load %arg9[%c0_30, %c0_31] : memref<32x64xf32, #tpu.memory_space<vmem>>, vector<32x64xf32>
    %c0_32 = arith.constant 0 : index
    %c0_33 = arith.constant 0 : index
    %48 = vector.load %arg10[%c0_32, %c0_33] : memref<1x64xf32, #tpu.memory_space<vmem>>, vector<1x64xf32>
    %c0_34 = arith.constant 0 : index
    %c0_35 = arith.constant 0 : index
    %49 = vector.load %arg11[%c0_34, %c0_35] : memref<64x32xf32, #tpu.memory_space<vmem>>, vector<64x32xf32>
    %50 = arith.truncf %46 : vector<2x128x32xf32> to vector<2x128x32xbf16>
    "tpu.trace_start"() <{level = 10 : i32, message = "gen,gnh->geh"}> : () -> ()
    %cst_36 = arith.constant dense<0.000000e+00> : vector<2x128x32xf32>
    %51 = tpu.matmul %0, %50, %cst_36 {dimension_numbers = #tpu.dot_dimension_numbers<[2], [1], [1], [2], [0, 0, 0, 1, 1, 2], [0], [0]>} : vector<2x128x128xbf16>, vector<2x128x32xbf16>, vector<2x128x32xf32> -> vector<2x128x32xf32>
    "tpu.trace_stop"() : () -> ()
    %cst_37 = arith.constant 0.000000e+00 : f32
    %52 = vector.broadcast %cst_37 : f32 to vector<2x128x32xf32>
    %53 = arith.maximumf %51, %52 : vector<2x128x32xf32>
    %cst_38 = arith.constant 1.000000e-07 : f32
    %54 = vector.broadcast %cst_38 : f32 to vector<2x128x32xf32>
    %55 = arith.addf %53, %54 : vector<2x128x32xf32>
    %cst_39 = arith.constant dense<0xFF800000> : vector<2x32xf32>
    %56 = vector.multi_reduction <maximumf>, %55, %cst_39 [1] : vector<2x128x32xf32> to vector<2x32xf32>
    %57 = vector.shape_cast %56 : vector<2x32xf32> to vector<2x1x32xf32>
    %58 = vector.broadcast %57 : vector<2x1x32xf32> to vector<2x128x32xf32>
    %59 = arith.subf %55, %58 : vector<2x128x32xf32>
    %60 = math.exp %59 : vector<2x128x32xf32>
    %61 = arith.mulf %55, %60 : vector<2x128x32xf32>
    %62 = tpu.concatenate %61, %60 in 2 : vector<2x128x32xf32>, vector<2x128x32xf32> -> vector<2x128x64xf32>
    %63 = arith.truncf %62 : vector<2x128x64xf32> to vector<2x128x64xbf16>
    "tpu.trace_start"() <{level = 10 : i32, message = "gne,geh->gnh"}> : () -> ()
    %cst_40 = arith.constant dense<0.000000e+00> : vector<2x128x64xf32>
    %64 = tpu.matmul %1, %63, %cst_40 {dimension_numbers = #tpu.dot_dimension_numbers<[2], [1], [1], [2], [0, 0, 0, 1, 1, 2], [0], [0]>} : vector<2x128x128xbf16>, vector<2x128x64xbf16>, vector<2x128x64xf32> -> vector<2x128x64xf32>
    "tpu.trace_stop"() : () -> ()
    %65 = vector.extract_strided_slice %64 {offsets = [0, 0, 0], sizes = [2, 128, 32], strides = [1, 1, 1]} : vector<2x128x64xf32> to vector<2x128x32xf32>
    %66 = vector.extract_strided_slice %64 {offsets = [0, 0, 32], sizes = [2, 128, 32], strides = [1, 1, 1]} : vector<2x128x64xf32> to vector<2x128x32xf32>
    %cst_41 = arith.constant 0.000000e+00 : f32
    %67 = vector.broadcast %cst_41 : f32 to vector<2x128x32xf32>
    %68 = arith.cmpf ogt, %66, %67 : vector<2x128x32xf32>
    %cst_42 = arith.constant 1.000000e+00 : f32
    %69 = vector.broadcast %cst_42 : f32 to vector<2x128x32xf32>
    %70 = arith.select %68, %66, %69 : vector<2x128x32xi1>, vector<2x128x32xf32>
    %71 = tpu.reciprocal %70 {approx = true} : vector<2x128x32xf32> -> vector<2x128x32xf32>
    %72 = arith.mulf %65, %71 : vector<2x128x32xf32>
    %73 = arith.addf %72, %46 : vector<2x128x32xf32>
    %74 = vector.shape_cast %73 : vector<2x128x32xf32> to vector<256x32xf32>
    %cst_43 = arith.constant dense<0.000000e+00> : vector<256x64xf32>
    %75 = tpu.matmul %74, %47, %cst_43 {dimension_numbers = #tpu.dot_dimension_numbers<[1], [0], [0], [1], [0, 0, 1, 1], [], []>} : vector<256x32xf32>, vector<32x64xf32>, vector<256x64xf32> -> vector<256x64xf32>
    %76 = vector.broadcast %48 : vector<1x64xf32> to vector<256x64xf32>
    %77 = arith.addf %75, %76 : vector<256x64xf32>
    %cst_44 = arith.constant 0.000000e+00 : f32
    %78 = vector.broadcast %cst_44 : f32 to vector<256x64xf32>
    %79 = arith.maximumf %77, %78 : vector<256x64xf32>
    %cst_45 = arith.constant dense<0.000000e+00> : vector<256x32xf32>
    %80 = tpu.matmul %79, %49, %cst_45 {dimension_numbers = #tpu.dot_dimension_numbers<[1], [0], [0], [1], [0, 0, 1, 1], [], []>} : vector<256x64xf32>, vector<64x32xf32>, vector<256x32xf32> -> vector<256x32xf32>
    %81 = vector.shape_cast %80 : vector<256x32xf32> to vector<2x128x32xf32>
    %cst_46 = arith.constant 0.000000e+00 : f32
    %82 = vector.broadcast %cst_46 : f32 to vector<2x128x32xf32>
    %83 = arith.maximumf %81, %82 : vector<2x128x32xf32>
    %84 = vector.broadcast %2 : vector<2x128x1xf32> to vector<2x128x32xf32>
    %85 = arith.mulf %84, %83 : vector<2x128x32xf32>
    %cst_47 = arith.constant dense<0.000000e+00> : vector<2x32xf32>
    %86 = vector.multi_reduction <add>, %85, %cst_47 [1] : vector<2x128x32xf32> to vector<2x32xf32>
    %c0_48 = arith.constant 0 : index
    %c0_49 = arith.constant 0 : index
    %87 = vector.load %arg12[%c0_48, %c0_49] : memref<32x128xf32, #tpu.memory_space<vmem>>, vector<32x128xf32>
    %cst_50 = arith.constant dense<0.000000e+00> : vector<2x128xf32>
    %88 = tpu.matmul %86, %87, %cst_50 {dimension_numbers = #tpu.dot_dimension_numbers<[1], [0], [0], [1], [0, 0, 1, 1], [], []>} : vector<2x32xf32>, vector<32x128xf32>, vector<2x128xf32> -> vector<2x128xf32>
    %c0_51 = arith.constant 0 : index
    %c0_52 = arith.constant 0 : index
    %89 = vector.load %arg13[%c0_51, %c0_52] : memref<1x128xf32, #tpu.memory_space<vmem>>, vector<1x128xf32>
    %90 = vector.broadcast %89 : vector<1x128xf32> to vector<2x128xf32>
    %91 = arith.addf %88, %90 : vector<2x128xf32>
    %c0_53 = arith.constant 0 : index
    %c0_54 = arith.constant 0 : index
    %c0_55 = arith.constant 0 : index
    %92 = vector.load %arg14[%c0_53, %c0_54, %c0_55] : memref<1x2x128xf32, #tpu.memory_space<vmem>>, vector<1x2x128xf32>
    %93 = vector.shape_cast %92 : vector<1x2x128xf32> to vector<2x128xf32>
    %94 = vector.shape_cast %91 : vector<2x128xf32> to vector<1x2x128xf32>
    tpu.vector_store %arg14[%c0_53, %c0_54, %c0_55], %94 {strides = array<i32>} : memref<1x2x128xf32, #tpu.memory_space<vmem>>, vector<1x2x128xf32>,
    return
  }
  func.func @transform_0(%arg0: i32) -> (i32, i32, i32) {
    %c0_i32 = arith.constant 0 : i32
    %c0_i32_0 = arith.constant 0 : i32
    %c0_i32_1 = arith.constant 0 : i32
    return %arg0, %c0_i32, %c0_i32_0 : i32, i32, i32
  }
  func.func @transform_1(%arg0: i32) -> (i32, i32, i32) {
    %c0_i32 = arith.constant 0 : i32
    %c0_i32_0 = arith.constant 0 : i32
    %c0_i32_1 = arith.constant 0 : i32
    return %arg0, %c0_i32, %c0_i32_0 : i32, i32, i32
  }
  func.func @transform_2(%arg0: i32) -> (i32, i32, i32) {
    %c0_i32 = arith.constant 0 : i32
    %c0_i32_0 = arith.constant 0 : i32
    %c0_i32_1 = arith.constant 0 : i32
    return %arg0, %c0_i32, %c0_i32_0 : i32, i32, i32
  }
  func.func @transform_3(%arg0: i32) -> (i32, i32, i32) {
    %c0_i32 = arith.constant 0 : i32
    %c0_i32_0 = arith.constant 0 : i32
    %c0_i32_1 = arith.constant 0 : i32
    return %arg0, %c0_i32, %c0_i32_0 : i32, i32, i32
  }
  func.func @transform_4(%arg0: i32) -> (i32, i32) {
    %c0_i32 = arith.constant 0 : i32
    %c0_i32_0 = arith.constant 0 : i32
    %c0_i32_1 = arith.constant 0 : i32
    return %c0_i32, %c0_i32_0 : i32, i32
  }
  func.func @transform_5(%arg0: i32) -> (i32, i32) {
    %c0_i32 = arith.constant 0 : i32
    %c0_i32_0 = arith.constant 0 : i32
    %c0_i32_1 = arith.constant 0 : i32
    return %c0_i32, %c0_i32_0 : i32, i32
  }
  func.func @transform_6(%arg0: i32) -> (i32, i32) {
    %c0_i32 = arith.constant 0 : i32
    %c0_i32_0 = arith.constant 0 : i32
    %c0_i32_1 = arith.constant 0 : i32
    return %c0_i32, %c0_i32_0 : i32, i32
  }
  func.func @transform_7(%arg0: i32) -> (i32, i32) {
    %c0_i32 = arith.constant 0 : i32
    %c0_i32_0 = arith.constant 0 : i32
    %c0_i32_1 = arith.constant 0 : i32
    return %c0_i32, %c0_i32_0 : i32, i32
  }
  func.func @transform_8(%arg0: i32) -> (i32, i32) {
    %c0_i32 = arith.constant 0 : i32
    %c0_i32_0 = arith.constant 0 : i32
    %c0_i32_1 = arith.constant 0 : i32
    return %c0_i32, %c0_i32_0 : i32, i32
  }
  func.func @transform_9(%arg0: i32) -> (i32, i32) {
    %c0_i32 = arith.constant 0 : i32
    %c0_i32_0 = arith.constant 0 : i32
    %c0_i32_1 = arith.constant 0 : i32
    return %c0_i32, %c0_i32_0 : i32, i32
  }
  func.func @transform_10(%arg0: i32) -> (i32, i32) {
    %c0_i32 = arith.constant 0 : i32
    %c0_i32_0 = arith.constant 0 : i32
    %c0_i32_1 = arith.constant 0 : i32
    return %c0_i32, %c0_i32_0 : i32, i32
  }
  func.func @transform_11(%arg0: i32) -> (i32, i32) {
    %c0_i32 = arith.constant 0 : i32
    %c0_i32_0 = arith.constant 0 : i32
    %c0_i32_1 = arith.constant 0 : i32
    return %c0_i32, %c0_i32_0 : i32, i32
  }
  func.func @transform_12(%arg0: i32) -> (i32, i32) {
    %c0_i32 = arith.constant 0 : i32
    %c0_i32_0 = arith.constant 0 : i32
    %c0_i32_1 = arith.constant 0 : i32
    return %c0_i32, %c0_i32_0 : i32, i32
  }
  func.func @transform_13(%arg0: i32) -> (i32, i32, i32) {
    %c0_i32 = arith.constant 0 : i32
    %c0_i32_0 = arith.constant 0 : i32
    %c0_i32_1 = arith.constant 0 : i32
    return %arg0, %c0_i32, %c0_i32_0 : i32, i32, i32
  }
}

</mosaic_0001>

<llo_original>
// kernel: tpu_custom_call.1
$region0: #{tpu_custom_call.1}
  #allocation0 [shape = 'u32[]', space=smem, size = 0x4, offset = 0x4, fixed_abs, tag = 'smem constant byte address 0x4 - core index']
  #allocation1 [shape = 'u32[144,128]{1,0:T(1,128)}', space=vmem, size = 0x12000, scoped, tag = 'internal scratch']
  %s0 = inlined_call_operand.vmem [shape: f32[2,128,4], index: 0, kind: input, shape index: {}]
  %s1 = inlined_call_operand.vmem [shape: bf16[2,128,128], index: 1, kind: input, shape index: {}]
  %s2 = inlined_call_operand.vmem [shape: bf16[2,128,128], index: 2, kind: input, shape index: {}]
  %s3 = inlined_call_operand.vmem [shape: f32[2,128,1], index: 3, kind: input, shape index: {}]
  %s4 = inlined_call_operand.vmem [shape: f32[4,64], index: 4, kind: input, shape index: {}]
  %s5 = inlined_call_operand.vmem [shape: f32[32,64], index: 5, kind: input, shape index: {}]
  %s6 = inlined_call_operand.vmem [shape: f32[1,64], index: 6, kind: input, shape index: {}]
  %s7 = inlined_call_operand.vmem [shape: f32[64,32], index: 7, kind: input, shape index: {}]
  %s8 = inlined_call_operand.vmem [shape: f32[32,64], index: 8, kind: input, shape index: {}]
  %s9 = inlined_call_operand.vmem [shape: f32[1,64], index: 9, kind: input, shape index: {}]
  %s10 = inlined_call_operand.vmem [shape: f32[64,32], index: 10, kind: input, shape index: {}]
  %s11 = inlined_call_operand.vmem [shape: f32[32,128], index: 11, kind: input, shape index: {}]
  %s12 = inlined_call_operand.vmem [shape: f32[1,128], index: 12, kind: input, shape index: {}]
  %s13 = inlined_call_operand.hbm [shape: f32[1,2,128], index: 13, kind: output, shape index: {}]
  %s14 = sld [smem:[#allocation0]]
  $region62: #{tpu_custom_call.1} parent=0
    _
  %s16 = ssub.s32 1, %s14
  %s17 = scalar_select 0, %s16, %s14
  $region1: #{tpu_custom_call.1} parent=0
    #allocation2 [shape = 'u8[1024]{0}', space=vmem, size = 0x400, scoped, tag = 'output window, operand 0, single buffered']
    #allocation3 [shape = 's32[1]{0}', space=sflag, size = 0x4, scoped, tag = 'scoped memory for tpu_custom_call.1']
    %18 = vsyncpa [#allocation3], 0
    // Predicated region
    $region2: #{tpu_custom_call.1} parent=1 // pred_check
      _
    $region3: #{tpu_custom_call.1} parent=1 // pred_check_branch
      %20 = sbr.rel (0) target = $region5
    $region4: #{tpu_custom_call.1} parent=1 // pred_region
      _
    $region5: #{tpu_custom_call.1} parent=1 // pred_fallthru
      _
    // Predicated region
    $region6: #{tpu_custom_call.1} parent=1 // pred_check
      _
    $region7: #{tpu_custom_call.1} parent=1 // pred_check_branch
      %22 = sbr.rel (0) target = $region9
    $region8: #{tpu_custom_call.1} parent=1 // pred_region
      _
    $region9: #{tpu_custom_call.1} parent=1 // pred_fallthru
      _
    // Predicated region
    $region10: #{tpu_custom_call.1} parent=1 // pred_check
      _
    $region11: #{tpu_custom_call.1} parent=1 // pred_check_branch
      %24 = sbr.rel (0) target = $region13
    $region12: #{tpu_custom_call.1} parent=1 // pred_region
      _
    $region13: #{tpu_custom_call.1} parent=1 // pred_fallthru
      _
    // Predicated region
    $region14: #{tpu_custom_call.1} parent=1 // pred_check
      _
    $region15: #{tpu_custom_call.1} parent=1 // pred_check_branch
      %26 = sbr.rel (0) target = $region17
    $region16: #{tpu_custom_call.1} parent=1 // pred_region
      _
    $region17: #{tpu_custom_call.1} parent=1 // pred_fallthru
      _
    // Predicated region
    $region18: #{tpu_custom_call.1} parent=1 // pred_check
      _
    $region19: #{tpu_custom_call.1} parent=1 // pred_check_branch
      %28 = sbr.rel (0) target = $region21
    $region20: #{tpu_custom_call.1} parent=1 // pred_region
      _
    $region21: #{tpu_custom_call.1} parent=1 // pred_fallthru
      _
    // Predicated region
    $region22: #{tpu_custom_call.1} parent=1 // pred_check
      _
    $region23: #{tpu_custom_call.1} parent=1 // pred_check_branch
      %30 = sbr.rel (0) target = $region25
    $region24: #{tpu_custom_call.1} parent=1 // pred_region
      _
    $region25: #{tpu_custom_call.1} parent=1 // pred_fallthru
      _
    // Predicated region
    $region26: #{tpu_custom_call.1} parent=1 // pred_check
      _
    $region27: #{tpu_custom_call.1} parent=1 // pred_check_branch
      %32 = sbr.rel (0) target = $region29
    $region28: #{tpu_custom_call.1} parent=1 // pred_region
      _
    $region29: #{tpu_custom_call.1} parent=1 // pred_fallthru
      _
    // Predicated region
    $region30: #{tpu_custom_call.1} parent=1 // pred_check
      _
    $region31: #{tpu_custom_call.1} parent=1 // pred_check_branch
      %34 = sbr.rel (0) target = $region33
    $region32: #{tpu_custom_call.1} parent=1 // pred_region
      _
    $region33: #{tpu_custom_call.1} parent=1 // pred_fallthru
      _
    // Predicated region
    $region34: #{tpu_custom_call.1} parent=1 // pred_check
      _
    $region35: #{tpu_custom_call.1} parent=1 // pred_check_branch
      %36 = sbr.rel (0) target = $region37
    $region36: #{tpu_custom_call.1} parent=1 // pred_region
      _
    $region37: #{tpu_custom_call.1} parent=1 // pred_fallthru
      _
    // Predicated region
    $region38: #{tpu_custom_call.1} parent=1 // pred_check
      _
    $region39: #{tpu_custom_call.1} parent=1 // pred_check_branch
      %38 = sbr.rel (0) target = $region41
    $region40: #{tpu_custom_call.1} parent=1 // pred_region
      _
    $region41: #{tpu_custom_call.1} parent=1 // pred_fallthru
      _
    // Predicated region
    $region42: #{tpu_custom_call.1} parent=1 // pred_check
      _
    $region43: #{tpu_custom_call.1} parent=1 // pred_check_branch
      %40 = sbr.rel (0) target = $region45
    $region44: #{tpu_custom_call.1} parent=1 // pred_region
      _
    $region45: #{tpu_custom_call.1} parent=1 // pred_fallthru
      _
    // Predicated region
    $region46: #{tpu_custom_call.1} parent=1 // pred_check
      _
    $region47: #{tpu_custom_call.1} parent=1 // pred_check_branch
      %42 = sbr.rel (0) target = $region49
    $region48: #{tpu_custom_call.1} parent=1 // pred_region
      _
    $region49: #{tpu_custom_call.1} parent=1 // pred_fallthru
      _
    // Predicated region
    $region50: #{tpu_custom_call.1} parent=1 // pred_check
      _
    $region51: #{tpu_custom_call.1} parent=1 // pred_check_branch
      %44 = sbr.rel (0) target = $region53
    $region52: #{tpu_custom_call.1} parent=1 // pred_region
      _
    $region53: #{tpu_custom_call.1} parent=1 // pred_fallthru
      _
    %v46 = vld [vmem:[%s1] sm:$0xf]
    %v47 = vld [vmem:[%s1 + $0x4] sm:$0xf]
    %v48 = vld [vmem:[%s1 + $0x8] sm:$0xf]
    %v49 = vld [vmem:[%s1 + $0xc] sm:$0xf]
    %v50 = vld [vmem:[%s1 + $0x10] sm:$0xf]
    %v51 = vld [vmem:[%s1 + $0x14] sm:$0xf]
    %v52 = vld [vmem:[%s1 + $0x18] sm:$0xf]
    %v53 = vld [vmem:[%s1 + $0x1c] sm:$0xf]
    %v54 = vld [vmem:[%s1 + $0x20] sm:$0xf]
    %v55 = vld [vmem:[%s1 + $0x24] sm:$0xf]
    %v56 = vld [vmem:[%s1 + $0x28] sm:$0xf]
    %v57 = vld [vmem:[%s1 + $0x2c] sm:$0xf]
    %v58 = vld [vmem:[%s1 + $0x30] sm:$0xf]
    %v59 = vld [vmem:[%s1 + $0x34] sm:$0xf]
    %v60 = vld [vmem:[%s1 + $0x38] sm:$0xf]
    %v61 = vld [vmem:[%s1 + $0x3c] sm:$0xf]
    %v62 = vld [vmem:[%s1 + $0x40] sm:$0xf]
    %v63 = vld [vmem:[%s1 + $0x44] sm:$0xf]
    %v64 = vld [vmem:[%s1 + $0x48] sm:$0xf]
    %v65 = vld [vmem:[%s1 + $0x4c] sm:$0xf]
    %v66 = vld [vmem:[%s1 + $0x50] sm:$0xf]
    %v67 = vld [vmem:[%s1 + $0x54] sm:$0xf]
    %v68 = vld [vmem:[%s1 + $0x58] sm:$0xf]
    %v69 = vld [vmem:[%s1 + $0x5c] sm:$0xf]
    %v70 = vld [vmem:[%s1 + $0x60] sm:$0xf]
    %v71 = vld [vmem:[%s1 + $0x64] sm:$0xf]
    %v72 = vld [vmem:[%s1 + $0x68] sm:$0xf]
    %v73 = vld [vmem:[%s1 + $0x6c] sm:$0xf]
    %v74 = vld [vmem:[%s1 + $0x70] sm:$0xf]
    %v75 = vld [vmem:[%s1 + $0x74] sm:$0xf]
    %v76 = vld [vmem:[%s1 + $0x78] sm:$0xf]
    %v77 = vld [vmem:[%s1 + $0x7c] sm:$0xf]
    %v78 = vld [vmem:[%s2] sm:$0xf]
    %v79 = vld [vmem:[%s2 + $0x4] sm:$0xf]
    %v80 = vld [vmem:[%s2 + $0x8] sm:$0xf]
    %v81 = vld [vmem:[%s2 + $0xc] sm:$0xf]
    %v82 = vld [vmem:[%s2 + $0x10] sm:$0xf]
    %v83 = vld [vmem:[%s2 + $0x14] sm:$0xf]
    %v84 = vld [vmem:[%s2 + $0x18] sm:$0xf]
    %v85 = vld [vmem:[%s2 + $0x1c] sm:$0xf]
    %v86 = vld [vmem:[%s2 + $0x20] sm:$0xf]
    %v87 = vld [vmem:[%s2 + $0x24] sm:$0xf]
    %v88 = vld [vmem:[%s2 + $0x28] sm:$0xf]
    %v89 = vld [vmem:[%s2 + $0x2c] sm:$0xf]
    %v90 = vld [vmem:[%s2 + $0x30] sm:$0xf]
    %v91 = vld [vmem:[%s2 + $0x34] sm:$0xf]
    %v92 = vld [vmem:[%s2 + $0x38] sm:$0xf]
    %v93 = vld [vmem:[%s2 + $0x3c] sm:$0xf]
    %v94 = vld [vmem:[%s2 + $0x40] sm:$0xf]
    %v95 = vld [vmem:[%s2 + $0x44] sm:$0xf]
    %v96 = vld [vmem:[%s2 + $0x48] sm:$0xf]
    %v97 = vld [vmem:[%s2 + $0x4c] sm:$0xf]
    %v98 = vld [vmem:[%s2 + $0x50] sm:$0xf]
    %v99 = vld [vmem:[%s2 + $0x54] sm:$0xf]
    %v100 = vld [vmem:[%s2 + $0x58] sm:$0xf]
    %v101 = vld [vmem:[%s2 + $0x5c] sm:$0xf]
    %v102 = vld [vmem:[%s2 + $0x60] sm:$0xf]
    %v103 = vld [vmem:[%s2 + $0x64] sm:$0xf]
    %v104 = vld [vmem:[%s2 + $0x68] sm:$0xf]
    %v105 = vld [vmem:[%s2 + $0x6c] sm:$0xf]
    %v106 = vld [vmem:[%s2 + $0x70] sm:$0xf]
    %v107 = vld [vmem:[%s2 + $0x74] sm:$0xf]
    %v108 = vld [vmem:[%s2 + $0x78] sm:$0xf]
    %v109 = vld [vmem:[%s2 + $0x7c] sm:$0xf]
    %v110 = vld [vmem:[%s3] sm:$0xff]
    %v111 = vld [vmem:[%s3 + $0x8] sm:$0xff]
    %v112 = vld [vmem:[%s3 + $0x10] sm:$0xff]
    %v113 = vld [vmem:[%s3 + $0x18] sm:$0xff]
    %v114 = vld [vmem:[%s3 + $0x20] sm:$0xff]
    %v115 = vld [vmem:[%s3 + $0x28] sm:$0xff]
    %v116 = vld [vmem:[%s3 + $0x30] sm:$0xff]
    %v117 = vld [vmem:[%s3 + $0x38] sm:$0xff]
    %v118 = vld [vmem:[%s3 + $0x40] sm:$0xff]
    %v119 = vld [vmem:[%s3 + $0x48] sm:$0xff]
    %v120 = vld [vmem:[%s3 + $0x50] sm:$0xff]
    %v121 = vld [vmem:[%s3 + $0x58] sm:$0xff]
    %v122 = vld [vmem:[%s3 + $0x60] sm:$0xff]
    %v123 = vld [vmem:[%s3 + $0x68] sm:$0xff]
    %v124 = vld [vmem:[%s3 + $0x70] sm:$0xff]
    %v125 = vld [vmem:[%s3 + $0x78] sm:$0xff]
    %v126 = vld [vmem:[%s3 + $0x80] sm:$0xff]
    %v127 = vld [vmem:[%s3 + $0x88] sm:$0xff]
    %v128 = vld [vmem:[%s3 + $0x90] sm:$0xff]
    %v129 = vld [vmem:[%s3 + $0x98] sm:$0xff]
    %v130 = vld [vmem:[%s3 + $0xa0] sm:$0xff]
    %v131 = vld [vmem:[%s3 + $0xa8] sm:$0xff]
    %v132 = vld [vmem:[%s3 + $0xb0] sm:$0xff]
    %v133 = vld [vmem:[%s3 + $0xb8] sm:$0xff]
    %v134 = vld [vmem:[%s3 + $0xc0] sm:$0xff]
    %v135 = vld [vmem:[%s3 + $0xc8] sm:$0xff]
    %v136 = vld [vmem:[%s3 + $0xd0] sm:$0xff]
    %v137 = vld [vmem:[%s3 + $0xd8] sm:$0xff]
    %v138 = vld [vmem:[%s3 + $0xe0] sm:$0xff]
    %v139 = vld [vmem:[%s3 + $0xe8] sm:$0xff]
    %v140 = vld [vmem:[%s3 + $0xf0] sm:$0xff]
    %v141 = vld [vmem:[%s3 + $0xf8] sm:$0xff]
    %v142 = vld [vmem:[%s0] sm:$0xff]
    %v143 = vld [vmem:[%s0 + $0x8] sm:$0xff]
    %v144 = vld [vmem:[%s0 + $0x10] sm:$0xff]
    %v145 = vld [vmem:[%s0 + $0x18] sm:$0xff]
    %v146 = vld [vmem:[%s0 + $0x20] sm:$0xff]
    %v147 = vld [vmem:[%s0 + $0x28] sm:$0xff]
    %v148 = vld [vmem:[%s0 + $0x30] sm:$0xff]
    %v149 = vld [vmem:[%s0 + $0x38] sm:$0xff]
    %v150 = vld [vmem:[%s0 + $0x40] sm:$0xff]
    %v151 = vld [vmem:[%s0 + $0x48] sm:$0xff]
    %v152 = vld [vmem:[%s0 + $0x50] sm:$0xff]
    %v153 = vld [vmem:[%s0 + $0x58] sm:$0xff]
    %v154 = vld [vmem:[%s0 + $0x60] sm:$0xff]
    %v155 = vld [vmem:[%s0 + $0x68] sm:$0xff]
    %v156 = vld [vmem:[%s0 + $0x70] sm:$0xff]
    %v157 = vld [vmem:[%s0 + $0x78] sm:$0xff]
    %v158 = vld [vmem:[%s0 + $0x80] sm:$0xff]
    %v159 = vld [vmem:[%s0 + $0x88] sm:$0xff]
    %v160 = vld [vmem:[%s0 + $0x90] sm:$0xff]
    %v161 = vld [vmem:[%s0 + $0x98] sm:$0xff]
    %v162 = vld [vmem:[%s0 + $0xa0] sm:$0xff]
    %v163 = vld [vmem:[%s0 + $0xa8] sm:$0xff]
    %v164 = vld [vmem:[%s0 + $0xb0] sm:$0xff]
    %v165 = vld [vmem:[%s0 + $0xb8] sm:$0xff]
    %v166 = vld [vmem:[%s0 + $0xc0] sm:$0xff]
    %v167 = vld [vmem:[%s0 + $0xc8] sm:$0xff]
    %v168 = vld [vmem:[%s0 + $0xd0] sm:$0xff]
    %v169 = vld [vmem:[%s0 + $0xd8] sm:$0xff]
    %v170 = vld [vmem:[%s0 + $0xe0] sm:$0xff]
    %v171 = vld [vmem:[%s0 + $0xe8] sm:$0xff]
    %v172 = vld [vmem:[%s0 + $0xf0] sm:$0xff]
    %v173 = vld [vmem:[%s0 + $0xf8] sm:$0xff]
    %v174 = vld [vmem:[%s4] sm:$0xf]
    %vm175 = vcmask 31744
    %v177 = vsel %vm175, %v142, 0
    %v180 = vsel %vm175, %v143, 0
    %v183 = vsel %vm175, %v144, 0
    %v186 = vsel %vm175, %v145, 0
    %v189 = vsel %vm175, %v146, 0
    %v192 = vsel %vm175, %v147, 0
    %v195 = vsel %vm175, %v148, 0
    %v198 = vsel %vm175, %v149, 0
    %v201 = vsel %vm175, %v150, 0
    %v204 = vsel %vm175, %v151, 0
    %v207 = vsel %vm175, %v152, 0
    %v210 = vsel %vm175, %v153, 0
    %v213 = vsel %vm175, %v154, 0
    %v216 = vsel %vm175, %v155, 0
    %v219 = vsel %vm175, %v156, 0
    %v222 = vsel %vm175, %v157, 0
    %v225 = vsel %vm175, %v158, 0
    %v228 = vsel %vm175, %v159, 0
    %v231 = vsel %vm175, %v160, 0
    %v234 = vsel %vm175, %v161, 0
    %v237 = vsel %vm175, %v162, 0
    %v240 = vsel %vm175, %v163, 0
    %v243 = vsel %vm175, %v164, 0
    %v246 = vsel %vm175, %v165, 0
    %v249 = vsel %vm175, %v166, 0
    %v252 = vsel %vm175, %v167, 0
    %v255 = vsel %vm175, %v168, 0
    %v258 = vsel %vm175, %v169, 0
    %v261 = vsel %vm175, %v170, 0
    %v264 = vsel %vm175, %v171, 0
    %v267 = vsel %vm175, %v172, 0
    %v270 = vsel %vm175, %v173, 0
    %vm272 = vcmask 1043456
    %v274 = vsel %vm272, %v174, 0
    %276 = vmatprep.subr.mxu0 0.0
    %277 = vmatpush1.msra.mxu0 %v274
    %278 = vmatprep.subr.mxu0 0.0
    %279 = vmatpush1.msra.mxu0 0.0
    %280 = vmatprep.subr.mxu0 0.0
    %281 = vmatpush1.msra.mxu0 0.0
    %282 = vmatprep.subr.mxu0 0.0
    %283 = vmatpush1.msra.mxu0 0.0
    %284 = vmatprep.subr.mxu0 0.0
    %285 = vmatpush1.msra.mxu0 0.0
    %286 = vmatprep.subr.mxu0 0.0
    %287 = vmatpush1.msra.mxu0 0.0
    %288 = vmatprep.subr.mxu0 0.0
    %289 = vmatpush1.msra.mxu0 0.0
    %290 = vmatprep.subr.mxu0 0.0
    %291 = vmatpush1.msra.mxu0 0.0
    %292 = vmatprep.subr.mxu0 0.0
    %293 = vmatpush1.msra.mxu0 0.0
    %294 = vmatprep.subr.mxu0 0.0
    %295 = vmatpush1.msra.mxu0 0.0
    %296 = vmatprep.subr.mxu0 0.0
    %297 = vmatpush1.msra.mxu0 0.0
    %298 = vmatprep.subr.mxu0 0.0
    %299 = vmatpush1.msra.mxu0 0.0
    %300 = vmatprep.subr.mxu0 0.0
    %301 = vmatpush1.msra.mxu0 0.0
    %302 = vmatprep.subr.mxu0 0.0
    %303 = vmatpush1.msra.mxu0 0.0
    %304 = vmatprep.subr.mxu0 0.0
    %305 = vmatpush1.msra.mxu0 0.0
    %306 = vmatprep.subr.mxu0 0.0
    %307 = vmatpush1.msra.mxu0 0.0
    %308 = vmatprep.subr.mxu0 0.0
    %309 = vmatpush1.msra.mxu0 0.0
    %310 = vmatprep.subr.mxu0 0.0
    %311 = vmatpush1.msra.mxu0 0.0
    %312 = vmatprep.subr.mxu0 0.0
    %313 = vmatpush1.msra.mxu0 0.0
    %314 = vmatprep.subr.mxu0 0.0
    %315 = vmatpush1.msra.mxu0 0.0
    %316 = vmatprep.subr.mxu0 0.0
    %317 = vmatpush1.msra.mxu0 0.0
    %318 = vmatprep.subr.mxu0 0.0
    %319 = vmatpush1.msra.mxu0 0.0
    %320 = vmatprep.subr.mxu0 0.0
    %321 = vmatpush1.msra.mxu0 0.0
    %322 = vmatprep.subr.mxu0 0.0
    %323 = vmatpush1.msra.mxu0 0.0
    %324 = vmatprep.subr.mxu0 0.0
    %325 = vmatpush1.msra.mxu0 0.0
    %326 = vmatprep.subr.mxu0 0.0
    %327 = vmatpush1.msra.mxu0 0.0
    %328 = vmatprep.subr.mxu0 0.0
    %329 = vmatpush1.msra.mxu0 0.0
    %330 = vmatprep.subr.mxu0 0.0
    %331 = vmatpush1.msra.mxu0 0.0
    %332 = vmatprep.subr.mxu0 0.0
    %333 = vmatpush1.msra.mxu0 0.0
    %334 = vmatprep.subr.mxu0 0.0
    %335 = vmatpush1.msra.mxu0 0.0
    %336 = vmatprep.subr.mxu0 0.0
    %337 = vmatpush1.msra.mxu0 0.0
    %338 = vmatprep.subr.mxu0 0.0
    %339 = vmatpush1.msra.mxu0 0.0
    %340 = vmatprep.mubr.f32.mxu0 0.0
    %341 = vmatmul.mubr.f32.gmra.mrb[0].mxu0 %v177
    %v342 = vpop.f32.mrb[0].mxu0
    %v343 = vadd.f32 0.0, %v342
    %v344 = vpop.f32.mrb[0].mxu0
    %345 = vmatprep.mubr.f32.mxu0 0.0
    %346 = vmatmul.mubr.f32.gmra.mrb[0].mxu0 %v180
    %v347 = vpop.f32.mrb[0].mxu0
    %v348 = vadd.f32 0.0, %v347
    %v349 = vpop.f32.mrb[0].mxu0
    %350 = vmatprep.mubr.f32.mxu0 0.0
    %351 = vmatmul.mubr.f32.gmra.mrb[0].mxu0 %v183
    %v352 = vpop.f32.mrb[0].mxu0
    %v353 = vadd.f32 0.0, %v352
    %v354 = vpop.f32.mrb[0].mxu0
    %355 = vmatprep.mubr.f32.mxu0 0.0
    %356 = vmatmul.mubr.f32.gmra.mrb[0].mxu0 %v186
    %v357 = vpop.f32.mrb[0].mxu0
    %v358 = vadd.f32 0.0, %v357
    %v359 = vpop.f32.mrb[0].mxu0
    %360 = vmatprep.mubr.f32.mxu0 0.0
    %361 = vmatmul.mubr.f32.gmra.mrb[0].mxu0 %v189
    %v362 = vpop.f32.mrb[0].mxu0
    %v363 = vadd.f32 0.0, %v362
    %v364 = vpop.f32.mrb[0].mxu0
    %365 = vmatprep.mubr.f32.mxu0 0.0
    %366 = vmatmul.mubr.f32.gmra.mrb[0].mxu0 %v192
    %v367 = vpop.f32.mrb[0].mxu0
    %v368 = vadd.f32 0.0, %v367
    %v369 = vpop.f32.mrb[0].mxu0
    %370 = vmatprep.mubr.f32.mxu0 0.0
    %371 = vmatmul.mubr.f32.gmra.mrb[0].mxu0 %v195
    %v372 = vpop.f32.mrb[0].mxu0
    %v373 = vadd.f32 0.0, %v372
    %v374 = vpop.f32.mrb[0].mxu0
    %375 = vmatprep.mubr.f32.mxu0 0.0
    %376 = vmatmul.mubr.f32.gmra.mrb[0].mxu0 %v198
    %v377 = vpop.f32.mrb[0].mxu0
    %v378 = vadd.f32 0.0, %v377
    %v379 = vpop.f32.mrb[0].mxu0
    %380 = vmatprep.mubr.f32.mxu0 0.0
    %381 = vmatmul.mubr.f32.gmra.mrb[0].mxu0 %v201
    %v382 = vpop.f32.mrb[0].mxu0
    %v383 = vadd.f32 0.0, %v382
    %v384 = vpop.f32.mrb[0].mxu0
    %385 = vmatprep.mubr.f32.mxu0 0.0
    %386 = vmatmul.mubr.f32.gmra.mrb[0].mxu0 %v204
    %v387 = vpop.f32.mrb[0].mxu0
    %v388 = vadd.f32 0.0, %v387
    %v389 = vpop.f32.mrb[0].mxu0
    %390 = vmatprep.mubr.f32.mxu0 0.0
    %391 = vmatmul.mubr.f32.gmra.mrb[0].mxu0 %v207
    %v392 = vpop.f32.mrb[0].mxu0
    %v393 = vadd.f32 0.0, %v392
    %v394 = vpop.f32.mrb[0].mxu0
    %395 = vmatprep.mubr.f32.mxu0 0.0
    %396 = vmatmul.mubr.f32.gmra.mrb[0].mxu0 %v210
    %v397 = vpop.f32.mrb[0].mxu0
    %v398 = vadd.f32 0.0, %v397
    %v399 = vpop.f32.mrb[0].mxu0
    %400 = vmatprep.mubr.f32.mxu0 0.0
    %401 = vmatmul.mubr.f32.gmra.mrb[0].mxu0 %v213
    %v402 = vpop.f32.mrb[0].mxu0
    %v403 = vadd.f32 0.0, %v402
    %v404 = vpop.f32.mrb[0].mxu0
    %405 = vmatprep.mubr.f32.mxu0 0.0
    %406 = vmatmul.mubr.f32.gmra.mrb[0].mxu0 %v216
    %v407 = vpop.f32.mrb[0].mxu0
    %v408 = vadd.f32 0.0, %v407
    %v409 = vpop.f32.mrb[0].mxu0
    %410 = vmatprep.mubr.f32.mxu0 0.0
    %411 = vmatmul.mubr.f32.gmra.mrb[0].mxu0 %v219
    %v412 = vpop.f32.mrb[0].mxu0
    %v413 = vadd.f32 0.0, %v412
    %v414 = vpop.f32.mrb[0].mxu0
    %415 = vmatprep.mubr.f32.mxu0 0.0
    %416 = vmatmul.mubr.f32.gmra.mrb[0].mxu0 %v222
    %v417 = vpop.f32.mrb[0].mxu0
    %v418 = vadd.f32 0.0, %v417
    %v419 = vpop.f32.mrb[0].mxu0
    %420 = vmatprep.mubr.f32.mxu0 0.0
    %421 = vmatmul.mubr.f32.gmra.mrb[0].mxu0 %v225
    %v422 = vpop.f32.mrb[0].mxu0
    %v423 = vadd.f32 0.0, %v422
    %v424 = vpop.f32.mrb[0].mxu0
    %425 = vmatprep.mubr.f32.mxu0 0.0
    %426 = vmatmul.mubr.f32.gmra.mrb[0].mxu0 %v228
    %v427 = vpop.f32.mrb[0].mxu0
    %v428 = vadd.f32 0.0, %v427
    %v429 = vpop.f32.mrb[0].mxu0
    %430 = vmatprep.mubr.f32.mxu0 0.0
    %431 = vmatmul.mubr.f32.gmra.mrb[0].mxu0 %v231
    %v432 = vpop.f32.mrb[0].mxu0
    %v433 = vadd.f32 0.0, %v432
    %v434 = vpop.f32.mrb[0].mxu0
    %435 = vmatprep.mubr.f32.mxu0 0.0
    %436 = vmatmul.mubr.f32.gmra.mrb[0].mxu0 %v234
    %v437 = vpop.f32.mrb[0].mxu0
    %v438 = vadd.f32 0.0, %v437
    %v439 = vpop.f32.mrb[0].mxu0
    %440 = vmatprep.mubr.f32.mxu0 0.0
    %441 = vmatmul.mubr.f32.gmra.mrb[0].mxu0 %v237
    %v442 = vpop.f32.mrb[0].mxu0
    %v443 = vadd.f32 0.0, %v442
    %v444 = vpop.f32.mrb[0].mxu0
    %445 = vmatprep.mubr.f32.mxu0 0.0
    %446 = vmatmul.mubr.f32.gmra.mrb[0].mxu0 %v240
    %v447 = vpop.f32.mrb[0].mxu0
    %v448 = vadd.f32 0.0, %v447
    %v449 = vpop.f32.mrb[0].mxu0
    %450 = vmatprep.mubr.f32.mxu0 0.0
    %451 = vmatmul.mubr.f32.gmra.mrb[0].mxu0 %v243
    %v452 = vpop.f32.mrb[0].mxu0
    %v453 = vadd.f32 0.0, %v452
    %v454 = vpop.f32.mrb[0].mxu0
    %455 = vmatprep.mubr.f32.mxu0 0.0
    %456 = vmatmul.mubr.f32.gmra.mrb[0].mxu0 %v246
    %v457 = vpop.f32.mrb[0].mxu0
    %v458 = vadd.f32 0.0, %v457
    %v459 = vpop.f32.mrb[0].mxu0
    %460 = vmatprep.mubr.f32.mxu0 0.0
    %461 = vmatmul.mubr.f32.gmra.mrb[0].mxu0 %v249
    %v462 = vpop.f32.mrb[0].mxu0
    %v463 = vadd.f32 0.0, %v462
    %v464 = vpop.f32.mrb[0].mxu0
    %465 = vmatprep.mubr.f32.mxu0 0.0
    %466 = vmatmul.mubr.f32.gmra.mrb[0].mxu0 %v252
    %v467 = vpop.f32.mrb[0].mxu0
    %v468 = vadd.f32 0.0, %v467
    %v469 = vpop.f32.mrb[0].mxu0
    %470 = vmatprep.mubr.f32.mxu0 0.0
    %471 = vmatmul.mubr.f32.gmra.mrb[0].mxu0 %v255
    %v472 = vpop.f32.mrb[0].mxu0
    %v473 = vadd.f32 0.0, %v472
    %v474 = vpop.f32.mrb[0].mxu0
    %475 = vmatprep.mubr.f32.mxu0 0.0
    %476 = vmatmul.mubr.f32.gmra.mrb[0].mxu0 %v258
    %v477 = vpop.f32.mrb[0].mxu0
    %v478 = vadd.f32 0.0, %v477
    %v479 = vpop.f32.mrb[0].mxu0
    %480 = vmatprep.mubr.f32.mxu0 0.0
    %481 = vmatmul.mubr.f32.gmra.mrb[0].mxu0 %v261
    %v482 = vpop.f32.mrb[0].mxu0
    %v483 = vadd.f32 0.0, %v482
    %v484 = vpop.f32.mrb[0].mxu0
    %485 = vmatprep.mubr.f32.mxu0 0.0
    %486 = vmatmul.mubr.f32.gmra.mrb[0].mxu0 %v264
    %v487 = vpop.f32.mrb[0].mxu0
    %v488 = vadd.f32 0.0, %v487
    %v489 = vpop.f32.mrb[0].mxu0
    %490 = vmatprep.mubr.f32.mxu0 0.0
    %491 = vmatmul.mubr.f32.gmra.mrb[0].mxu0 %v267
    %v492 = vpop.f32.mrb[0].mxu0
    %v493 = vadd.f32 0.0, %v492
    %v494 = vpop.f32.mrb[0].mxu0
    %495 = vmatprep.mubr.f32.mxu0 0.0
    %496 = vmatmul.mubr.f32.gmra.mrb[0].mxu0 %v270
    %v497 = vpop.f32.mrb[0].mxu0
    %v498 = vadd.f32 0.0, %v497
    %v499 = vpop.f32.mrb[0].mxu0
    %500 = vdwg.mxu0
    %v501 = vld [vmem:[%s5] sm:$0xff]
    %v502 = vld [vmem:[%s5 + $0x8] sm:$0xff]
    %v503 = vld [vmem:[%s5 + $0x10] sm:$0xff]
    %v504 = vld [vmem:[%s5 + $0x18] sm:$0xff]
    %v505 = vld [vmem:[%s6] sm:$0x1]
    %v506 = vld [vmem:[%s7] sm:$0xff]
    %v507 = vld [vmem:[%s7 + $0x8] sm:$0xff]
    %v508 = vld [vmem:[%s7 + $0x10] sm:$0xff]
    %v509 = vld [vmem:[%s7 + $0x18] sm:$0xff]
    %v510 = vld [vmem:[%s7 + $0x20] sm:$0xff]
    %v511 = vld [vmem:[%s7 + $0x28] sm:$0xff]
    %v512 = vld [vmem:[%s7 + $0x30] sm:$0xff]
    %v513 = vld [vmem:[%s7 + $0x38] sm:$0xff]
    %v514 = vpack.c.bf16 %v348, %v343
    %v515 = vpack.c.bf16 %v358, %v353
    %v516 = vpack.c.bf16 %v368, %v363
    %v517 = vpack.c.bf16 %v378, %v373
    %v518 = vpack.c.bf16 %v388, %v383
    %v519 = vpack.c.bf16 %v398, %v393
    %v520 = vpack.c.bf16 %v408, %v403
    %v521 = vpack.c.bf16 %v418, %v413
    %v522 = vpack.c.bf16 %v428, %v423
    %v523 = vpack.c.bf16 %v438, %v433
    %v524 = vpack.c.bf16 %v448, %v443
    %v525 = vpack.c.bf16 %v458, %v453
    %v526 = vpack.c.bf16 %v468, %v463
    %v527 = vpack.c.bf16 %v478, %v473
    %v528 = vpack.c.bf16 %v488, %v483
    %v529 = vpack.c.bf16 %v498, %v493
    %v546 = vunpack.c.l.b16 %v46
    %v547 = vunpack.c.l.b16 %v47
    %v548 = vunpack.c.l.b16 %v48
    %v549 = vunpack.c.l.b16 %v49
    %v550 = vunpack.c.l.b16 %v50
    %v551 = vunpack.c.l.b16 %v51
    %v552 = vunpack.c.l.b16 %v52
    %v553 = vunpack.c.l.b16 %v53
    %v554 = vunpack.c.l.b16 %v54
    %v555 = vunpack.c.l.b16 %v55
    %v556 = vunpack.c.l.b16 %v56
    %v557 = vunpack.c.l.b16 %v57
    %v558 = vunpack.c.l.b16 %v58
    %v559 = vunpack.c.l.b16 %v59
    %v560 = vunpack.c.l.b16 %v60
    %v561 = vunpack.c.l.b16 %v61
    %v562 = vpack.c.b16 %v547, %v546
    %v563 = vpack.c.b16 %v549, %v548
    %v564 = vpack.c.b16 %v551, %v550
    %v565 = vpack.c.b16 %v553, %v552
    %v566 = vpack.c.b16 %v555, %v554
    %v567 = vpack.c.b16 %v557, %v556
    %v568 = vpack.c.b16 %v559, %v558
    %v569 = vpack.c.b16 %v561, %v560
    %578 = vmatprep.subr.bf16.mxu0 0
    %579 = vmatpush1.bf16.msra.mxu0 %v514
    %580 = vmatprep.subr.bf16.mxu0 0
    %581 = vmatpush1.bf16.msra.mxu0 %v515
    %582 = vmatprep.subr.bf16.mxu0 0
    %583 = vmatpush1.bf16.msra.mxu0 %v516
    %584 = vmatprep.subr.bf16.mxu0 0
    %585 = vmatpush1.bf16.msra.mxu0 %v517
    %586 = vmatprep.subr.bf16.mxu0 0
    %587 = vmatpush1.bf16.msra.mxu0 %v518
    %588 = vmatprep.subr.bf16.mxu0 0
    %589 = vmatpush1.bf16.msra.mxu0 %v519
    %590 = vmatprep.subr.bf16.mxu0 0
    %591 = vmatpush1.bf16.msra.mxu0 %v520
    %592 = vmatprep.subr.bf16.mxu0 0
    %593 = vmatpush1.bf16.msra.mxu0 %v521
    %594 = vmatprep.subr.bf16.mxu0 0
    %595 = vmatpush1.bf16.msra.mxu0 0
    %596 = vmatprep.subr.bf16.mxu0 0
    %597 = vmatpush1.bf16.msra.mxu0 0
    %598 = vmatprep.subr.bf16.mxu0 0
    %599 = vmatpush1.bf16.msra.mxu0 0
    %600 = vmatprep.subr.bf16.mxu0 0
    %601 = vmatpush1.bf16.msra.mxu0 0
    %602 = vmatprep.subr.bf16.mxu0 0
    %603 = vmatpush1.bf16.msra.mxu0 0
    %604 = vmatprep.subr.bf16.mxu0 0
    %605 = vmatpush1.bf16.msra.mxu0 0
    %606 = vmatprep.subr.bf16.mxu0 0
    %607 = vmatpush1.bf16.msra.mxu0 0
    %608 = vmatprep.subr.bf16.mxu0 0
    %609 = vmatpush1.bf16.msra.mxu0 0
    %610 = vmatprep.mubr.bf16.mxu0 0
    %611 = vmatmul.mubr.bf16.gmra.mrb[0].mxu0 %v562
    %v612 = vpop.f32.mrb[0].mxu0
    %v613 = vadd.f32 0.0, %v612
    %v614 = vpop.f32.mrb[0].mxu0
    %v615 = vpop.f32.mrb[0].mxu0
    %v616 = vadd.f32 0.0, %v615
    %v617 = vpop.f32.mrb[0].mxu0
    %618 = vmatprep.mubr.bf16.mxu0 0
    %619 = vmatmul.mubr.bf16.gmra.mrb[0].mxu0 %v563
    %v620 = vpop.f32.mrb[0].mxu0
    %v621 = vadd.f32 0.0, %v620
    %v622 = vpop.f32.mrb[0].mxu0
    %v623 = vpop.f32.mrb[0].mxu0
    %v624 = vadd.f32 0.0, %v623
    %v625 = vpop.f32.mrb[0].mxu0
    %626 = vmatprep.mubr.bf16.mxu0 0
    %627 = vmatmul.mubr.bf16.gmra.mrb[0].mxu0 %v564
    %v628 = vpop.f32.mrb[0].mxu0
    %v629 = vadd.f32 0.0, %v628
    %v630 = vpop.f32.mrb[0].mxu0
    %v631 = vpop.f32.mrb[0].mxu0
    %v632 = vadd.f32 0.0, %v631
    %v633 = vpop.f32.mrb[0].mxu0
    %634 = vmatprep.mubr.bf16.mxu0 0
    %635 = vmatmul.mubr.bf16.gmra.mrb[0].mxu0 %v565
    %v636 = vpop.f32.mrb[0].mxu0
    %v637 = vadd.f32 0.0, %v636
    %v638 = vpop.f32.mrb[0].mxu0
    %v639 = vpop.f32.mrb[0].mxu0
    %v640 = vadd.f32 0.0, %v639
    %v641 = vpop.f32.mrb[0].mxu0
    %642 = vmatprep.mubr.bf16.mxu0 0
    %643 = vmatmul.mubr.bf16.gmra.mrb[0].mxu0 %v566
    %v644 = vpop.f32.mrb[0].mxu0
    %v645 = vadd.f32 0.0, %v644
    %v646 = vpop.f32.mrb[0].mxu0
    %v647 = vpop.f32.mrb[0].mxu0
    %v648 = vadd.f32 0.0, %v647
    %v649 = vpop.f32.mrb[0].mxu0
    %650 = vmatprep.mubr.bf16.mxu0 0
    %651 = vmatmul.mubr.bf16.gmra.mrb[0].mxu0 %v567
    %v652 = vpop.f32.mrb[0].mxu0
    %v653 = vadd.f32 0.0, %v652
    %v654 = vpop.f32.mrb[0].mxu0
    %v655 = vpop.f32.mrb[0].mxu0
    %v656 = vadd.f32 0.0, %v655
    %v657 = vpop.f32.mrb[0].mxu0
    %658 = vmatprep.mubr.bf16.mxu0 0
    %659 = vmatmul.mubr.bf16.gmra.mrb[0].mxu0 %v568
    %v660 = vpop.f32.mrb[0].mxu0
    %v661 = vadd.f32 0.0, %v660
    %v662 = vpop.f32.mrb[0].mxu0
    %v663 = vpop.f32.mrb[0].mxu0
    %v664 = vadd.f32 0.0, %v663
    %v665 = vpop.f32.mrb[0].mxu0
    %666 = vmatprep.mubr.bf16.mxu0 0
    %667 = vmatmul.mubr.bf16.gmra.mrb[0].mxu0 %v569
    %v668 = vpop.f32.mrb[0].mxu0
    %v669 = vadd.f32 0.0, %v668
    %v670 = vpop.f32.mrb[0].mxu0
    %v671 = vpop.f32.mrb[0].mxu0
    %v672 = vadd.f32 0.0, %v671
    %v673 = vpop.f32.mrb[0].mxu0
    %674 = vdwg.mxu0
    %v691 = vunpack.c.l.b16 %v62
    %v692 = vunpack.c.l.b16 %v63
    %v693 = vunpack.c.l.b16 %v64
    %v694 = vunpack.c.l.b16 %v65
    %v695 = vunpack.c.l.b16 %v66
    %v696 = vunpack.c.l.b16 %v67
    %v697 = vunpack.c.l.b16 %v68
    %v698 = vunpack.c.l.b16 %v69
    %v699 = vunpack.c.l.b16 %v70
    %v700 = vunpack.c.l.b16 %v71
    %v701 = vunpack.c.l.b16 %v72
    %v702 = vunpack.c.l.b16 %v73
    %v703 = vunpack.c.l.b16 %v74
    %v704 = vunpack.c.l.b16 %v75
    %v705 = vunpack.c.l.b16 %v76
    %v706 = vunpack.c.l.b16 %v77
    %v707 = vpack.c.b16 %v692, %v691
    %v708 = vpack.c.b16 %v694, %v693
    %v709 = vpack.c.b16 %v696, %v695
    %v710 = vpack.c.b16 %v698, %v697
    %v711 = vpack.c.b16 %v700, %v699
    %v712 = vpack.c.b16 %v702, %v701
    %v713 = vpack.c.b16 %v704, %v703
    %v714 = vpack.c.b16 %v706, %v705
    %723 = vmatprep.subr.bf16.mxu0 0
    %724 = vmatpush1.bf16.msra.mxu0 %v522
    %725 = vmatprep.subr.bf16.mxu0 0
    %726 = vmatpush1.bf16.msra.mxu0 %v523
    %727 = vmatprep.subr.bf16.mxu0 0
    %728 = vmatpush1.bf16.msra.mxu0 %v524
    %729 = vmatprep.subr.bf16.mxu0 0
    %730 = vmatpush1.bf16.msra.mxu0 %v525
    %731 = vmatprep.subr.bf16.mxu0 0
    %732 = vmatpush1.bf16.msra.mxu0 %v526
    %733 = vmatprep.subr.bf16.mxu0 0
    %734 = vmatpush1.bf16.msra.mxu0 %v527
    %735 = vmatprep.subr.bf16.mxu0 0
    %736 = vmatpush1.bf16.msra.mxu0 %v528
    %737 = vmatprep.subr.bf16.mxu0 0
    %738 = vmatpush1.bf16.msra.mxu0 %v529
    %739 = vmatprep.subr.bf16.mxu0 0
    %740 = vmatpush1.bf16.msra.mxu0 0
    %741 = vmatprep.subr.bf16.mxu0 0
    %742 = vmatpush1.bf16.msra.mxu0 0
    %743 = vmatprep.subr.bf16.mxu0 0
    %744 = vmatpush1.bf16.msra.mxu0 0
    %745 = vmatprep.subr.bf16.mxu0 0
    %746 = vmatpush1.bf16.msra.mxu0 0
    %747 = vmatprep.subr.bf16.mxu0 0
    %748 = vmatpush1.bf16.msra.mxu0 0
    %749 = vmatprep.subr.bf16.mxu0 0
    %750 = vmatpush1.bf16.msra.mxu0 0
    %751 = vmatprep.subr.bf16.mxu0 0
    %752 = vmatpush1.bf16.msra.mxu0 0
    %753 = vmatprep.subr.bf16.mxu0 0
    %754 = vmatpush1.bf16.msra.mxu0 0
    %755 = vmatprep.mubr.bf16.mxu0 0
    %756 = vmatmul.mubr.bf16.gmra.mrb[0].mxu0 %v707
    %v757 = vpop.f32.mrb[0].mxu0
    %v758 = vadd.f32 0.0, %v757
    %v759 = vpop.f32.mrb[0].mxu0
    %v760 = vpop.f32.mrb[0].mxu0
    %v761 = vadd.f32 0.0, %v760
    %v762 = vpop.f32.mrb[0].mxu0
    %763 = vmatprep.mubr.bf16.mxu0 0
    %764 = vmatmul.mubr.bf16.gmra.mrb[0].mxu0 %v708
    %v765 = vpop.f32.mrb[0].mxu0
    %v766 = vadd.f32 0.0, %v765
    %v767 = vpop.f32.mrb[0].mxu0
    %v768 = vpop.f32.mrb[0].mxu0
    %v769 = vadd.f32 0.0, %v768
    %v770 = vpop.f32.mrb[0].mxu0
    %771 = vmatprep.mubr.bf16.mxu0 0
    %772 = vmatmul.mubr.bf16.gmra.mrb[0].mxu0 %v709
    %v773 = vpop.f32.mrb[0].mxu0
    %v774 = vadd.f32 0.0, %v773
    %v775 = vpop.f32.mrb[0].mxu0
    %v776 = vpop.f32.mrb[0].mxu0
    %v777 = vadd.f32 0.0, %v776
    %v778 = vpop.f32.mrb[0].mxu0
    %779 = vmatprep.mubr.bf16.mxu0 0
    %780 = vmatmul.mubr.bf16.gmra.mrb[0].mxu0 %v710
    %v781 = vpop.f32.mrb[0].mxu0
    %v782 = vadd.f32 0.0, %v781
    %v783 = vpop.f32.mrb[0].mxu0
    %v784 = vpop.f32.mrb[0].mxu0
    %v785 = vadd.f32 0.0, %v784
    %v786 = vpop.f32.mrb[0].mxu0
    %787 = vmatprep.mubr.bf16.mxu0 0
    %788 = vmatmul.mubr.bf16.gmra.mrb[0].mxu0 %v711
    %v789 = vpop.f32.mrb[0].mxu0
    %v790 = vadd.f32 0.0, %v789
    %v791 = vpop.f32.mrb[0].mxu0
    %v792 = vpop.f32.mrb[0].mxu0
    %v793 = vadd.f32 0.0, %v792
    %v794 = vpop.f32.mrb[0].mxu0
    %795 = vmatprep.mubr.bf16.mxu0 0
    %796 = vmatmul.mubr.bf16.gmra.mrb[0].mxu0 %v712
    %v797 = vpop.f32.mrb[0].mxu0
    %v798 = vadd.f32 0.0, %v797
    %v799 = vpop.f32.mrb[0].mxu0
    %v800 = vpop.f32.mrb[0].mxu0
    %v801 = vadd.f32 0.0, %v800
    %v802 = vpop.f32.mrb[0].mxu0
    %803 = vmatprep.mubr.bf16.mxu0 0
    %804 = vmatmul.mubr.bf16.gmra.mrb[0].mxu0 %v713
    %v805 = vpop.f32.mrb[0].mxu0
    %v806 = vadd.f32 0.0, %v805
    %v807 = vpop.f32.mrb[0].mxu0
    %v808 = vpop.f32.mrb[0].mxu0
    %v809 = vadd.f32 0.0, %v808
    %v810 = vpop.f32.mrb[0].mxu0
    %811 = vmatprep.mubr.bf16.mxu0 0
    %812 = vmatmul.mubr.bf16.gmra.mrb[0].mxu0 %v714
    %v813 = vpop.f32.mrb[0].mxu0
    %v814 = vadd.f32 0.0, %v813
    %v815 = vpop.f32.mrb[0].mxu0
    %v816 = vpop.f32.mrb[0].mxu0
    %v817 = vadd.f32 0.0, %v816
    %v818 = vpop.f32.mrb[0].mxu0
    %819 = vdwg.mxu0
    %v820 = vmax.f32 %v613, 0.0
    %v821 = vmax.f32 %v616, 0.0
    %v822 = vmax.f32 %v621, 0.0
    %v823 = vmax.f32 %v624, 0.0
    %v824 = vmax.f32 %v629, 0.0
    %v825 = vmax.f32 %v632, 0.0
    %v826 = vmax.f32 %v637, 0.0
    %v827 = vmax.f32 %v640, 0.0
    %v828 = vmax.f32 %v645, 0.0
    %v829 = vmax.f32 %v648, 0.0
    %v830 = vmax.f32 %v653, 0.0
    %v831 = vmax.f32 %v656, 0.0
    %v832 = vmax.f32 %v661, 0.0
    %v833 = vmax.f32 %v664, 0.0
    %v834 = vmax.f32 %v669, 0.0
    %v835 = vmax.f32 %v672, 0.0
    %v836 = vmax.f32 %v758, 0.0
    %v837 = vmax.f32 %v761, 0.0
    %v838 = vmax.f32 %v766, 0.0
    %v839 = vmax.f32 %v769, 0.0
    %v840 = vmax.f32 %v774, 0.0
    %v841 = vmax.f32 %v777, 0.0
    %v842 = vmax.f32 %v782, 0.0
    %v843 = vmax.f32 %v785, 0.0
    %v844 = vmax.f32 %v790, 0.0
    %v845 = vmax.f32 %v793, 0.0
    %v846 = vmax.f32 %v798, 0.0
    %v847 = vmax.f32 %v801, 0.0
    %v848 = vmax.f32 %v806, 0.0
    %v849 = vmax.f32 %v809, 0.0
    %v850 = vmax.f32 %v814, 0.0
    %v851 = vmax.f32 %v817, 0.0
    %v852 = vadd.f32 %v820, 1e-07
    %v853 = vadd.f32 %v821, 1e-07
    %v854 = vadd.f32 %v822, 1e-07
    %v855 = vadd.f32 %v823, 1e-07
    %v856 = vadd.f32 %v824, 1e-07
    %v857 = vadd.f32 %v825, 1e-07
    %v858 = vadd.f32 %v826, 1e-07
    %v859 = vadd.f32 %v827, 1e-07
    %v860 = vadd.f32 %v828, 1e-07
    %v861 = vadd.f32 %v829, 1e-07
    %v862 = vadd.f32 %v830, 1e-07
    %v863 = vadd.f32 %v831, 1e-07
    %v864 = vadd.f32 %v832, 1e-07
    %v865 = vadd.f32 %v833, 1e-07
    %v866 = vadd.f32 %v834, 1e-07
    %v867 = vadd.f32 %v835, 1e-07
    %v868 = vadd.f32 %v836, 1e-07
    %v869 = vadd.f32 %v837, 1e-07
    %v870 = vadd.f32 %v838, 1e-07
    %v871 = vadd.f32 %v839, 1e-07
    %v872 = vadd.f32 %v840, 1e-07
    %v873 = vadd.f32 %v841, 1e-07
    %v874 = vadd.f32 %v842, 1e-07
    %v875 = vadd.f32 %v843, 1e-07
    %v876 = vadd.f32 %v844, 1e-07
    %v877 = vadd.f32 %v845, 1e-07
    %v878 = vadd.f32 %v846, 1e-07
    %v879 = vadd.f32 %v847, 1e-07
    %v880 = vadd.f32 %v848, 1e-07
    %v881 = vadd.f32 %v849, 1e-07
    %v882 = vadd.f32 %v850, 1e-07
    %v883 = vadd.f32 %v851, 1e-07
    %vm884 = vcmask 261120
    %v885 = vsel %vm884, %v852, -inf
    %v886 = vsel %vm884, %v853, -inf
    %v887 = vsel %vm884, %v854, -inf
    %v888 = vmax.f32 %v885, %v887
    %v889 = vsel %vm884, %v855, -inf
    %v890 = vmax.f32 %v886, %v889
    %v891 = vsel %vm884, %v856, -inf
    %v892 = vmax.f32 %v888, %v891
    %v893 = vsel %vm884, %v857, -inf
    %v894 = vmax.f32 %v890, %v893
    %v895 = vsel %vm884, %v858, -inf
    %v896 = vmax.f32 %v892, %v895
    %v897 = vsel %vm884, %v859, -inf
    %v898 = vmax.f32 %v894, %v897
    %v899 = vsel %vm884, %v860, -inf
    %v900 = vmax.f32 %v896, %v899
    %v901 = vsel %vm884, %v861, -inf
    %v902 = vmax.f32 %v898, %v901
    %v903 = vsel %vm884, %v862, -inf
    %v904 = vmax.f32 %v900, %v903
    %v905 = vsel %vm884, %v863, -inf
    %v906 = vmax.f32 %v902, %v905
    %v907 = vsel %vm884, %v864, -inf
    %v908 = vmax.f32 %v904, %v907
    %v909 = vsel %vm884, %v865, -inf
    %v910 = vmax.f32 %v906, %v909
    %v911 = vsel %vm884, %v866, -inf
    %v912 = vmax.f32 %v908, %v911
    %v913 = vsel %vm884, %v867, -inf
    %v914 = vmax.f32 %v910, %v913
    %v915 = vmax.f32 %v912, %v914
    %v916 = vrot.slane %v915, 4
    %v917 = vmax.f32 %v915, %v916
    %v918 = vrot.slane %v917, 2
    %v919 = vmax.f32 %v917, %v918
    %v920 = vrot.slane %v919, 1
    %v921 = vmax.f32 %v919, %v920
    %v922 = vsel %vm884, %v868, -inf
    %v923 = vsel %vm884, %v869, -inf
    %v924 = vsel %vm884, %v870, -inf
    %v925 = vmax.f32 %v922, %v924
    %v926 = vsel %vm884, %v871, -inf
    %v927 = vmax.f32 %v923, %v926
    %v928 = vsel %vm884, %v872, -inf
    %v929 = vmax.f32 %v925, %v928
    %v930 = vsel %vm884, %v873, -inf
    %v931 = vmax.f32 %v927, %v930
    %v932 = vsel %vm884, %v874, -inf
    %v933 = vmax.f32 %v929, %v932
    %v934 = vsel %vm884, %v875, -inf
    %v935 = vmax.f32 %v931, %v934
    %v936 = vsel %vm884, %v876, -inf
    %v937 = vmax.f32 %v933, %v936
    %v938 = vsel %vm884, %v877, -inf
    %v939 = vmax.f32 %v935, %v938
    %v940 = vsel %vm884, %v878, -inf
    %v941 = vmax.f32 %v937, %v940
    %v942 = vsel %vm884, %v879, -inf
    %v943 = vmax.f32 %v939, %v942
    %v944 = vsel %vm884, %v880, -inf
    %v945 = vmax.f32 %v941, %v944
    %v946 = vsel %vm884, %v881, -inf
    %v947 = vmax.f32 %v943, %v946
    %v948 = vsel %vm884, %v882, -inf
    %v949 = vmax.f32 %v945, %v948
    %v950 = vsel %vm884, %v883, -inf
    %v951 = vmax.f32 %v947, %v950
    %v952 = vmax.f32 %v949, %v951
    %v953 = vrot.slane %v952, 4
    %v954 = vmax.f32 %v952, %v953
    %v955 = vrot.slane %v954, 2
    %v956 = vmax.f32 %v954, %v955
    %v957 = vrot.slane %v956, 1
    %v958 = vmax.f32 %v956, %v957
    %v959 = vsub.f32 %v852, %v921
    %v960 = vsub.f32 %v853, %v921
    %v961 = vsub.f32 %v854, %v921
    %v962 = vsub.f32 %v855, %v921
    %v963 = vsub.f32 %v856, %v921
    %v964 = vsub.f32 %v857, %v921
    %v965 = vsub.f32 %v858, %v921
    %v966 = vsub.f32 %v859, %v921
    %v967 = vsub.f32 %v860, %v921
    %v968 = vsub.f32 %v861, %v921
    %v969 = vsub.f32 %v862, %v921
    %v970 = vsub.f32 %v863, %v921
    %v971 = vsub.f32 %v864, %v921
    %v972 = vsub.f32 %v865, %v921
    %v973 = vsub.f32 %v866, %v921
    %v974 = vsub.f32 %v867, %v921
    %v975 = vsub.f32 %v868, %v958
    %v976 = vsub.f32 %v869, %v958
    %v977 = vsub.f32 %v870, %v958
    %v978 = vsub.f32 %v871, %v958
    %v979 = vsub.f32 %v872, %v958
    %v980 = vsub.f32 %v873, %v958
    %v981 = vsub.f32 %v874, %v958
    %v982 = vsub.f32 %v875, %v958
    %v983 = vsub.f32 %v876, %v958
    %v984 = vsub.f32 %v877, %v958
    %v985 = vsub.f32 %v878, %v958
    %v986 = vsub.f32 %v879, %v958
    %v987 = vsub.f32 %v880, %v958
    %v988 = vsub.f32 %v881, %v958
    %v989 = vsub.f32 %v882, %v958
    %v990 = vsub.f32 %v883, %v958
    %v991 = vmul.f32 %v959, 1.442695
    %v992 = vpow.pop %v991
    %v993 = vmul.f32 %v960, 1.442695
    %v994 = vpow.pop %v993
    %v995 = vmul.f32 %v961, 1.442695
    %v996 = vpow.pop %v995
    %v997 = vmul.f32 %v962, 1.442695
    %v998 = vpow.pop %v997
    %v999 = vmul.f32 %v963, 1.442695
    %v1000 = vpow.pop %v999
    %v1001 = vmul.f32 %v964, 1.442695
    %v1002 = vpow.pop %v1001
    %v1003 = vmul.f32 %v965, 1.442695
    %v1004 = vpow.pop %v1003
    %v1005 = vmul.f32 %v966, 1.442695
    %v1006 = vpow.pop %v1005
    %v1007 = vmul.f32 %v967, 1.442695
    %v1008 = vpow.pop %v1007
    %v1009 = vmul.f32 %v968, 1.442695
    %v1010 = vpow.pop %v1009
    %v1011 = vmul.f32 %v969, 1.442695
    %v1012 = vpow.pop %v1011
    %v1013 = vmul.f32 %v970, 1.442695
    %v1014 = vpow.pop %v1013
    %v1015 = vmul.f32 %v971, 1.442695
    %v1016 = vpow.pop %v1015
    %v1017 = vmul.f32 %v972, 1.442695
    %v1018 = vpow.pop %v1017
    %v1019 = vmul.f32 %v973, 1.442695
    %v1020 = vpow.pop %v1019
    %v1021 = vmul.f32 %v974, 1.442695
    %v1022 = vpow.pop %v1021
    %v1023 = vmul.f32 %v975, 1.442695
    %v1024 = vpow.pop %v1023
    %v1025 = vmul.f32 %v976, 1.442695
    %v1026 = vpow.pop %v1025
    %v1027 = vmul.f32 %v977, 1.442695
    %v1028 = vpow.pop %v1027
    %v1029 = vmul.f32 %v978, 1.442695
    %v1030 = vpow.pop %v1029
    %v1031 = vmul.f32 %v979, 1.442695
    %v1032 = vpow.pop %v1031
    %v1033 = vmul.f32 %v980, 1.442695
    %v1034 = vpow.pop %v1033
    %v1035 = vmul.f32 %v981, 1.442695
    %v1036 = vpow.pop %v1035
    %v1037 = vmul.f32 %v982, 1.442695
    %v1038 = vpow.pop %v1037
    %v1039 = vmul.f32 %v983, 1.442695
    %v1040 = vpow.pop %v1039
    %v1041 = vmul.f32 %v984, 1.442695
    %v1042 = vpow.pop %v1041
    %v1043 = vmul.f32 %v985, 1.442695
    %v1044 = vpow.pop %v1043
    %v1045 = vmul.f32 %v986, 1.442695
    %v1046 = vpow.pop %v1045
    %v1047 = vmul.f32 %v987, 1.442695
    %v1048 = vpow.pop %v1047
    %v1049 = vmul.f32 %v988, 1.442695
    %v1050 = vpow.pop %v1049
    %v1051 = vmul.f32 %v989, 1.442695
    %v1052 = vpow.pop %v1051
    %v1053 = vmul.f32 %v990, 1.442695
    %v1054 = vpow.pop %v1053
    %v1055 = vmul.f32 %v852, %v992
    %v1056 = vmul.f32 %v853, %v994
    %v1057 = vmul.f32 %v854, %v996
    %v1058 = vmul.f32 %v855, %v998
    %v1059 = vmul.f32 %v856, %v1000
    %v1060 = vmul.f32 %v857, %v1002
    %v1061 = vmul.f32 %v858, %v1004
    %v1062 = vmul.f32 %v859, %v1006
    %v1063 = vmul.f32 %v860, %v1008
    %v1064 = vmul.f32 %v861, %v1010
    %v1065 = vmul.f32 %v862, %v1012
    %v1066 = vmul.f32 %v863, %v1014
    %v1067 = vmul.f32 %v864, %v1016
    %v1068 = vmul.f32 %v865, %v1018
    %v1069 = vmul.f32 %v866, %v1020
    %v1070 = vmul.f32 %v867, %v1022
    %v1071 = vmul.f32 %v868, %v1024
    %v1072 = vmul.f32 %v869, %v1026
    %v1073 = vmul.f32 %v870, %v1028
    %v1074 = vmul.f32 %v871, %v1030
    %v1075 = vmul.f32 %v872, %v1032
    %v1076 = vmul.f32 %v873, %v1034
    %v1077 = vmul.f32 %v874, %v1036
    %v1078 = vmul.f32 %v875, %v1038
    %v1079 = vmul.f32 %v876, %v1040
    %v1080 = vmul.f32 %v877, %v1042
    %v1081 = vmul.f32 %v878, %v1044
    %v1082 = vmul.f32 %v879, %v1046
    %v1083 = vmul.f32 %v880, %v1048
    %v1084 = vmul.f32 %v881, %v1050
    %v1085 = vmul.f32 %v882, %v1052
    %v1086 = vmul.f32 %v883, %v1054
    %1119 = vrot.lane.b32.xlu0 %v992, 32
    %v1120 = vpop.permute.xlu0 %1119
    %1121 = vrot.lane.b32.xlu0 %v994, 32
    %v1122 = vpop.permute.xlu0 %1121
    %1123 = vrot.lane.b32.xlu0 %v996, 32
    %v1124 = vpop.permute.xlu0 %1123
    %1125 = vrot.lane.b32.xlu0 %v998, 32
    %v1126 = vpop.permute.xlu0 %1125
    %1127 = vrot.lane.b32.xlu0 %v1000, 32
    %v1128 = vpop.permute.xlu0 %1127
    %1129 = vrot.lane.b32.xlu0 %v1002, 32
    %v1130 = vpop.permute.xlu0 %1129
    %1131 = vrot.lane.b32.xlu0 %v1004, 32
    %v1132 = vpop.permute.xlu0 %1131
    %1133 = vrot.lane.b32.xlu0 %v1006, 32
    %v1134 = vpop.permute.xlu0 %1133
    %1135 = vrot.lane.b32.xlu0 %v1008, 32
    %v1136 = vpop.permute.xlu0 %1135
    %1137 = vrot.lane.b32.xlu0 %v1010, 32
    %v1138 = vpop.permute.xlu0 %1137
    %1139 = vrot.lane.b32.xlu0 %v1012, 32
    %v1140 = vpop.permute.xlu0 %1139
    %1141 = vrot.lane.b32.xlu0 %v1014, 32
    %v1142 = vpop.permute.xlu0 %1141
    %1143 = vrot.lane.b32.xlu0 %v1016, 32
    %v1144 = vpop.permute.xlu0 %1143
    %1145 = vrot.lane.b32.xlu0 %v1018, 32
    %v1146 = vpop.permute.xlu0 %1145
    %1147 = vrot.lane.b32.xlu0 %v1020, 32
    %v1148 = vpop.permute.xlu0 %1147
    %1149 = vrot.lane.b32.xlu0 %v1022, 32
    %v1150 = vpop.permute.xlu0 %1149
    %1151 = vrot.lane.b32.xlu0 %v1024, 32
    %v1152 = vpop.permute.xlu0 %1151
    %1153 = vrot.lane.b32.xlu0 %v1026, 32
    %v1154 = vpop.permute.xlu0 %1153
    %1155 = vrot.lane.b32.xlu0 %v1028, 32
    %v1156 = vpop.permute.xlu0 %1155
    %1157 = vrot.lane.b32.xlu0 %v1030, 32
    %v1158 = vpop.permute.xlu0 %1157
    %1159 = vrot.lane.b32.xlu0 %v1032, 32
    %v1160 = vpop.permute.xlu0 %1159
    %1161 = vrot.lane.b32.xlu0 %v1034, 32
    %v1162 = vpop.permute.xlu0 %1161
    %1163 = vrot.lane.b32.xlu0 %v1036, 32
    %v1164 = vpop.permute.xlu0 %1163
    %1165 = vrot.lane.b32.xlu0 %v1038, 32
    %v1166 = vpop.permute.xlu0 %1165
    %1167 = vrot.lane.b32.xlu0 %v1040, 32
    %v1168 = vpop.permute.xlu0 %1167
    %1169 = vrot.lane.b32.xlu0 %v1042, 32
    %v1170 = vpop.permute.xlu0 %1169
    %1171 = vrot.lane.b32.xlu0 %v1044, 32
    %v1172 = vpop.permute.xlu0 %1171
    %1173 = vrot.lane.b32.xlu0 %v1046, 32
    %v1174 = vpop.permute.xlu0 %1173
    %1175 = vrot.lane.b32.xlu0 %v1048, 32
    %v1176 = vpop.permute.xlu0 %1175
    %1177 = vrot.lane.b32.xlu0 %v1050, 32
    %v1178 = vpop.permute.xlu0 %1177
    %1179 = vrot.lane.b32.xlu0 %v1052, 32
    %v1180 = vpop.permute.xlu0 %1179
    %1181 = vrot.lane.b32.xlu0 %v1054, 32
    %v1182 = vpop.permute.xlu0 %1181
    %v1215 = vsel %vm884, %v1055, %v1120
    %v1216 = vsel %vm884, %v1056, %v1122
    %v1217 = vsel %vm884, %v1057, %v1124
    %v1218 = vsel %vm884, %v1058, %v1126
    %v1219 = vsel %vm884, %v1059, %v1128
    %v1220 = vsel %vm884, %v1060, %v1130
    %v1221 = vsel %vm884, %v1061, %v1132
    %v1222 = vsel %vm884, %v1062, %v1134
    %v1223 = vsel %vm884, %v1063, %v1136
    %v1224 = vsel %vm884, %v1064, %v1138
    %v1225 = vsel %vm884, %v1065, %v1140
    %v1226 = vsel %vm884, %v1066, %v1142
    %v1227 = vsel %vm884, %v1067, %v1144
    %v1228 = vsel %vm884, %v1068, %v1146
    %v1229 = vsel %vm884, %v1069, %v1148
    %v1230 = vsel %vm884, %v1070, %v1150
    %v1231 = vsel %vm884, %v1071, %v1152
    %v1232 = vsel %vm884, %v1072, %v1154
    %v1233 = vsel %vm884, %v1073, %v1156
    %v1234 = vsel %vm884, %v1074, %v1158
    %v1235 = vsel %vm884, %v1075, %v1160
    %v1236 = vsel %vm884, %v1076, %v1162
    %v1237 = vsel %vm884, %v1077, %v1164
    %v1238 = vsel %vm884, %v1078, %v1166
    %v1239 = vsel %vm884, %v1079, %v1168
    %v1240 = vsel %vm884, %v1080, %v1170
    %v1241 = vsel %vm884, %v1081, %v1172
    %v1242 = vsel %vm884, %v1082, %v1174
    %v1243 = vsel %vm884, %v1083, %v1176
    %v1244 = vsel %vm884, %v1084, %v1178
    %v1245 = vsel %vm884, %v1085, %v1180
    %v1246 = vsel %vm884, %v1086, %v1182
    %v1247 = vpack.c.bf16 %v1216, %v1215
    %v1248 = vpack.c.bf16 %v1218, %v1217
    %v1249 = vpack.c.bf16 %v1220, %v1219
    %v1250 = vpack.c.bf16 %v1222, %v1221
    %v1251 = vpack.c.bf16 %v1224, %v1223
    %v1252 = vpack.c.bf16 %v1226, %v1225
    %v1253 = vpack.c.bf16 %v1228, %v1227
    %v1254 = vpack.c.bf16 %v1230, %v1229
    %v1255 = vpack.c.bf16 %v1232, %v1231
    %v1256 = vpack.c.bf16 %v1234, %v1233
    %v1257 = vpack.c.bf16 %v1236, %v1235
    %v1258 = vpack.c.bf16 %v1238, %v1237
    %v1259 = vpack.c.bf16 %v1240, %v1239
    %v1260 = vpack.c.bf16 %v1242, %v1241
    %v1261 = vpack.c.bf16 %v1244, %v1243
    %v1262 = vpack.c.bf16 %v1246, %v1245
    %v1279 = vunpack.c.l.b16 %v78
    %v1280 = vunpack.c.l.b16 %v79
    %v1281 = vunpack.c.l.b16 %v80
    %v1282 = vunpack.c.l.b16 %v81
    %v1283 = vunpack.c.l.b16 %v82
    %v1284 = vunpack.c.l.b16 %v83
    %v1285 = vunpack.c.l.b16 %v84
    %v1286 = vunpack.c.l.b16 %v85
    %v1287 = vunpack.c.l.b16 %v86
    %v1288 = vunpack.c.l.b16 %v87
    %v1289 = vunpack.c.l.b16 %v88
    %v1290 = vunpack.c.l.b16 %v89
    %v1291 = vunpack.c.l.b16 %v90
    %v1292 = vunpack.c.l.b16 %v91
    %v1293 = vunpack.c.l.b16 %v92
    %v1294 = vunpack.c.l.b16 %v93
    %v1295 = vpack.c.b16 %v1280, %v1279
    %v1296 = vpack.c.b16 %v1282, %v1281
    %v1297 = vpack.c.b16 %v1284, %v1283
    %v1298 = vpack.c.b16 %v1286, %v1285
    %v1299 = vpack.c.b16 %v1288, %v1287
    %v1300 = vpack.c.b16 %v1290, %v1289
    %v1301 = vpack.c.b16 %v1292, %v1291
    %v1302 = vpack.c.b16 %v1294, %v1293
    %1311 = vmatprep.subr.bf16.mxu0 0
    %1312 = vmatpush1.bf16.msra.mxu0 %v1247
    %1313 = vmatprep.subr.bf16.mxu0 0
    %1314 = vmatpush1.bf16.msra.mxu0 %v1248
    %1315 = vmatprep.subr.bf16.mxu0 0
    %1316 = vmatpush1.bf16.msra.mxu0 %v1249
    %1317 = vmatprep.subr.bf16.mxu0 0
    %1318 = vmatpush1.bf16.msra.mxu0 %v1250
    %1319 = vmatprep.subr.bf16.mxu0 0
    %1320 = vmatpush1.bf16.msra.mxu0 %v1251
    %1321 = vmatprep.subr.bf16.mxu0 0
    %1322 = vmatpush1.bf16.msra.mxu0 %v1252
    %1323 = vmatprep.subr.bf16.mxu0 0
    %1324 = vmatpush1.bf16.msra.mxu0 %v1253
    %1325 = vmatprep.subr.bf16.mxu0 0
    %1326 = vmatpush1.bf16.msra.mxu0 %v1254
    %1327 = vmatprep.subr.bf16.mxu0 0
    %1328 = vmatpush1.bf16.msra.mxu0 0
    %1329 = vmatprep.subr.bf16.mxu0 0
    %1330 = vmatpush1.bf16.msra.mxu0 0
    %1331 = vmatprep.subr.bf16.mxu0 0
    %1332 = vmatpush1.bf16.msra.mxu0 0
    %1333 = vmatprep.subr.bf16.mxu0 0
    %1334 = vmatpush1.bf16.msra.mxu0 0
    %1335 = vmatprep.subr.bf16.mxu0 0
    %1336 = vmatpush1.bf16.msra.mxu0 0
    %1337 = vmatprep.subr.bf16.mxu0 0
    %1338 = vmatpush1.bf16.msra.mxu0 0
    %1339 = vmatprep.subr.bf16.mxu0 0
    %1340 = vmatpush1.bf16.msra.mxu0 0
    %1341 = vmatprep.subr.bf16.mxu0 0
    %1342 = vmatpush1.bf16.msra.mxu0 0
    %1343 = vmatprep.mubr.bf16.mxu0 0
    %1344 = vmatmul.mubr.bf16.gmra.mrb[0].mxu0 %v1295
    %v1345 = vpop.f32.mrb[0].mxu0
    %v1346 = vadd.f32 0.0, %v1345
    %v1347 = vpop.f32.mrb[0].mxu0
    %v1348 = vpop.f32.mrb[0].mxu0
    %v1349 = vadd.f32 0.0, %v1348
    %v1350 = vpop.f32.mrb[0].mxu0
    %1351 = vmatprep.mubr.bf16.mxu0 0
    %1352 = vmatmul.mubr.bf16.gmra.mrb[0].mxu0 %v1296
    %v1353 = vpop.f32.mrb[0].mxu0
    %v1354 = vadd.f32 0.0, %v1353
    %v1355 = vpop.f32.mrb[0].mxu0
    %v1356 = vpop.f32.mrb[0].mxu0
    %v1357 = vadd.f32 0.0, %v1356
    %v1358 = vpop.f32.mrb[0].mxu0
    %1359 = vmatprep.mubr.bf16.mxu0 0
    %1360 = vmatmul.mubr.bf16.gmra.mrb[0].mxu0 %v1297
    %v1361 = vpop.f32.mrb[0].mxu0
    %v1362 = vadd.f32 0.0, %v1361
    %v1363 = vpop.f32.mrb[0].mxu0
    %v1364 = vpop.f32.mrb[0].mxu0
    %v1365 = vadd.f32 0.0, %v1364
    %v1366 = vpop.f32.mrb[0].mxu0
    %1367 = vmatprep.mubr.bf16.mxu0 0
    %1368 = vmatmul.mubr.bf16.gmra.mrb[0].mxu0 %v1298
    %v1369 = vpop.f32.mrb[0].mxu0
    %v1370 = vadd.f32 0.0, %v1369
    %v1371 = vpop.f32.mrb[0].mxu0
    %v1372 = vpop.f32.mrb[0].mxu0
    %v1373 = vadd.f32 0.0, %v1372
    %v1374 = vpop.f32.mrb[0].mxu0
    %1375 = vmatprep.mubr.bf16.mxu0 0
    %1376 = vmatmul.mubr.bf16.gmra.mrb[0].mxu0 %v1299
    %v1377 = vpop.f32.mrb[0].mxu0
    %v1378 = vadd.f32 0.0, %v1377
    %v1379 = vpop.f32.mrb[0].mxu0
    %v1380 = vpop.f32.mrb[0].mxu0
    %v1381 = vadd.f32 0.0, %v1380
    %v1382 = vpop.f32.mrb[0].mxu0
    %1383 = vmatprep.mubr.bf16.mxu0 0
    %1384 = vmatmul.mubr.bf16.gmra.mrb[0].mxu0 %v1300
    %v1385 = vpop.f32.mrb[0].mxu0
    %v1386 = vadd.f32 0.0, %v1385
    %v1387 = vpop.f32.mrb[0].mxu0
    %v1388 = vpop.f32.mrb[0].mxu0
    %v1389 = vadd.f32 0.0, %v1388
    %v1390 = vpop.f32.mrb[0].mxu0
    %1391 = vmatprep.mubr.bf16.mxu0 0
    %1392 = vmatmul.mubr.bf16.gmra.mrb[0].mxu0 %v1301
    %v1393 = vpop.f32.mrb[0].mxu0
    %v1394 = vadd.f32 0.0, %v1393
    %v1395 = vpop.f32.mrb[0].mxu0
    %v1396 = vpop.f32.mrb[0].mxu0
    %v1397 = vadd.f32 0.0, %v1396
    %v1398 = vpop.f32.mrb[0].mxu0
    %1399 = vmatprep.mubr.bf16.mxu0 0
    %1400 = vmatmul.mubr.bf16.gmra.mrb[0].mxu0 %v1302
    %v1401 = vpop.f32.mrb[0].mxu0
    %v1402 = vadd.f32 0.0, %v1401
    %v1403 = vpop.f32.mrb[0].mxu0
    %v1404 = vpop.f32.mrb[0].mxu0
    %v1405 = vadd.f32 0.0, %v1404
    %v1406 = vpop.f32.mrb[0].mxu0
    %1407 = vdwg.mxu0
    %v1424 = vunpack.c.l.b16 %v94
    %v1425 = vunpack.c.l.b16 %v95
    %v1426 = vunpack.c.l.b16 %v96
    %v1427 = vunpack.c.l.b16 %v97
    %v1428 = vunpack.c.l.b16 %v98
    %v1429 = vunpack.c.l.b16 %v99
    %v1430 = vunpack.c.l.b16 %v100
    %v1431 = vunpack.c.l.b16 %v101
    %v1432 = vunpack.c.l.b16 %v102
    %v1433 = vunpack.c.l.b16 %v103
    %v1434 = vunpack.c.l.b16 %v104
    %v1435 = vunpack.c.l.b16 %v105
    %v1436 = vunpack.c.l.b16 %v106
    %v1437 = vunpack.c.l.b16 %v107
    %v1438 = vunpack.c.l.b16 %v108
    %v1439 = vunpack.c.l.b16 %v109
    %v1440 = vpack.c.b16 %v1425, %v1424
    %v1441 = vpack.c.b16 %v1427, %v1426
    %v1442 = vpack.c.b16 %v1429, %v1428
    %v1443 = vpack.c.b16 %v1431, %v1430
    %v1444 = vpack.c.b16 %v1433, %v1432
    %v1445 = vpack.c.b16 %v1435, %v1434
    %v1446 = vpack.c.b16 %v1437, %v1436
    %v1447 = vpack.c.b16 %v1439, %v1438
    %1456 = vmatprep.subr.bf16.mxu0 0
    %1457 = vmatpush1.bf16.msra.mxu0 %v1255
    %1458 = vmatprep.subr.bf16.mxu0 0
    %1459 = vmatpush1.bf16.msra.mxu0 %v1256
    %1460 = vmatprep.subr.bf16.mxu0 0
    %1461 = vmatpush1.bf16.msra.mxu0 %v1257
    %1462 = vmatprep.subr.bf16.mxu0 0
    %1463 = vmatpush1.bf16.msra.mxu0 %v1258
    %1464 = vmatprep.subr.bf16.mxu0 0
    %1465 = vmatpush1.bf16.msra.mxu0 %v1259
    %1466 = vmatprep.subr.bf16.mxu0 0
    %1467 = vmatpush1.bf16.msra.mxu0 %v1260
    %1468 = vmatprep.subr.bf16.mxu0 0
    %1469 = vmatpush1.bf16.msra.mxu0 %v1261
    %1470 = vmatprep.subr.bf16.mxu0 0
    %1471 = vmatpush1.bf16.msra.mxu0 %v1262
    %1472 = vmatprep.subr.bf16.mxu0 0
    %1473 = vmatpush1.bf16.msra.mxu0 0
    %1474 = vmatprep.subr.bf16.mxu0 0
    %1475 = vmatpush1.bf16.msra.mxu0 0
    %1476 = vmatprep.subr.bf16.mxu0 0
    %1477 = vmatpush1.bf16.msra.mxu0 0
    %1478 = vmatprep.subr.bf16.mxu0 0
    %1479 = vmatpush1.bf16.msra.mxu0 0
    %1480 = vmatprep.subr.bf16.mxu0 0
    %1481 = vmatpush1.bf16.msra.mxu0 0
    %1482 = vmatprep.subr.bf16.mxu0 0
    %1483 = vmatpush1.bf16.msra.mxu0 0
    %1484 = vmatprep.subr.bf16.mxu0 0
    %1485 = vmatpush1.bf16.msra.mxu0 0
    %1486 = vmatprep.subr.bf16.mxu0 0
    %1487 = vmatpush1.bf16.msra.mxu0 0
    %1488 = vmatprep.mubr.bf16.mxu0 0
    %1489 = vmatmul.mubr.bf16.gmra.mrb[0].mxu0 %v1440
    %v1490 = vpop.f32.mrb[0].mxu0
    %v1491 = vadd.f32 0.0, %v1490
    %v1492 = vpop.f32.mrb[0].mxu0
    %v1493 = vpop.f32.mrb[0].mxu0
    %v1494 = vadd.f32 0.0, %v1493
    %v1495 = vpop.f32.mrb[0].mxu0
    %1496 = vmatprep.mubr.bf16.mxu0 0
    %1497 = vmatmul.mubr.bf16.gmra.mrb[0].mxu0 %v1441
    %v1498 = vpop.f32.mrb[0].mxu0
    %v1499 = vadd.f32 0.0, %v1498
    %v1500 = vpop.f32.mrb[0].mxu0
    %v1501 = vpop.f32.mrb[0].mxu0
    %v1502 = vadd.f32 0.0, %v1501
    %v1503 = vpop.f32.mrb[0].mxu0
    %1504 = vmatprep.mubr.bf16.mxu0 0
    %1505 = vmatmul.mubr.bf16.gmra.mrb[0].mxu0 %v1442
    %v1506 = vpop.f32.mrb[0].mxu0
    %v1507 = vadd.f32 0.0, %v1506
    %v1508 = vpop.f32.mrb[0].mxu0
    %v1509 = vpop.f32.mrb[0].mxu0
    %v1510 = vadd.f32 0.0, %v1509
    %v1511 = vpop.f32.mrb[0].mxu0
    %1512 = vmatprep.mubr.bf16.mxu0 0
    %1513 = vmatmul.mubr.bf16.gmra.mrb[0].mxu0 %v1443
    %v1514 = vpop.f32.mrb[0].mxu0
    %v1515 = vadd.f32 0.0, %v1514
    %v1516 = vpop.f32.mrb[0].mxu0
    %v1517 = vpop.f32.mrb[0].mxu0
    %v1518 = vadd.f32 0.0, %v1517
    %v1519 = vpop.f32.mrb[0].mxu0
    %1520 = vmatprep.mubr.bf16.mxu0 0
    %1521 = vmatmul.mubr.bf16.gmra.mrb[0].mxu0 %v1444
    %v1522 = vpop.f32.mrb[0].mxu0
    %v1523 = vadd.f32 0.0, %v1522
    %v1524 = vpop.f32.mrb[0].mxu0
    %v1525 = vpop.f32.mrb[0].mxu0
    %v1526 = vadd.f32 0.0, %v1525
    %v1527 = vpop.f32.mrb[0].mxu0
    %1528 = vmatprep.mubr.bf16.mxu0 0
    %1529 = vmatmul.mubr.bf16.gmra.mrb[0].mxu0 %v1445
    %v1530 = vpop.f32.mrb[0].mxu0
    %v1531 = vadd.f32 0.0, %v1530
    %v1532 = vpop.f32.mrb[0].mxu0
    %v1533 = vpop.f32.mrb[0].mxu0
    %v1534 = vadd.f32 0.0, %v1533
    %v1535 = vpop.f32.mrb[0].mxu0
    %1536 = vmatprep.mubr.bf16.mxu0 0
    %1537 = vmatmul.mubr.bf16.gmra.mrb[0].mxu0 %v1446
    %v1538 = vpop.f32.mrb[0].mxu0
    %v1539 = vadd.f32 0.0, %v1538
    %v1540 = vpop.f32.mrb[0].mxu0
    %v1541 = vpop.f32.mrb[0].mxu0
    %v1542 = vadd.f32 0.0, %v1541
    %v1543 = vpop.f32.mrb[0].mxu0
    %1544 = vmatprep.mubr.bf16.mxu0 0
    %1545 = vmatmul.mubr.bf16.gmra.mrb[0].mxu0 %v1447
    %v1546 = vpop.f32.mrb[0].mxu0
    %v1547 = vadd.f32 0.0, %v1546
    %v1548 = vpop.f32.mrb[0].mxu0
    %v1549 = vpop.f32.mrb[0].mxu0
    %v1550 = vadd.f32 0.0, %v1549
    %v1551 = vpop.f32.mrb[0].mxu0
    %1552 = vdwg.mxu0
    %vm1553 = vcmp.gt.f32.partialorder %v1346, 0.0
    %vm1554 = vcmp.gt.f32.partialorder %v1349, 0.0
    %vm1555 = vcmp.gt.f32.partialorder %v1354, 0.0
    %vm1556 = vcmp.gt.f32.partialorder %v1357, 0.0
    %vm1557 = vcmp.gt.f32.partialorder %v1362, 0.0
    %vm1558 = vcmp.gt.f32.partialorder %v1365, 0.0
    %vm1559 = vcmp.gt.f32.partialorder %v1370, 0.0
    %vm1560 = vcmp.gt.f32.partialorder %v1373, 0.0
    %vm1561 = vcmp.gt.f32.partialorder %v1378, 0.0
    %vm1562 = vcmp.gt.f32.partialorder %v1381, 0.0
    %vm1563 = vcmp.gt.f32.partialorder %v1386, 0.0
    %vm1564 = vcmp.gt.f32.partialorder %v1389, 0.0
    %vm1565 = vcmp.gt.f32.partialorder %v1394, 0.0
    %vm1566 = vcmp.gt.f32.partialorder %v1397, 0.0
    %vm1567 = vcmp.gt.f32.partialorder %v1402, 0.0
    %vm1568 = vcmp.gt.f32.partialorder %v1405, 0.0
    %vm1569 = vcmp.gt.f32.partialorder %v1491, 0.0
    %vm1570 = vcmp.gt.f32.partialorder %v1494, 0.0
    %vm1571 = vcmp.gt.f32.partialorder %v1499, 0.0
    %vm1572 = vcmp.gt.f32.partialorder %v1502, 0.0
    %vm1573 = vcmp.gt.f32.partialorder %v1507, 0.0
    %vm1574 = vcmp.gt.f32.partialorder %v1510, 0.0
    %vm1575 = vcmp.gt.f32.partialorder %v1515, 0.0
    %vm1576 = vcmp.gt.f32.partialorder %v1518, 0.0
    %vm1577 = vcmp.gt.f32.partialorder %v1523, 0.0
    %vm1578 = vcmp.gt.f32.partialorder %v1526, 0.0
    %vm1579 = vcmp.gt.f32.partialorder %v1531, 0.0
    %vm1580 = vcmp.gt.f32.partialorder %v1534, 0.0
    %vm1581 = vcmp.gt.f32.partialorder %v1539, 0.0
    %vm1582 = vcmp.gt.f32.partialorder %v1542, 0.0
    %vm1583 = vcmp.gt.f32.partialorder %v1547, 0.0
    %vm1584 = vcmp.gt.f32.partialorder %v1550, 0.0
    %v1585 = vsel %vm1553, %v1346, 1.0
    %v1586 = vsel %vm1554, %v1349, 1.0
    %v1587 = vsel %vm1555, %v1354, 1.0
    %v1588 = vsel %vm1556, %v1357, 1.0
    %v1589 = vsel %vm1557, %v1362, 1.0
    %v1590 = vsel %vm1558, %v1365, 1.0
    %v1591 = vsel %vm1559, %v1370, 1.0
    %v1592 = vsel %vm1560, %v1373, 1.0
    %v1593 = vsel %vm1561, %v1378, 1.0
    %v1594 = vsel %vm1562, %v1381, 1.0
    %v1595 = vsel %vm1563, %v1386, 1.0
    %v1596 = vsel %vm1564, %v1389, 1.0
    %v1597 = vsel %vm1565, %v1394, 1.0
    %v1598 = vsel %vm1566, %v1397, 1.0
    %v1599 = vsel %vm1567, %v1402, 1.0
    %v1600 = vsel %vm1568, %v1405, 1.0
    %v1601 = vsel %vm1569, %v1491, 1.0
    %v1602 = vsel %vm1570, %v1494, 1.0
    %v1603 = vsel %vm1571, %v1499, 1.0
    %v1604 = vsel %vm1572, %v1502, 1.0
    %v1605 = vsel %vm1573, %v1507, 1.0
    %v1606 = vsel %vm1574, %v1510, 1.0
    %v1607 = vsel %vm1575, %v1515, 1.0
    %v1608 = vsel %vm1576, %v1518, 1.0
    %v1609 = vsel %vm1577, %v1523, 1.0
    %v1610 = vsel %vm1578, %v1526, 1.0
    %v1611 = vsel %vm1579, %v1531, 1.0
    %v1612 = vsel %vm1580, %v1534, 1.0
    %v1613 = vsel %vm1581, %v1539, 1.0
    %v1614 = vsel %vm1582, %v1542, 1.0
    %v1615 = vsel %vm1583, %v1547, 1.0
    %v1616 = vsel %vm1584, %v1550, 1.0
    %v1617 = vrcp.pop %v1585
    %v1618 = vrcp.pop %v1586
    %v1619 = vrcp.pop %v1587
    %v1620 = vrcp.pop %v1588
    %v1621 = vrcp.pop %v1589
    %v1622 = vrcp.pop %v1590
    %v1623 = vrcp.pop %v1591
    %v1624 = vrcp.pop %v1592
    %v1625 = vrcp.pop %v1593
    %v1626 = vrcp.pop %v1594
    %v1627 = vrcp.pop %v1595
    %v1628 = vrcp.pop %v1596
    %v1629 = vrcp.pop %v1597
    %v1630 = vrcp.pop %v1598
    %v1631 = vrcp.pop %v1599
    %v1632 = vrcp.pop %v1600
    %v1633 = vrcp.pop %v1601
    %v1634 = vrcp.pop %v1602
    %v1635 = vrcp.pop %v1603
    %v1636 = vrcp.pop %v1604
    %v1637 = vrcp.pop %v1605
    %v1638 = vrcp.pop %v1606
    %v1639 = vrcp.pop %v1607
    %v1640 = vrcp.pop %v1608
    %v1641 = vrcp.pop %v1609
    %v1642 = vrcp.pop %v1610
    %v1643 = vrcp.pop %v1611
    %v1644 = vrcp.pop %v1612
    %v1645 = vrcp.pop %v1613
    %v1646 = vrcp.pop %v1614
    %v1647 = vrcp.pop %v1615
    %v1648 = vrcp.pop %v1616
    %1681 = vrot.lane.b32.xlu0 %v1617, 96
    %v1682 = vpop.permute.xlu0 %1681
    %1683 = vrot.lane.b32.xlu0 %v1618, 96
    %v1684 = vpop.permute.xlu0 %1683
    %1685 = vrot.lane.b32.xlu0 %v1619, 96
    %v1686 = vpop.permute.xlu0 %1685
    %1687 = vrot.lane.b32.xlu0 %v1620, 96
    %v1688 = vpop.permute.xlu0 %1687
    %1689 = vrot.lane.b32.xlu0 %v1621, 96
    %v1690 = vpop.permute.xlu0 %1689
    %1691 = vrot.lane.b32.xlu0 %v1622, 96
    %v1692 = vpop.permute.xlu0 %1691
    %1693 = vrot.lane.b32.xlu0 %v1623, 96
    %v1694 = vpop.permute.xlu0 %1693
    %1695 = vrot.lane.b32.xlu0 %v1624, 96
    %v1696 = vpop.permute.xlu0 %1695
    %1697 = vrot.lane.b32.xlu0 %v1625, 96
    %v1698 = vpop.permute.xlu0 %1697
    %1699 = vrot.lane.b32.xlu0 %v1626, 96
    %v1700 = vpop.permute.xlu0 %1699
    %1701 = vrot.lane.b32.xlu0 %v1627, 96
    %v1702 = vpop.permute.xlu0 %1701
    %1703 = vrot.lane.b32.xlu0 %v1628, 96
    %v1704 = vpop.permute.xlu0 %1703
    %1705 = vrot.lane.b32.xlu0 %v1629, 96
    %v1706 = vpop.permute.xlu0 %1705
    %1707 = vrot.lane.b32.xlu0 %v1630, 96
    %v1708 = vpop.permute.xlu0 %1707
    %1709 = vrot.lane.b32.xlu0 %v1631, 96
    %v1710 = vpop.permute.xlu0 %1709
    %1711 = vrot.lane.b32.xlu0 %v1632, 96
    %v1712 = vpop.permute.xlu0 %1711
    %1713 = vrot.lane.b32.xlu0 %v1633, 96
    %v1714 = vpop.permute.xlu0 %1713
    %1715 = vrot.lane.b32.xlu0 %v1634, 96
    %v1716 = vpop.permute.xlu0 %1715
    %1717 = vrot.lane.b32.xlu0 %v1635, 96
    %v1718 = vpop.permute.xlu0 %1717
    %1719 = vrot.lane.b32.xlu0 %v1636, 96
    %v1720 = vpop.permute.xlu0 %1719
    %1721 = vrot.lane.b32.xlu0 %v1637, 96
    %v1722 = vpop.permute.xlu0 %1721
    %1723 = vrot.lane.b32.xlu0 %v1638, 96
    %v1724 = vpop.permute.xlu0 %1723
    %1725 = vrot.lane.b32.xlu0 %v1639, 96
    %v1726 = vpop.permute.xlu0 %1725
    %1727 = vrot.lane.b32.xlu0 %v1640, 96
    %v1728 = vpop.permute.xlu0 %1727
    %1729 = vrot.lane.b32.xlu0 %v1641, 96
    %v1730 = vpop.permute.xlu0 %1729
    %1731 = vrot.lane.b32.xlu0 %v1642, 96
    %v1732 = vpop.permute.xlu0 %1731
    %1733 = vrot.lane.b32.xlu0 %v1643, 96
    %v1734 = vpop.permute.xlu0 %1733
    %1735 = vrot.lane.b32.xlu0 %v1644, 96
    %v1736 = vpop.permute.xlu0 %1735
    %1737 = vrot.lane.b32.xlu0 %v1645, 96
    %v1738 = vpop.permute.xlu0 %1737
    %1739 = vrot.lane.b32.xlu0 %v1646, 96
    %v1740 = vpop.permute.xlu0 %1739
    %1741 = vrot.lane.b32.xlu0 %v1647, 96
    %v1742 = vpop.permute.xlu0 %1741
    %1743 = vrot.lane.b32.xlu0 %v1648, 96
    %v1744 = vpop.permute.xlu0 %1743
    %v1777 = vmul.f32 %v1346, %v1682
    %v1778 = vmul.f32 %v1349, %v1684
    %v1779 = vmul.f32 %v1354, %v1686
    %v1780 = vmul.f32 %v1357, %v1688
    %v1781 = vmul.f32 %v1362, %v1690
    %v1782 = vmul.f32 %v1365, %v1692
    %v1783 = vmul.f32 %v1370, %v1694
    %v1784 = vmul.f32 %v1373, %v1696
    %v1785 = vmul.f32 %v1378, %v1698
    %v1786 = vmul.f32 %v1381, %v1700
    %v1787 = vmul.f32 %v1386, %v1702
    %v1788 = vmul.f32 %v1389, %v1704
    %v1789 = vmul.f32 %v1394, %v1706
    %v1790 = vmul.f32 %v1397, %v1708
    %v1791 = vmul.f32 %v1402, %v1710
    %v1792 = vmul.f32 %v1405, %v1712
    %v1793 = vmul.f32 %v1491, %v1714
    %v1794 = vmul.f32 %v1494, %v1716
    %v1795 = vmul.f32 %v1499, %v1718
    %v1796 = vmul.f32 %v1502, %v1720
    %v1797 = vmul.f32 %v1507, %v1722
    %v1798 = vmul.f32 %v1510, %v1724
    %v1799 = vmul.f32 %v1515, %v1726
    %v1800 = vmul.f32 %v1518, %v1728
    %v1801 = vmul.f32 %v1523, %v1730
    %v1802 = vmul.f32 %v1526, %v1732
    %v1803 = vmul.f32 %v1531, %v1734
    %v1804 = vmul.f32 %v1534, %v1736
    %v1805 = vmul.f32 %v1539, %v1738
    %v1806 = vmul.f32 %v1542, %v1740
    %v1807 = vmul.f32 %v1547, %v1742
    %v1808 = vmul.f32 %v1550, %v1744
    %1841 = vrot.lane.b32.xlu0 %v343, 96
    %v1842 = vpop.permute.xlu0 %1841
    %1843 = vrot.lane.b32.xlu0 %v348, 96
    %v1844 = vpop.permute.xlu0 %1843
    %1845 = vrot.lane.b32.xlu0 %v353, 96
    %v1846 = vpop.permute.xlu0 %1845
    %1847 = vrot.lane.b32.xlu0 %v358, 96
    %v1848 = vpop.permute.xlu0 %1847
    %1849 = vrot.lane.b32.xlu0 %v363, 96
    %v1850 = vpop.permute.xlu0 %1849
    %1851 = vrot.lane.b32.xlu0 %v368, 96
    %v1852 = vpop.permute.xlu0 %1851
    %1853 = vrot.lane.b32.xlu0 %v373, 96
    %v1854 = vpop.permute.xlu0 %1853
    %1855 = vrot.lane.b32.xlu0 %v378, 96
    %v1856 = vpop.permute.xlu0 %1855
    %1857 = vrot.lane.b32.xlu0 %v383, 96
    %v1858 = vpop.permute.xlu0 %1857
    %1859 = vrot.lane.b32.xlu0 %v388, 96
    %v1860 = vpop.permute.xlu0 %1859
    %1861 = vrot.lane.b32.xlu0 %v393, 96
    %v1862 = vpop.permute.xlu0 %1861
    %1863 = vrot.lane.b32.xlu0 %v398, 96
    %v1864 = vpop.permute.xlu0 %1863
    %1865 = vrot.lane.b32.xlu0 %v403, 96
    %v1866 = vpop.permute.xlu0 %1865
    %1867 = vrot.lane.b32.xlu0 %v408, 96
    %v1868 = vpop.permute.xlu0 %1867
    %1869 = vrot.lane.b32.xlu0 %v413, 96
    %v1870 = vpop.permute.xlu0 %1869
    %1871 = vrot.lane.b32.xlu0 %v418, 96
    %v1872 = vpop.permute.xlu0 %1871
    %1873 = vrot.lane.b32.xlu0 %v423, 96
    %v1874 = vpop.permute.xlu0 %1873
    %1875 = vrot.lane.b32.xlu0 %v428, 96
    %v1876 = vpop.permute.xlu0 %1875
    %1877 = vrot.lane.b32.xlu0 %v433, 96
    %v1878 = vpop.permute.xlu0 %1877
    %1879 = vrot.lane.b32.xlu0 %v438, 96
    %v1880 = vpop.permute.xlu0 %1879
    %1881 = vrot.lane.b32.xlu0 %v443, 96
    %v1882 = vpop.permute.xlu0 %1881
    %1883 = vrot.lane.b32.xlu0 %v448, 96
    %v1884 = vpop.permute.xlu0 %1883
    %1885 = vrot.lane.b32.xlu0 %v453, 96
    %v1886 = vpop.permute.xlu0 %1885
    %1887 = vrot.lane.b32.xlu0 %v458, 96
    %v1888 = vpop.permute.xlu0 %1887
    %1889 = vrot.lane.b32.xlu0 %v463, 96
    %v1890 = vpop.permute.xlu0 %1889
    %1891 = vrot.lane.b32.xlu0 %v468, 96
    %v1892 = vpop.permute.xlu0 %1891
    %1893 = vrot.lane.b32.xlu0 %v473, 96
    %v1894 = vpop.permute.xlu0 %1893
    %1895 = vrot.lane.b32.xlu0 %v478, 96
    %v1896 = vpop.permute.xlu0 %1895
    %1897 = vrot.lane.b32.xlu0 %v483, 96
    %v1898 = vpop.permute.xlu0 %1897
    %1899 = vrot.lane.b32.xlu0 %v488, 96
    %v1900 = vpop.permute.xlu0 %1899
    %1901 = vrot.lane.b32.xlu0 %v493, 96
    %v1902 = vpop.permute.xlu0 %1901
    %1903 = vrot.lane.b32.xlu0 %v498, 96
    %v1904 = vpop.permute.xlu0 %1903
    %v1937 = vadd.f32 %v1777, %v1842
    %v1938 = vadd.f32 %v1778, %v1844
    %v1939 = vadd.f32 %v1779, %v1846
    %v1940 = vadd.f32 %v1780, %v1848
    %v1941 = vadd.f32 %v1781, %v1850
    %v1942 = vadd.f32 %v1782, %v1852
    %v1943 = vadd.f32 %v1783, %v1854
    %v1944 = vadd.f32 %v1784, %v1856
    %v1945 = vadd.f32 %v1785, %v1858
    %v1946 = vadd.f32 %v1786, %v1860
    %v1947 = vadd.f32 %v1787, %v1862
    %v1948 = vadd.f32 %v1788, %v1864
    %v1949 = vadd.f32 %v1789, %v1866
    %v1950 = vadd.f32 %v1790, %v1868
    %v1951 = vadd.f32 %v1791, %v1870
    %v1952 = vadd.f32 %v1792, %v1872
    %v1953 = vadd.f32 %v1793, %v1874
    %v1954 = vadd.f32 %v1794, %v1876
    %v1955 = vadd.f32 %v1795, %v1878
    %v1956 = vadd.f32 %v1796, %v1880
    %v1957 = vadd.f32 %v1797, %v1882
    %v1958 = vadd.f32 %v1798, %v1884
    %v1959 = vadd.f32 %v1799, %v1886
    %v1960 = vadd.f32 %v1800, %v1888
    %v1961 = vadd.f32 %v1801, %v1890
    %v1962 = vadd.f32 %v1802, %v1892
    %v1963 = vadd.f32 %v1803, %v1894
    %v1964 = vadd.f32 %v1804, %v1896
    %v1965 = vadd.f32 %v1805, %v1898
    %v1966 = vadd.f32 %v1806, %v1900
    %v1967 = vadd.f32 %v1807, %v1902
    %v1968 = vadd.f32 %v1808, %v1904
    %v1970 = vlaneseq
    %v1971 = vshrl.u32 %v1970, 7
    %v1972 = vsub.s32 0, %v1971
    %v1973 = vrot.slane %v505, %v1972
    %v1976 = vsel %vm884, %v1937, 0
    %v1979 = vsel %vm884, %v1938, 0
    %v1982 = vsel %vm884, %v1939, 0
    %v1985 = vsel %vm884, %v1940, 0
    %v1988 = vsel %vm884, %v1941, 0
    %v1991 = vsel %vm884, %v1942, 0
    %v1994 = vsel %vm884, %v1943, 0
    %v1997 = vsel %vm884, %v1944, 0
    %v2000 = vsel %vm884, %v1945, 0
    %v2003 = vsel %vm884, %v1946, 0
    %v2006 = vsel %vm884, %v1947, 0
    %v2009 = vsel %vm884, %v1948, 0
    %v2012 = vsel %vm884, %v1949, 0
    %v2015 = vsel %vm884, %v1950, 0
    %v2018 = vsel %vm884, %v1951, 0
    %v2021 = vsel %vm884, %v1952, 0
    %v2024 = vsel %vm884, %v1953, 0
    %v2027 = vsel %vm884, %v1954, 0
    %v2030 = vsel %vm884, %v1955, 0
    %v2033 = vsel %vm884, %v1956, 0
    %v2036 = vsel %vm884, %v1957, 0
    %v2039 = vsel %vm884, %v1958, 0
    %v2042 = vsel %vm884, %v1959, 0
    %v2045 = vsel %vm884, %v1960, 0
    %v2048 = vsel %vm884, %v1961, 0
    %v2051 = vsel %vm884, %v1962, 0
    %v2054 = vsel %vm884, %v1963, 0
    %v2057 = vsel %vm884, %v1964, 0
    %v2060 = vsel %vm884, %v1965, 0
    %v2063 = vsel %vm884, %v1966, 0
    %v2066 = vsel %vm884, %v1967, 0
    %v2069 = vsel %vm884, %v1968, 0
    %2071 = vmatprep.subr.mxu0 0.0
    %2072 = vmatpush1.msra.mxu0 %v501
    %2073 = vmatprep.subr.mxu0 0.0
    %2074 = vmatpush1.msra.mxu0 %v502
    %2075 = vmatprep.subr.mxu0 0.0
    %2076 = vmatpush1.msra.mxu0 %v503
    %2077 = vmatprep.subr.mxu0 0.0
    %2078 = vmatpush1.msra.mxu0 %v504
    %2079 = vmatprep.subr.mxu0 0.0
    %2080 = vmatpush1.msra.mxu0 0.0
    %2081 = vmatprep.subr.mxu0 0.0
    %2082 = vmatpush1.msra.mxu0 0.0
    %2083 = vmatprep.subr.mxu0 0.0
    %2084 = vmatpush1.msra.mxu0 0.0
    %2085 = vmatprep.subr.mxu0 0.0
    %2086 = vmatpush1.msra.mxu0 0.0
    %2087 = vmatprep.subr.mxu0 0.0
    %2088 = vmatpush1.msra.mxu0 0.0
    %2089 = vmatprep.subr.mxu0 0.0
    %2090 = vmatpush1.msra.mxu0 0.0
    %2091 = vmatprep.subr.mxu0 0.0
    %2092 = vmatpush1.msra.mxu0 0.0
    %2093 = vmatprep.subr.mxu0 0.0
    %2094 = vmatpush1.msra.mxu0 0.0
    %2095 = vmatprep.subr.mxu0 0.0
    %2096 = vmatpush1.msra.mxu0 0.0
    %2097 = vmatprep.subr.mxu0 0.0
    %2098 = vmatpush1.msra.mxu0 0.0
    %2099 = vmatprep.subr.mxu0 0.0
    %2100 = vmatpush1.msra.mxu0 0.0
    %2101 = vmatprep.subr.mxu0 0.0
    %2102 = vmatpush1.msra.mxu0 0.0
    %2103 = vmatprep.subr.mxu0 0.0
    %2104 = vmatpush1.msra.mxu0 0.0
    %2105 = vmatprep.subr.mxu0 0.0
    %2106 = vmatpush1.msra.mxu0 0.0
    %2107 = vmatprep.subr.mxu0 0.0
    %2108 = vmatpush1.msra.mxu0 0.0
    %2109 = vmatprep.subr.mxu0 0.0
    %2110 = vmatpush1.msra.mxu0 0.0
    %2111 = vmatprep.subr.mxu0 0.0
    %2112 = vmatpush1.msra.mxu0 0.0
    %2113 = vmatprep.subr.mxu0 0.0
    %2114 = vmatpush1.msra.mxu0 0.0
    %2115 = vmatprep.subr.mxu0 0.0
    %2116 = vmatpush1.msra.mxu0 0.0
    %2117 = vmatprep.subr.mxu0 0.0
    %2118 = vmatpush1.msra.mxu0 0.0
    %2119 = vmatprep.subr.mxu0 0.0
    %2120 = vmatpush1.msra.mxu0 0.0
    %2121 = vmatprep.subr.mxu0 0.0
    %2122 = vmatpush1.msra.mxu0 0.0
    %2123 = vmatprep.subr.mxu0 0.0
    %2124 = vmatpush1.msra.mxu0 0.0
    %2125 = vmatprep.subr.mxu0 0.0
    %2126 = vmatpush1.msra.mxu0 0.0
    %2127 = vmatprep.subr.mxu0 0.0
    %2128 = vmatpush1.msra.mxu0 0.0
    %2129 = vmatprep.subr.mxu0 0.0
    %2130 = vmatpush1.msra.mxu0 0.0
    %2131 = vmatprep.subr.mxu0 0.0
    %2132 = vmatpush1.msra.mxu0 0.0
    %2133 = vmatprep.subr.mxu0 0.0
    %2134 = vmatpush1.msra.mxu0 0.0
    %2135 = vmatprep.mubr.f32.mxu0 0.0
    %2136 = vmatmul.mubr.f32.gmra.mrb[0].mxu0 %v1976
    %v2137 = vpop.f32.mrb[0].mxu0
    %v2138 = vadd.f32 %v1973, %v2137
    %v2139 = vpop.f32.mrb[0].mxu0
    %2140 = vmatprep.mubr.f32.mxu0 0.0
    %2141 = vmatmul.mubr.f32.gmra.mrb[0].mxu0 %v1979
    %v2142 = vpop.f32.mrb[0].mxu0
    %v2143 = vadd.f32 %v1973, %v2142
    %v2144 = vpop.f32.mrb[0].mxu0
    %2145 = vmatprep.mubr.f32.mxu0 0.0
    %2146 = vmatmul.mubr.f32.gmra.mrb[0].mxu0 %v1982
    %v2147 = vpop.f32.mrb[0].mxu0
    %v2148 = vadd.f32 %v1973, %v2147
    %v2149 = vpop.f32.mrb[0].mxu0
    %2150 = vmatprep.mubr.f32.mxu0 0.0
    %2151 = vmatmul.mubr.f32.gmra.mrb[0].mxu0 %v1985
    %v2152 = vpop.f32.mrb[0].mxu0
    %v2153 = vadd.f32 %v1973, %v2152
    %v2154 = vpop.f32.mrb[0].mxu0
    %2155 = vmatprep.mubr.f32.mxu0 0.0
    %2156 = vmatmul.mubr.f32.gmra.mrb[0].mxu0 %v1988
    %v2157 = vpop.f32.mrb[0].mxu0
    %v2158 = vadd.f32 %v1973, %v2157
    %v2159 = vpop.f32.mrb[0].mxu0
    %2160 = vmatprep.mubr.f32.mxu0 0.0
    %2161 = vmatmul.mubr.f32.gmra.mrb[0].mxu0 %v1991
    %v2162 = vpop.f32.mrb[0].mxu0
    %v2163 = vadd.f32 %v1973, %v2162
    %v2164 = vpop.f32.mrb[0].mxu0
    %2165 = vmatprep.mubr.f32.mxu0 0.0
    %2166 = vmatmul.mubr.f32.gmra.mrb[0].mxu0 %v1994
    %v2167 = vpop.f32.mrb[0].mxu0
    %v2168 = vadd.f32 %v1973, %v2167
    %v2169 = vpop.f32.mrb[0].mxu0
    %2170 = vmatprep.mubr.f32.mxu0 0.0
    %2171 = vmatmul.mubr.f32.gmra.mrb[0].mxu0 %v1997
    %v2172 = vpop.f32.mrb[0].mxu0
    %v2173 = vadd.f32 %v1973, %v2172
    %v2174 = vpop.f32.mrb[0].mxu0
    %2175 = vmatprep.mubr.f32.mxu0 0.0
    %2176 = vmatmul.mubr.f32.gmra.mrb[0].mxu0 %v2000
    %v2177 = vpop.f32.mrb[0].mxu0
    %v2178 = vadd.f32 %v1973, %v2177
    %v2179 = vpop.f32.mrb[0].mxu0
    %2180 = vmatprep.mubr.f32.mxu0 0.0
    %2181 = vmatmul.mubr.f32.gmra.mrb[0].mxu0 %v2003
    %v2182 = vpop.f32.mrb[0].mxu0
    %v2183 = vadd.f32 %v1973, %v2182
    %v2184 = vpop.f32.mrb[0].mxu0
    %2185 = vmatprep.mubr.f32.mxu0 0.0
    %2186 = vmatmul.mubr.f32.gmra.mrb[0].mxu0 %v2006
    %v2187 = vpop.f32.mrb[0].mxu0
    %v2188 = vadd.f32 %v1973, %v2187
    %v2189 = vpop.f32.mrb[0].mxu0
    %2190 = vmatprep.mubr.f32.mxu0 0.0
    %2191 = vmatmul.mubr.f32.gmra.mrb[0].mxu0 %v2009
    %v2192 = vpop.f32.mrb[0].mxu0
    %v2193 = vadd.f32 %v1973, %v2192
    %v2194 = vpop.f32.mrb[0].mxu0
    %2195 = vmatprep.mubr.f32.mxu0 0.0
    %2196 = vmatmul.mubr.f32.gmra.mrb[0].mxu0 %v2012
    %v2197 = vpop.f32.mrb[0].mxu0
    %v2198 = vadd.f32 %v1973, %v2197
    %v2199 = vpop.f32.mrb[0].mxu0
    %2200 = vmatprep.mubr.f32.mxu0 0.0
    %2201 = vmatmul.mubr.f32.gmra.mrb[0].mxu0 %v2015
    %v2202 = vpop.f32.mrb[0].mxu0
    %v2203 = vadd.f32 %v1973, %v2202
    %v2204 = vpop.f32.mrb[0].mxu0
    %2205 = vmatprep.mubr.f32.mxu0 0.0
    %2206 = vmatmul.mubr.f32.gmra.mrb[0].mxu0 %v2018
    %v2207 = vpop.f32.mrb[0].mxu0
    %v2208 = vadd.f32 %v1973, %v2207
    %v2209 = vpop.f32.mrb[0].mxu0
    %2210 = vmatprep.mubr.f32.mxu0 0.0
    %2211 = vmatmul.mubr.f32.gmra.mrb[0].mxu0 %v2021
    %v2212 = vpop.f32.mrb[0].mxu0
    %v2213 = vadd.f32 %v1973, %v2212
    %v2214 = vpop.f32.mrb[0].mxu0
    %2215 = vmatprep.mubr.f32.mxu0 0.0
    %2216 = vmatmul.mubr.f32.gmra.mrb[0].mxu0 %v2024
    %v2217 = vpop.f32.mrb[0].mxu0
    %v2218 = vadd.f32 %v1973, %v2217
    %v2219 = vpop.f32.mrb[0].mxu0
    %2220 = vmatprep.mubr.f32.mxu0 0.0
    %2221 = vmatmul.mubr.f32.gmra.mrb[0].mxu0 %v2027
    %v2222 = vpop.f32.mrb[0].mxu0
    %v2223 = vadd.f32 %v1973, %v2222
    %v2224 = vpop.f32.mrb[0].mxu0
    %2225 = vmatprep.mubr.f32.mxu0 0.0
    %2226 = vmatmul.mubr.f32.gmra.mrb[0].mxu0 %v2030
    %v2227 = vpop.f32.mrb[0].mxu0
    %v2228 = vadd.f32 %v1973, %v2227
    %v2229 = vpop.f32.mrb[0].mxu0
    %2230 = vmatprep.mubr.f32.mxu0 0.0
    %2231 = vmatmul.mubr.f32.gmra.mrb[0].mxu0 %v2033
    %v2232 = vpop.f32.mrb[0].mxu0
    %v2233 = vadd.f32 %v1973, %v2232
    %v2234 = vpop.f32.mrb[0].mxu0
    %2235 = vmatprep.mubr.f32.mxu0 0.0
    %2236 = vmatmul.mubr.f32.gmra.mrb[0].mxu0 %v2036
    %v2237 = vpop.f32.mrb[0].mxu0
    %v2238 = vadd.f32 %v1973, %v2237
    %v2239 = vpop.f32.mrb[0].mxu0
    %2240 = vmatprep.mubr.f32.mxu0 0.0
    %2241 = vmatmul.mubr.f32.gmra.mrb[0].mxu0 %v2039
    %v2242 = vpop.f32.mrb[0].mxu0
    %v2243 = vadd.f32 %v1973, %v2242
    %v2244 = vpop.f32.mrb[0].mxu0
    %2245 = vmatprep.mubr.f32.mxu0 0.0
    %2246 = vmatmul.mubr.f32.gmra.mrb[0].mxu0 %v2042
    %v2247 = vpop.f32.mrb[0].mxu0
    %v2248 = vadd.f32 %v1973, %v2247
    %v2249 = vpop.f32.mrb[0].mxu0
    %2250 = vmatprep.mubr.f32.mxu0 0.0
    %2251 = vmatmul.mubr.f32.gmra.mrb[0].mxu0 %v2045
    %v2252 = vpop.f32.mrb[0].mxu0
    %v2253 = vadd.f32 %v1973, %v2252
    %v2254 = vpop.f32.mrb[0].mxu0
    %2255 = vmatprep.mubr.f32.mxu0 0.0
    %2256 = vmatmul.mubr.f32.gmra.mrb[0].mxu0 %v2048
    %v2257 = vpop.f32.mrb[0].mxu0
    %v2258 = vadd.f32 %v1973, %v2257
    %v2259 = vpop.f32.mrb[0].mxu0
    %2260 = vmatprep.mubr.f32.mxu0 0.0
    %2261 = vmatmul.mubr.f32.gmra.mrb[0].mxu0 %v2051
    %v2262 = vpop.f32.mrb[0].mxu0
    %v2263 = vadd.f32 %v1973, %v2262
    %v2264 = vpop.f32.mrb[0].mxu0
    %2265 = vmatprep.mubr.f32.mxu0 0.0
    %2266 = vmatmul.mubr.f32.gmra.mrb[0].mxu0 %v2054
    %v2267 = vpop.f32.mrb[0].mxu0
    %v2268 = vadd.f32 %v1973, %v2267
    %v2269 = vpop.f32.mrb[0].mxu0
    %2270 = vmatprep.mubr.f32.mxu0 0.0
    %2271 = vmatmul.mubr.f32.gmra.mrb[0].mxu0 %v2057
    %v2272 = vpop.f32.mrb[0].mxu0
    %v2273 = vadd.f32 %v1973, %v2272
    %v2274 = vpop.f32.mrb[0].mxu0
    %2275 = vmatprep.mubr.f32.mxu0 0.0
    %2276 = vmatmul.mubr.f32.gmra.mrb[0].mxu0 %v2060
    %v2277 = vpop.f32.mrb[0].mxu0
    %v2278 = vadd.f32 %v1973, %v2277
    %v2279 = vpop.f32.mrb[0].mxu0
    %2280 = vmatprep.mubr.f32.mxu0 0.0
    %2281 = vmatmul.mubr.f32.gmra.mrb[0].mxu0 %v2063
    %v2282 = vpop.f32.mrb[0].mxu0
    %v2283 = vadd.f32 %v1973, %v2282
    %v2284 = vpop.f32.mrb[0].mxu0
    %2285 = vmatprep.mubr.f32.mxu0 0.0
    %2286 = vmatmul.mubr.f32.gmra.mrb[0].mxu0 %v2066
    %v2287 = vpop.f32.mrb[0].mxu0
    %v2288 = vadd.f32 %v1973, %v2287
    %v2289 = vpop.f32.mrb[0].mxu0
    %2290 = vmatprep.mubr.f32.mxu0 0.0
    %2291 = vmatmul.mubr.f32.gmra.mrb[0].mxu0 %v2069
    %v2292 = vpop.f32.mrb[0].mxu0
    %v2293 = vadd.f32 %v1973, %v2292
    %v2294 = vpop.f32.mrb[0].mxu0
    %2295 = vdwg.mxu0
    %v2296 = vmax.f32 %v2138, 0.0
    %v2297 = vmax.f32 %v2143, 0.0
    %v2298 = vmax.f32 %v2148, 0.0
    %v2299 = vmax.f32 %v2153, 0.0
    %v2300 = vmax.f32 %v2158, 0.0
    %v2301 = vmax.f32 %v2163, 0.0
    %v2302 = vmax.f32 %v2168, 0.0
    %v2303 = vmax.f32 %v2173, 0.0
    %v2304 = vmax.f32 %v2178, 0.0
    %v2305 = vmax.f32 %v2183, 0.0
    %v2306 = vmax.f32 %v2188, 0.0
    %v2307 = vmax.f32 %v2193, 0.0
    %v2308 = vmax.f32 %v2198, 0.0
    %v2309 = vmax.f32 %v2203, 0.0
    %v2310 = vmax.f32 %v2208, 0.0
    %v2311 = vmax.f32 %v2213, 0.0
    %v2312 = vmax.f32 %v2218, 0.0
    %v2313 = vmax.f32 %v2223, 0.0
    %v2314 = vmax.f32 %v2228, 0.0
    %v2315 = vmax.f32 %v2233, 0.0
    %v2316 = vmax.f32 %v2238, 0.0
    %v2317 = vmax.f32 %v2243, 0.0
    %v2318 = vmax.f32 %v2248, 0.0
    %v2319 = vmax.f32 %v2253, 0.0
    %v2320 = vmax.f32 %v2258, 0.0
    %v2321 = vmax.f32 %v2263, 0.0
    %v2322 = vmax.f32 %v2268, 0.0
    %v2323 = vmax.f32 %v2273, 0.0
    %v2324 = vmax.f32 %v2278, 0.0
    %v2325 = vmax.f32 %v2283, 0.0
    %v2326 = vmax.f32 %v2288, 0.0
    %v2327 = vmax.f32 %v2293, 0.0
    %vm2328 = vcmask 523264
    %v2330 = vsel %vm2328, %v2296, 0
    %v2333 = vsel %vm2328, %v2297, 0
    %v2336 = vsel %vm2328, %v2298, 0
    %v2339 = vsel %vm2328, %v2299, 0
    %v2342 = vsel %vm2328, %v2300, 0
    %v2345 = vsel %vm2328, %v2301, 0
    %v2348 = vsel %vm2328, %v2302, 0
    %v2351 = vsel %vm2328, %v2303, 0
    %v2354 = vsel %vm2328, %v2304, 0
    %v2357 = vsel %vm2328, %v2305, 0
    %v2360 = vsel %vm2328, %v2306, 0
    %v2363 = vsel %vm2328, %v2307, 0
    %v2366 = vsel %vm2328, %v2308, 0
    %v2369 = vsel %vm2328, %v2309, 0
    %v2372 = vsel %vm2328, %v2310, 0
    %v2375 = vsel %vm2328, %v2311, 0
    %v2378 = vsel %vm2328, %v2312, 0
    %v2381 = vsel %vm2328, %v2313, 0
    %v2384 = vsel %vm2328, %v2314, 0
    %v2387 = vsel %vm2328, %v2315, 0
    %v2390 = vsel %vm2328, %v2316, 0
    %v2393 = vsel %vm2328, %v2317, 0
    %v2396 = vsel %vm2328, %v2318, 0
    %v2399 = vsel %vm2328, %v2319, 0
    %v2402 = vsel %vm2328, %v2320, 0
    %v2405 = vsel %vm2328, %v2321, 0
    %v2408 = vsel %vm2328, %v2322, 0
    %v2411 = vsel %vm2328, %v2323, 0
    %v2414 = vsel %vm2328, %v2324, 0
    %v2417 = vsel %vm2328, %v2325, 0
    %v2420 = vsel %vm2328, %v2326, 0
    %v2423 = vsel %vm2328, %v2327, 0
    %2425 = vmatprep.subr.mxu0 0.0
    %2426 = vmatpush1.msra.mxu0 %v506
    %2427 = vmatprep.subr.mxu0 0.0
    %2428 = vmatpush1.msra.mxu0 %v507
    %2429 = vmatprep.subr.mxu0 0.0
    %2430 = vmatpush1.msra.mxu0 %v508
    %2431 = vmatprep.subr.mxu0 0.0
    %2432 = vmatpush1.msra.mxu0 %v509
    %2433 = vmatprep.subr.mxu0 0.0
    %2434 = vmatpush1.msra.mxu0 %v510
    %2435 = vmatprep.subr.mxu0 0.0
    %2436 = vmatpush1.msra.mxu0 %v511
    %2437 = vmatprep.subr.mxu0 0.0
    %2438 = vmatpush1.msra.mxu0 %v512
    %2439 = vmatprep.subr.mxu0 0.0
    %2440 = vmatpush1.msra.mxu0 %v513
    %2441 = vmatprep.subr.mxu0 0.0
    %2442 = vmatpush1.msra.mxu0 0.0
    %2443 = vmatprep.subr.mxu0 0.0
    %2444 = vmatpush1.msra.mxu0 0.0
    %2445 = vmatprep.subr.mxu0 0.0
    %2446 = vmatpush1.msra.mxu0 0.0
    %2447 = vmatprep.subr.mxu0 0.0
    %2448 = vmatpush1.msra.mxu0 0.0
    %2449 = vmatprep.subr.mxu0 0.0
    %2450 = vmatpush1.msra.mxu0 0.0
    %2451 = vmatprep.subr.mxu0 0.0
    %2452 = vmatpush1.msra.mxu0 0.0
    %2453 = vmatprep.subr.mxu0 0.0
    %2454 = vmatpush1.msra.mxu0 0.0
    %2455 = vmatprep.subr.mxu0 0.0
    %2456 = vmatpush1.msra.mxu0 0.0
    %2457 = vmatprep.subr.mxu0 0.0
    %2458 = vmatpush1.msra.mxu0 0.0
    %2459 = vmatprep.subr.mxu0 0.0
    %2460 = vmatpush1.msra.mxu0 0.0
    %2461 = vmatprep.subr.mxu0 0.0
    %2462 = vmatpush1.msra.mxu0 0.0
    %2463 = vmatprep.subr.mxu0 0.0
    %2464 = vmatpush1.msra.mxu0 0.0
    %2465 = vmatprep.subr.mxu0 0.0
    %2466 = vmatpush1.msra.mxu0 0.0
    %2467 = vmatprep.subr.mxu0 0.0
    %2468 = vmatpush1.msra.mxu0 0.0
    %2469 = vmatprep.subr.mxu0 0.0
    %2470 = vmatpush1.msra.mxu0 0.0
    %2471 = vmatprep.subr.mxu0 0.0
    %2472 = vmatpush1.msra.mxu0 0.0
    %2473 = vmatprep.subr.mxu0 0.0
    %2474 = vmatpush1.msra.mxu0 0.0
    %2475 = vmatprep.subr.mxu0 0.0
    %2476 = vmatpush1.msra.mxu0 0.0
    %2477 = vmatprep.subr.mxu0 0.0
    %2478 = vmatpush1.msra.mxu0 0.0
    %2479 = vmatprep.subr.mxu0 0.0
    %2480 = vmatpush1.msra.mxu0 0.0
    %2481 = vmatprep.subr.mxu0 0.0
    %2482 = vmatpush1.msra.mxu0 0.0
    %2483 = vmatprep.subr.mxu0 0.0
    %2484 = vmatpush1.msra.mxu0 0.0
    %2485 = vmatprep.subr.mxu0 0.0
    %2486 = vmatpush1.msra.mxu0 0.0
    %2487 = vmatprep.subr.mxu0 0.0
    %2488 = vmatpush1.msra.mxu0 0.0
    %2489 = vmatprep.mubr.f32.mxu0 0.0
    %2490 = vmatmul.mubr.f32.gmra.mrb[0].mxu0 %v2330
    %v2491 = vpop.f32.mrb[0].mxu0
    %v2492 = vadd.f32 0.0, %v2491
    %v2493 = vpop.f32.mrb[0].mxu0
    %2494 = vmatprep.mubr.f32.mxu0 0.0
    %2495 = vmatmul.mubr.f32.gmra.mrb[0].mxu0 %v2333
    %v2496 = vpop.f32.mrb[0].mxu0
    %v2497 = vadd.f32 0.0, %v2496
    %v2498 = vpop.f32.mrb[0].mxu0
    %2499 = vmatprep.mubr.f32.mxu0 0.0
    %2500 = vmatmul.mubr.f32.gmra.mrb[0].mxu0 %v2336
    %v2501 = vpop.f32.mrb[0].mxu0
    %v2502 = vadd.f32 0.0, %v2501
    %v2503 = vpop.f32.mrb[0].mxu0
    %2504 = vmatprep.mubr.f32.mxu0 0.0
    %2505 = vmatmul.mubr.f32.gmra.mrb[0].mxu0 %v2339
    %v2506 = vpop.f32.mrb[0].mxu0
    %v2507 = vadd.f32 0.0, %v2506
    %v2508 = vpop.f32.mrb[0].mxu0
    %2509 = vmatprep.mubr.f32.mxu0 0.0
    %2510 = vmatmul.mubr.f32.gmra.mrb[0].mxu0 %v2342
    %v2511 = vpop.f32.mrb[0].mxu0
    %v2512 = vadd.f32 0.0, %v2511
    %v2513 = vpop.f32.mrb[0].mxu0
    %2514 = vmatprep.mubr.f32.mxu0 0.0
    %2515 = vmatmul.mubr.f32.gmra.mrb[0].mxu0 %v2345
    %v2516 = vpop.f32.mrb[0].mxu0
    %v2517 = vadd.f32 0.0, %v2516
    %v2518 = vpop.f32.mrb[0].mxu0
    %2519 = vmatprep.mubr.f32.mxu0 0.0
    %2520 = vmatmul.mubr.f32.gmra.mrb[0].mxu0 %v2348
    %v2521 = vpop.f32.mrb[0].mxu0
    %v2522 = vadd.f32 0.0, %v2521
    %v2523 = vpop.f32.mrb[0].mxu0
    %2524 = vmatprep.mubr.f32.mxu0 0.0
    %2525 = vmatmul.mubr.f32.gmra.mrb[0].mxu0 %v2351
    %v2526 = vpop.f32.mrb[0].mxu0
    %v2527 = vadd.f32 0.0, %v2526
    %v2528 = vpop.f32.mrb[0].mxu0
    %2529 = vmatprep.mubr.f32.mxu0 0.0
    %2530 = vmatmul.mubr.f32.gmra.mrb[0].mxu0 %v2354
    %v2531 = vpop.f32.mrb[0].mxu0
    %v2532 = vadd.f32 0.0, %v2531
    %v2533 = vpop.f32.mrb[0].mxu0
    %2534 = vmatprep.mubr.f32.mxu0 0.0
    %2535 = vmatmul.mubr.f32.gmra.mrb[0].mxu0 %v2357
    %v2536 = vpop.f32.mrb[0].mxu0
    %v2537 = vadd.f32 0.0, %v2536
    %v2538 = vpop.f32.mrb[0].mxu0
    %2539 = vmatprep.mubr.f32.mxu0 0.0
    %2540 = vmatmul.mubr.f32.gmra.mrb[0].mxu0 %v2360
    %v2541 = vpop.f32.mrb[0].mxu0
    %v2542 = vadd.f32 0.0, %v2541
    %v2543 = vpop.f32.mrb[0].mxu0
    %2544 = vmatprep.mubr.f32.mxu0 0.0
    %2545 = vmatmul.mubr.f32.gmra.mrb[0].mxu0 %v2363
    %v2546 = vpop.f32.mrb[0].mxu0
    %v2547 = vadd.f32 0.0, %v2546
    %v2548 = vpop.f32.mrb[0].mxu0
    %2549 = vmatprep.mubr.f32.mxu0 0.0
    %2550 = vmatmul.mubr.f32.gmra.mrb[0].mxu0 %v2366
    %v2551 = vpop.f32.mrb[0].mxu0
    %v2552 = vadd.f32 0.0, %v2551
    %v2553 = vpop.f32.mrb[0].mxu0
    %2554 = vmatprep.mubr.f32.mxu0 0.0
    %2555 = vmatmul.mubr.f32.gmra.mrb[0].mxu0 %v2369
    %v2556 = vpop.f32.mrb[0].mxu0
    %v2557 = vadd.f32 0.0, %v2556
    %v2558 = vpop.f32.mrb[0].mxu0
    %2559 = vmatprep.mubr.f32.mxu0 0.0
    %2560 = vmatmul.mubr.f32.gmra.mrb[0].mxu0 %v2372
    %v2561 = vpop.f32.mrb[0].mxu0
    %v2562 = vadd.f32 0.0, %v2561
    %v2563 = vpop.f32.mrb[0].mxu0
    %2564 = vmatprep.mubr.f32.mxu0 0.0
    %2565 = vmatmul.mubr.f32.gmra.mrb[0].mxu0 %v2375
    %v2566 = vpop.f32.mrb[0].mxu0
    %v2567 = vadd.f32 0.0, %v2566
    %v2568 = vpop.f32.mrb[0].mxu0
    %2569 = vmatprep.mubr.f32.mxu0 0.0
    %2570 = vmatmul.mubr.f32.gmra.mrb[0].mxu0 %v2378
    %v2571 = vpop.f32.mrb[0].mxu0
    %v2572 = vadd.f32 0.0, %v2571
    %v2573 = vpop.f32.mrb[0].mxu0
    %2574 = vmatprep.mubr.f32.mxu0 0.0
    %2575 = vmatmul.mubr.f32.gmra.mrb[0].mxu0 %v2381
    %v2576 = vpop.f32.mrb[0].mxu0
    %v2577 = vadd.f32 0.0, %v2576
    %v2578 = vpop.f32.mrb[0].mxu0
    %2579 = vmatprep.mubr.f32.mxu0 0.0
    %2580 = vmatmul.mubr.f32.gmra.mrb[0].mxu0 %v2384
    %v2581 = vpop.f32.mrb[0].mxu0
    %v2582 = vadd.f32 0.0, %v2581
    %v2583 = vpop.f32.mrb[0].mxu0
    %2584 = vmatprep.mubr.f32.mxu0 0.0
    %2585 = vmatmul.mubr.f32.gmra.mrb[0].mxu0 %v2387
    %v2586 = vpop.f32.mrb[0].mxu0
    %v2587 = vadd.f32 0.0, %v2586
    %v2588 = vpop.f32.mrb[0].mxu0
    %2589 = vmatprep.mubr.f32.mxu0 0.0
    %2590 = vmatmul.mubr.f32.gmra.mrb[0].mxu0 %v2390
    %v2591 = vpop.f32.mrb[0].mxu0
    %v2592 = vadd.f32 0.0, %v2591
    %v2593 = vpop.f32.mrb[0].mxu0
    %2594 = vmatprep.mubr.f32.mxu0 0.0
    %2595 = vmatmul.mubr.f32.gmra.mrb[0].mxu0 %v2393
    %v2596 = vpop.f32.mrb[0].mxu0
    %v2597 = vadd.f32 0.0, %v2596
    %v2598 = vpop.f32.mrb[0].mxu0
    %2599 = vmatprep.mubr.f32.mxu0 0.0
    %2600 = vmatmul.mubr.f32.gmra.mrb[0].mxu0 %v2396
    %v2601 = vpop.f32.mrb[0].mxu0
    %v2602 = vadd.f32 0.0, %v2601
    %v2603 = vpop.f32.mrb[0].mxu0
    %2604 = vmatprep.mubr.f32.mxu0 0.0
    %2605 = vmatmul.mubr.f32.gmra.mrb[0].mxu0 %v2399
    %v2606 = vpop.f32.mrb[0].mxu0
    %v2607 = vadd.f32 0.0, %v2606
    %v2608 = vpop.f32.mrb[0].mxu0
    %2609 = vmatprep.mubr.f32.mxu0 0.0
    %2610 = vmatmul.mubr.f32.gmra.mrb[0].mxu0 %v2402
    %v2611 = vpop.f32.mrb[0].mxu0
    %v2612 = vadd.f32 0.0, %v2611
    %v2613 = vpop.f32.mrb[0].mxu0
    %2614 = vmatprep.mubr.f32.mxu0 0.0
    %2615 = vmatmul.mubr.f32.gmra.mrb[0].mxu0 %v2405
    %v2616 = vpop.f32.mrb[0].mxu0
    %v2617 = vadd.f32 0.0, %v2616
    %v2618 = vpop.f32.mrb[0].mxu0
    %2619 = vmatprep.mubr.f32.mxu0 0.0
    %2620 = vmatmul.mubr.f32.gmra.mrb[0].mxu0 %v2408
    %v2621 = vpop.f32.mrb[0].mxu0
    %v2622 = vadd.f32 0.0, %v2621
    %v2623 = vpop.f32.mrb[0].mxu0
    %2624 = vmatprep.mubr.f32.mxu0 0.0
    %2625 = vmatmul.mubr.f32.gmra.mrb[0].mxu0 %v2411
    %v2626 = vpop.f32.mrb[0].mxu0
    %v2627 = vadd.f32 0.0, %v2626
    %v2628 = vpop.f32.mrb[0].mxu0
    %2629 = vmatprep.mubr.f32.mxu0 0.0
    %2630 = vmatmul.mubr.f32.gmra.mrb[0].mxu0 %v2414
    %v2631 = vpop.f32.mrb[0].mxu0
    %v2632 = vadd.f32 0.0, %v2631
    %v2633 = vpop.f32.mrb[0].mxu0
    %2634 = vmatprep.mubr.f32.mxu0 0.0
    %2635 = vmatmul.mubr.f32.gmra.mrb[0].mxu0 %v2417
    %v2636 = vpop.f32.mrb[0].mxu0
    %v2637 = vadd.f32 0.0, %v2636
    %v2638 = vpop.f32.mrb[0].mxu0
    %2639 = vmatprep.mubr.f32.mxu0 0.0
    %2640 = vmatmul.mubr.f32.gmra.mrb[0].mxu0 %v2420
    %v2641 = vpop.f32.mrb[0].mxu0
    %v2642 = vadd.f32 0.0, %v2641
    %v2643 = vpop.f32.mrb[0].mxu0
    %2644 = vmatprep.mubr.f32.mxu0 0.0
    %2645 = vmatmul.mubr.f32.gmra.mrb[0].mxu0 %v2423
    %v2646 = vpop.f32.mrb[0].mxu0
    %v2647 = vadd.f32 0.0, %v2646
    %v2648 = vpop.f32.mrb[0].mxu0
    %2649 = vdwg.mxu0
    %v2650 = vmax.f32 %v2492, 0.0
    %v2651 = vmax.f32 %v2497, 0.0
    %v2652 = vmax.f32 %v2502, 0.0
    %v2653 = vmax.f32 %v2507, 0.0
    %v2654 = vmax.f32 %v2512, 0.0
    %v2655 = vmax.f32 %v2517, 0.0
    %v2656 = vmax.f32 %v2522, 0.0
    %v2657 = vmax.f32 %v2527, 0.0
    %v2658 = vmax.f32 %v2532, 0.0
    %v2659 = vmax.f32 %v2537, 0.0
    %v2660 = vmax.f32 %v2542, 0.0
    %v2661 = vmax.f32 %v2547, 0.0
    %v2662 = vmax.f32 %v2552, 0.0
    %v2663 = vmax.f32 %v2557, 0.0
    %v2664 = vmax.f32 %v2562, 0.0
    %v2665 = vmax.f32 %v2567, 0.0
    %v2666 = vmax.f32 %v2572, 0.0
    %v2667 = vmax.f32 %v2577, 0.0
    %v2668 = vmax.f32 %v2582, 0.0
    %v2669 = vmax.f32 %v2587, 0.0
    %v2670 = vmax.f32 %v2592, 0.0
    %v2671 = vmax.f32 %v2597, 0.0
    %v2672 = vmax.f32 %v2602, 0.0
    %v2673 = vmax.f32 %v2607, 0.0
    %v2674 = vmax.f32 %v2612, 0.0
    %v2675 = vmax.f32 %v2617, 0.0
    %v2676 = vmax.f32 %v2622, 0.0
    %v2677 = vmax.f32 %v2627, 0.0
    %v2678 = vmax.f32 %v2632, 0.0
    %v2679 = vmax.f32 %v2637, 0.0
    %v2680 = vmax.f32 %v2642, 0.0
    %v2681 = vmax.f32 %v2647, 0.0
    %v2682 = vld [vmem:[%s8] sm:$0xff]
    %v2683 = vld [vmem:[%s8 + $0x8] sm:$0xff]
    %v2684 = vld [vmem:[%s8 + $0x10] sm:$0xff]
    %v2685 = vld [vmem:[%s8 + $0x18] sm:$0xff]
    %v2686 = vld [vmem:[%s9] sm:$0x1]
    %v2687 = vld [vmem:[%s10] sm:$0xff]
    %v2688 = vld [vmem:[%s10 + $0x8] sm:$0xff]
    %v2689 = vld [vmem:[%s10 + $0x10] sm:$0xff]
    %v2690 = vld [vmem:[%s10 + $0x18] sm:$0xff]
    %v2691 = vld [vmem:[%s10 + $0x20] sm:$0xff]
    %v2692 = vld [vmem:[%s10 + $0x28] sm:$0xff]
    %v2693 = vld [vmem:[%s10 + $0x30] sm:$0xff]
    %v2694 = vld [vmem:[%s10 + $0x38] sm:$0xff]
    %v2695 = vpack.c.bf16 %v2651, %v2650
    %v2696 = vpack.c.bf16 %v2653, %v2652
    %v2697 = vpack.c.bf16 %v2655, %v2654
    %v2698 = vpack.c.bf16 %v2657, %v2656
    %v2699 = vpack.c.bf16 %v2659, %v2658
    %v2700 = vpack.c.bf16 %v2661, %v2660
    %v2701 = vpack.c.bf16 %v2663, %v2662
    %v2702 = vpack.c.bf16 %v2665, %v2664
    %v2703 = vpack.c.bf16 %v2667, %v2666
    %v2704 = vpack.c.bf16 %v2669, %v2668
    %v2705 = vpack.c.bf16 %v2671, %v2670
    %v2706 = vpack.c.bf16 %v2673, %v2672
    %v2707 = vpack.c.bf16 %v2675, %v2674
    %v2708 = vpack.c.bf16 %v2677, %v2676
    %v2709 = vpack.c.bf16 %v2679, %v2678
    %v2710 = vpack.c.bf16 %v2681, %v2680
    %2711 = vmatprep.subr.bf16.mxu0 0
    %2712 = vmatpush1.bf16.msra.mxu0 %v2695
    %2713 = vmatprep.subr.bf16.mxu0 0
    %2714 = vmatpush1.bf16.msra.mxu0 %v2696
    %2715 = vmatprep.subr.bf16.mxu0 0
    %2716 = vmatpush1.bf16.msra.mxu0 %v2697
    %2717 = vmatprep.subr.bf16.mxu0 0
    %2718 = vmatpush1.bf16.msra.mxu0 %v2698
    %2719 = vmatprep.subr.bf16.mxu0 0
    %2720 = vmatpush1.bf16.msra.mxu0 %v2699
    %2721 = vmatprep.subr.bf16.mxu0 0
    %2722 = vmatpush1.bf16.msra.mxu0 %v2700
    %2723 = vmatprep.subr.bf16.mxu0 0
    %2724 = vmatpush1.bf16.msra.mxu0 %v2701
    %2725 = vmatprep.subr.bf16.mxu0 0
    %2726 = vmatpush1.bf16.msra.mxu0 %v2702
    %2727 = vmatprep.subr.bf16.mxu0 0
    %2728 = vmatpush1.bf16.msra.mxu0 0
    %2729 = vmatprep.subr.bf16.mxu0 0
    %2730 = vmatpush1.bf16.msra.mxu0 0
    %2731 = vmatprep.subr.bf16.mxu0 0
    %2732 = vmatpush1.bf16.msra.mxu0 0
    %2733 = vmatprep.subr.bf16.mxu0 0
    %2734 = vmatpush1.bf16.msra.mxu0 0
    %2735 = vmatprep.subr.bf16.mxu0 0
    %2736 = vmatpush1.bf16.msra.mxu0 0
    %2737 = vmatprep.subr.bf16.mxu0 0
    %2738 = vmatpush1.bf16.msra.mxu0 0
    %2739 = vmatprep.subr.bf16.mxu0 0
    %2740 = vmatpush1.bf16.msra.mxu0 0
    %2741 = vmatprep.subr.bf16.mxu0 0
    %2742 = vmatpush1.bf16.msra.mxu0 0
    %2743 = vmatprep.mubr.bf16.mxu0 0
    %2744 = vmatmul.mubr.bf16.gmra.mrb[0].mxu0 %v562
    %v2745 = vpop.f32.mrb[0].mxu0
    %v2746 = vadd.f32 0.0, %v2745
    %v2747 = vpop.f32.mrb[0].mxu0
    %v2748 = vpop.f32.mrb[0].mxu0
    %v2749 = vadd.f32 0.0, %v2748
    %v2750 = vpop.f32.mrb[0].mxu0
    %2751 = vmatprep.mubr.bf16.mxu0 0
    %2752 = vmatmul.mubr.bf16.gmra.mrb[0].mxu0 %v563
    %v2753 = vpop.f32.mrb[0].mxu0
    %v2754 = vadd.f32 0.0, %v2753
    %v2755 = vpop.f32.mrb[0].mxu0
    %v2756 = vpop.f32.mrb[0].mxu0
    %v2757 = vadd.f32 0.0, %v2756
    %v2758 = vpop.f32.mrb[0].mxu0
    %2759 = vmatprep.mubr.bf16.mxu0 0
    %2760 = vmatmul.mubr.bf16.gmra.mrb[0].mxu0 %v564
    %v2761 = vpop.f32.mrb[0].mxu0
    %v2762 = vadd.f32 0.0, %v2761
    %v2763 = vpop.f32.mrb[0].mxu0
    %v2764 = vpop.f32.mrb[0].mxu0
    %v2765 = vadd.f32 0.0, %v2764
    %v2766 = vpop.f32.mrb[0].mxu0
    %2767 = vmatprep.mubr.bf16.mxu0 0
    %2768 = vmatmul.mubr.bf16.gmra.mrb[0].mxu0 %v565
    %v2769 = vpop.f32.mrb[0].mxu0
    %v2770 = vadd.f32 0.0, %v2769
    %v2771 = vpop.f32.mrb[0].mxu0
    %v2772 = vpop.f32.mrb[0].mxu0
    %v2773 = vadd.f32 0.0, %v2772
    %v2774 = vpop.f32.mrb[0].mxu0
    %2775 = vmatprep.mubr.bf16.mxu0 0
    %2776 = vmatmul.mubr.bf16.gmra.mrb[0].mxu0 %v566
    %v2777 = vpop.f32.mrb[0].mxu0
    %v2778 = vadd.f32 0.0, %v2777
    %v2779 = vpop.f32.mrb[0].mxu0
    %v2780 = vpop.f32.mrb[0].mxu0
    %v2781 = vadd.f32 0.0, %v2780
    %v2782 = vpop.f32.mrb[0].mxu0
    %2783 = vmatprep.mubr.bf16.mxu0 0
    %2784 = vmatmul.mubr.bf16.gmra.mrb[0].mxu0 %v567
    %v2785 = vpop.f32.mrb[0].mxu0
    %v2786 = vadd.f32 0.0, %v2785
    %v2787 = vpop.f32.mrb[0].mxu0
    %v2788 = vpop.f32.mrb[0].mxu0
    %v2789 = vadd.f32 0.0, %v2788
    %v2790 = vpop.f32.mrb[0].mxu0
    %2791 = vmatprep.mubr.bf16.mxu0 0
    %2792 = vmatmul.mubr.bf16.gmra.mrb[0].mxu0 %v568
    %v2793 = vpop.f32.mrb[0].mxu0
    %v2794 = vadd.f32 0.0, %v2793
    %v2795 = vpop.f32.mrb[0].mxu0
    %v2796 = vpop.f32.mrb[0].mxu0
    %v2797 = vadd.f32 0.0, %v2796
    %v2798 = vpop.f32.mrb[0].mxu0
    %2799 = vmatprep.mubr.bf16.mxu0 0
    %2800 = vmatmul.mubr.bf16.gmra.mrb[0].mxu0 %v569
    %v2801 = vpop.f32.mrb[0].mxu0
    %v2802 = vadd.f32 0.0, %v2801
    %v2803 = vpop.f32.mrb[0].mxu0
    %v2804 = vpop.f32.mrb[0].mxu0
    %v2805 = vadd.f32 0.0, %v2804
    %v2806 = vpop.f32.mrb[0].mxu0
    %2807 = vdwg.mxu0
    %2808 = vmatprep.subr.bf16.mxu0 0
    %2809 = vmatpush1.bf16.msra.mxu0 %v2703
    %2810 = vmatprep.subr.bf16.mxu0 0
    %2811 = vmatpush1.bf16.msra.mxu0 %v2704
    %2812 = vmatprep.subr.bf16.mxu0 0
    %2813 = vmatpush1.bf16.msra.mxu0 %v2705
    %2814 = vmatprep.subr.bf16.mxu0 0
    %2815 = vmatpush1.bf16.msra.mxu0 %v2706
    %2816 = vmatprep.subr.bf16.mxu0 0
    %2817 = vmatpush1.bf16.msra.mxu0 %v2707
    %2818 = vmatprep.subr.bf16.mxu0 0
    %2819 = vmatpush1.bf16.msra.mxu0 %v2708
    %2820 = vmatprep.subr.bf16.mxu0 0
    %2821 = vmatpush1.bf16.msra.mxu0 %v2709
    %2822 = vmatprep.subr.bf16.mxu0 0
    %2823 = vmatpush1.bf16.msra.mxu0 %v2710
    %2824 = vmatprep.subr.bf16.mxu0 0
    %2825 = vmatpush1.bf16.msra.mxu0 0
    %2826 = vmatprep.subr.bf16.mxu0 0
    %2827 = vmatpush1.bf16.msra.mxu0 0
    %2828 = vmatprep.subr.bf16.mxu0 0
    %2829 = vmatpush1.bf16.msra.mxu0 0
    %2830 = vmatprep.subr.bf16.mxu0 0
    %2831 = vmatpush1.bf16.msra.mxu0 0
    %2832 = vmatprep.subr.bf16.mxu0 0
    %2833 = vmatpush1.bf16.msra.mxu0 0
    %2834 = vmatprep.subr.bf16.mxu0 0
    %2835 = vmatpush1.bf16.msra.mxu0 0
    %2836 = vmatprep.subr.bf16.mxu0 0
    %2837 = vmatpush1.bf16.msra.mxu0 0
    %2838 = vmatprep.subr.bf16.mxu0 0
    %2839 = vmatpush1.bf16.msra.mxu0 0
    %2840 = vmatprep.mubr.bf16.mxu0 0
    %2841 = vmatmul.mubr.bf16.gmra.mrb[0].mxu0 %v707
    %v2842 = vpop.f32.mrb[0].mxu0
    %v2843 = vadd.f32 0.0, %v2842
    %v2844 = vpop.f32.mrb[0].mxu0
    %v2845 = vpop.f32.mrb[0].mxu0
    %v2846 = vadd.f32 0.0, %v2845
    %v2847 = vpop.f32.mrb[0].mxu0
    %2848 = vmatprep.mubr.bf16.mxu0 0
    %2849 = vmatmul.mubr.bf16.gmra.mrb[0].mxu0 %v708
    %v2850 = vpop.f32.mrb[0].mxu0
    %v2851 = vadd.f32 0.0, %v2850
    %v2852 = vpop.f32.mrb[0].mxu0
    %v2853 = vpop.f32.mrb[0].mxu0
    %v2854 = vadd.f32 0.0, %v2853
    %v2855 = vpop.f32.mrb[0].mxu0
    %2856 = vmatprep.mubr.bf16.mxu0 0
    %2857 = vmatmul.mubr.bf16.gmra.mrb[0].mxu0 %v709
    %v2858 = vpop.f32.mrb[0].mxu0
    %v2859 = vadd.f32 0.0, %v2858
    %v2860 = vpop.f32.mrb[0].mxu0
    %v2861 = vpop.f32.mrb[0].mxu0
    %v2862 = vadd.f32 0.0, %v2861
    %v2863 = vpop.f32.mrb[0].mxu0
    %2864 = vmatprep.mubr.bf16.mxu0 0
    %2865 = vmatmul.mubr.bf16.gmra.mrb[0].mxu0 %v710
    %v2866 = vpop.f32.mrb[0].mxu0
    %v2867 = vadd.f32 0.0, %v2866
    %v2868 = vpop.f32.mrb[0].mxu0
    %v2869 = vpop.f32.mrb[0].mxu0
    %v2870 = vadd.f32 0.0, %v2869
    %v2871 = vpop.f32.mrb[0].mxu0
    %2872 = vmatprep.mubr.bf16.mxu0 0
    %2873 = vmatmul.mubr.bf16.gmra.mrb[0].mxu0 %v711
    %v2874 = vpop.f32.mrb[0].mxu0
    %v2875 = vadd.f32 0.0, %v2874
    %v2876 = vpop.f32.mrb[0].mxu0
    %v2877 = vpop.f32.mrb[0].mxu0
    %v2878 = vadd.f32 0.0, %v2877
    %v2879 = vpop.f32.mrb[0].mxu0
    %2880 = vmatprep.mubr.bf16.mxu0 0
    %2881 = vmatmul.mubr.bf16.gmra.mrb[0].mxu0 %v712
    %v2882 = vpop.f32.mrb[0].mxu0
    %v2883 = vadd.f32 0.0, %v2882
    %v2884 = vpop.f32.mrb[0].mxu0
    %v2885 = vpop.f32.mrb[0].mxu0
    %v2886 = vadd.f32 0.0, %v2885
    %v2887 = vpop.f32.mrb[0].mxu0
    %2888 = vmatprep.mubr.bf16.mxu0 0
    %2889 = vmatmul.mubr.bf16.gmra.mrb[0].mxu0 %v713
    %v2890 = vpop.f32.mrb[0].mxu0
    %v2891 = vadd.f32 0.0, %v2890
    %v2892 = vpop.f32.mrb[0].mxu0
    %v2893 = vpop.f32.mrb[0].mxu0
    %v2894 = vadd.f32 0.0, %v2893
    %v2895 = vpop.f32.mrb[0].mxu0
    %2896 = vmatprep.mubr.bf16.mxu0 0
    %2897 = vmatmul.mubr.bf16.gmra.mrb[0].mxu0 %v714
    %v2898 = vpop.f32.mrb[0].mxu0
    %v2899 = vadd.f32 0.0, %v2898
    %v2900 = vpop.f32.mrb[0].mxu0
    %v2901 = vpop.f32.mrb[0].mxu0
    %v2902 = vadd.f32 0.0, %v2901
    %v2903 = vpop.f32.mrb[0].mxu0
    %2904 = vdwg.mxu0
    %v2905 = vmax.f32 %v2746, 0.0
    %v2906 = vmax.f32 %v2749, 0.0
    %v2907 = vmax.f32 %v2754, 0.0
    %v2908 = vmax.f32 %v2757, 0.0
    %v2909 = vmax.f32 %v2762, 0.0
    %v2910 = vmax.f32 %v2765, 0.0
    %v2911 = vmax.f32 %v2770, 0.0
    %v2912 = vmax.f32 %v2773, 0.0
    %v2913 = vmax.f32 %v2778, 0.0
    %v2914 = vmax.f32 %v2781, 0.0
    %v2915 = vmax.f32 %v2786, 0.0
    %v2916 = vmax.f32 %v2789, 0.0
    %v2917 = vmax.f32 %v2794, 0.0
    %v2918 = vmax.f32 %v2797, 0.0
    %v2919 = vmax.f32 %v2802, 0.0
    %v2920 = vmax.f32 %v2805, 0.0
    %v2921 = vmax.f32 %v2843, 0.0
    %v2922 = vmax.f32 %v2846, 0.0
    %v2923 = vmax.f32 %v2851, 0.0
    %v2924 = vmax.f32 %v2854, 0.0
    %v2925 = vmax.f32 %v2859, 0.0
    %v2926 = vmax.f32 %v2862, 0.0
    %v2927 = vmax.f32 %v2867, 0.0
    %v2928 = vmax.f32 %v2870, 0.0
    %v2929 = vmax.f32 %v2875, 0.0
    %v2930 = vmax.f32 %v2878, 0.0
    %v2931 = vmax.f32 %v2883, 0.0
    %v2932 = vmax.f32 %v2886, 0.0
    %v2933 = vmax.f32 %v2891, 0.0
    %v2934 = vmax.f32 %v2894, 0.0
    %v2935 = vmax.f32 %v2899, 0.0
    %v2936 = vmax.f32 %v2902, 0.0
    %v2937 = vadd.f32 %v2905, 1e-07
    %v2938 = vadd.f32 %v2906, 1e-07
    %v2939 = vadd.f32 %v2907, 1e-07
    %v2940 = vadd.f32 %v2908, 1e-07
    %v2941 = vadd.f32 %v2909, 1e-07
    %v2942 = vadd.f32 %v2910, 1e-07
    %v2943 = vadd.f32 %v2911, 1e-07
    %v2944 = vadd.f32 %v2912, 1e-07
    %v2945 = vadd.f32 %v2913, 1e-07
    %v2946 = vadd.f32 %v2914, 1e-07
    %v2947 = vadd.f32 %v2915, 1e-07
    %v2948 = vadd.f32 %v2916, 1e-07
    %v2949 = vadd.f32 %v2917, 1e-07
    %v2950 = vadd.f32 %v2918, 1e-07
    %v2951 = vadd.f32 %v2919, 1e-07
    %v2952 = vadd.f32 %v2920, 1e-07
    %v2953 = vadd.f32 %v2921, 1e-07
    %v2954 = vadd.f32 %v2922, 1e-07
    %v2955 = vadd.f32 %v2923, 1e-07
    %v2956 = vadd.f32 %v2924, 1e-07
    %v2957 = vadd.f32 %v2925, 1e-07
    %v2958 = vadd.f32 %v2926, 1e-07
    %v2959 = vadd.f32 %v2927, 1e-07
    %v2960 = vadd.f32 %v2928, 1e-07
    %v2961 = vadd.f32 %v2929, 1e-07
    %v2962 = vadd.f32 %v2930, 1e-07
    %v2963 = vadd.f32 %v2931, 1e-07
    %v2964 = vadd.f32 %v2932, 1e-07
    %v2965 = vadd.f32 %v2933, 1e-07
    %v2966 = vadd.f32 %v2934, 1e-07
    %v2967 = vadd.f32 %v2935, 1e-07
    %v2968 = vadd.f32 %v2936, 1e-07
    %v2969 = vsel %vm884, %v2937, -inf
    %v2970 = vsel %vm884, %v2938, -inf
    %v2971 = vsel %vm884, %v2939, -inf
    %v2972 = vmax.f32 %v2969, %v2971
    %v2973 = vsel %vm884, %v2940, -inf
    %v2974 = vmax.f32 %v2970, %v2973
    %v2975 = vsel %vm884, %v2941, -inf
    %v2976 = vmax.f32 %v2972, %v2975
    %v2977 = vsel %vm884, %v2942, -inf
    %v2978 = vmax.f32 %v2974, %v2977
    %v2979 = vsel %vm884, %v2943, -inf
    %v2980 = vmax.f32 %v2976, %v2979
    %v2981 = vsel %vm884, %v2944, -inf
    %v2982 = vmax.f32 %v2978, %v2981
    %v2983 = vsel %vm884, %v2945, -inf
    %v2984 = vmax.f32 %v2980, %v2983
    %v2985 = vsel %vm884, %v2946, -inf
    %v2986 = vmax.f32 %v2982, %v2985
    %v2987 = vsel %vm884, %v2947, -inf
    %v2988 = vmax.f32 %v2984, %v2987
    %v2989 = vsel %vm884, %v2948, -inf
    %v2990 = vmax.f32 %v2986, %v2989
    %v2991 = vsel %vm884, %v2949, -inf
    %v2992 = vmax.f32 %v2988, %v2991
    %v2993 = vsel %vm884, %v2950, -inf
    %v2994 = vmax.f32 %v2990, %v2993
    %v2995 = vsel %vm884, %v2951, -inf
    %v2996 = vmax.f32 %v2992, %v2995
    %v2997 = vsel %vm884, %v2952, -inf
    %v2998 = vmax.f32 %v2994, %v2997
    %v2999 = vmax.f32 %v2996, %v2998
    %v3000 = vrot.slane %v2999, 4
    %v3001 = vmax.f32 %v2999, %v3000
    %v3002 = vrot.slane %v3001, 2
    %v3003 = vmax.f32 %v3001, %v3002
    %v3004 = vrot.slane %v3003, 1
    %v3005 = vmax.f32 %v3003, %v3004
    %v3006 = vsel %vm884, %v2953, -inf
    %v3007 = vsel %vm884, %v2954, -inf
    %v3008 = vsel %vm884, %v2955, -inf
    %v3009 = vmax.f32 %v3006, %v3008
    %v3010 = vsel %vm884, %v2956, -inf
    %v3011 = vmax.f32 %v3007, %v3010
    %v3012 = vsel %vm884, %v2957, -inf
    %v3013 = vmax.f32 %v3009, %v3012
    %v3014 = vsel %vm884, %v2958, -inf
    %v3015 = vmax.f32 %v3011, %v3014
    %v3016 = vsel %vm884, %v2959, -inf
    %v3017 = vmax.f32 %v3013, %v3016
    %v3018 = vsel %vm884, %v2960, -inf
    %v3019 = vmax.f32 %v3015, %v3018
    %v3020 = vsel %vm884, %v2961, -inf
    %v3021 = vmax.f32 %v3017, %v3020
    %v3022 = vsel %vm884, %v2962, -inf
    %v3023 = vmax.f32 %v3019, %v3022
    %v3024 = vsel %vm884, %v2963, -inf
    %v3025 = vmax.f32 %v3021, %v3024
    %v3026 = vsel %vm884, %v2964, -inf
    %v3027 = vmax.f32 %v3023, %v3026
    %v3028 = vsel %vm884, %v2965, -inf
    %v3029 = vmax.f32 %v3025, %v3028
    %v3030 = vsel %vm884, %v2966, -inf
    %v3031 = vmax.f32 %v3027, %v3030
    %v3032 = vsel %vm884, %v2967, -inf
    %v3033 = vmax.f32 %v3029, %v3032
    %v3034 = vsel %vm884, %v2968, -inf
    %v3035 = vmax.f32 %v3031, %v3034
    %v3036 = vmax.f32 %v3033, %v3035
    %v3037 = vrot.slane %v3036, 4
    %v3038 = vmax.f32 %v3036, %v3037
    %v3039 = vrot.slane %v3038, 2
    %v3040 = vmax.f32 %v3038, %v3039
    %v3041 = vrot.slane %v3040, 1
    %v3042 = vmax.f32 %v3040, %v3041
    %v3043 = vsub.f32 %v2937, %v3005
    %v3044 = vsub.f32 %v2938, %v3005
    %v3045 = vsub.f32 %v2939, %v3005
    %v3046 = vsub.f32 %v2940, %v3005
    %v3047 = vsub.f32 %v2941, %v3005
    %v3048 = vsub.f32 %v2942, %v3005
    %v3049 = vsub.f32 %v2943, %v3005
    %v3050 = vsub.f32 %v2944, %v3005
    %v3051 = vsub.f32 %v2945, %v3005
    %v3052 = vsub.f32 %v2946, %v3005
    %v3053 = vsub.f32 %v2947, %v3005
    %v3054 = vsub.f32 %v2948, %v3005
    %v3055 = vsub.f32 %v2949, %v3005
    %v3056 = vsub.f32 %v2950, %v3005
    %v3057 = vsub.f32 %v2951, %v3005
    %v3058 = vsub.f32 %v2952, %v3005
    %v3059 = vsub.f32 %v2953, %v3042
    %v3060 = vsub.f32 %v2954, %v3042
    %v3061 = vsub.f32 %v2955, %v3042
    %v3062 = vsub.f32 %v2956, %v3042
    %v3063 = vsub.f32 %v2957, %v3042
    %v3064 = vsub.f32 %v2958, %v3042
    %v3065 = vsub.f32 %v2959, %v3042
    %v3066 = vsub.f32 %v2960, %v3042
    %v3067 = vsub.f32 %v2961, %v3042
    %v3068 = vsub.f32 %v2962, %v3042
    %v3069 = vsub.f32 %v2963, %v3042
    %v3070 = vsub.f32 %v2964, %v3042
    %v3071 = vsub.f32 %v2965, %v3042
    %v3072 = vsub.f32 %v2966, %v3042
    %v3073 = vsub.f32 %v2967, %v3042
    %v3074 = vsub.f32 %v2968, %v3042
    %v3075 = vmul.f32 %v3043, 1.442695
    %v3076 = vpow.pop %v3075
    %v3077 = vmul.f32 %v3044, 1.442695
    %v3078 = vpow.pop %v3077
    %v3079 = vmul.f32 %v3045, 1.442695
    %v3080 = vpow.pop %v3079
    %v3081 = vmul.f32 %v3046, 1.442695
    %v3082 = vpow.pop %v3081
    %v3083 = vmul.f32 %v3047, 1.442695
    %v3084 = vpow.pop %v3083
    %v3085 = vmul.f32 %v3048, 1.442695
    %v3086 = vpow.pop %v3085
    %v3087 = vmul.f32 %v3049, 1.442695
    %v3088 = vpow.pop %v3087
    %v3089 = vmul.f32 %v3050, 1.442695
    %v3090 = vpow.pop %v3089
    %v3091 = vmul.f32 %v3051, 1.442695
    %v3092 = vpow.pop %v3091
    %v3093 = vmul.f32 %v3052, 1.442695
    %v3094 = vpow.pop %v3093
    %v3095 = vmul.f32 %v3053, 1.442695
    %v3096 = vpow.pop %v3095
    %v3097 = vmul.f32 %v3054, 1.442695
    %v3098 = vpow.pop %v3097
    %v3099 = vmul.f32 %v3055, 1.442695
    %v3100 = vpow.pop %v3099
    %v3101 = vmul.f32 %v3056, 1.442695
    %v3102 = vpow.pop %v3101
    %v3103 = vmul.f32 %v3057, 1.442695
    %v3104 = vpow.pop %v3103
    %v3105 = vmul.f32 %v3058, 1.442695
    %v3106 = vpow.pop %v3105
    %v3107 = vmul.f32 %v3059, 1.442695
    %v3108 = vpow.pop %v3107
    %v3109 = vmul.f32 %v3060, 1.442695
    %v3110 = vpow.pop %v3109
    %v3111 = vmul.f32 %v3061, 1.442695
    %v3112 = vpow.pop %v3111
    %v3113 = vmul.f32 %v3062, 1.442695
    %v3114 = vpow.pop %v3113
    %v3115 = vmul.f32 %v3063, 1.442695
    %v3116 = vpow.pop %v3115
    %v3117 = vmul.f32 %v3064, 1.442695
    %v3118 = vpow.pop %v3117
    %v3119 = vmul.f32 %v3065, 1.442695
    %v3120 = vpow.pop %v3119
    %v3121 = vmul.f32 %v3066, 1.442695
    %v3122 = vpow.pop %v3121
    %v3123 = vmul.f32 %v3067, 1.442695
    %v3124 = vpow.pop %v3123
    %v3125 = vmul.f32 %v3068, 1.442695
    %v3126 = vpow.pop %v3125
    %v3127 = vmul.f32 %v3069, 1.442695
    %v3128 = vpow.pop %v3127
    %v3129 = vmul.f32 %v3070, 1.442695
    %v3130 = vpow.pop %v3129
    %v3131 = vmul.f32 %v3071, 1.442695
    %v3132 = vpow.pop %v3131
    %v3133 = vmul.f32 %v3072, 1.442695
    %v3134 = vpow.pop %v3133
    %v3135 = vmul.f32 %v3073, 1.442695
    %v3136 = vpow.pop %v3135
    %v3137 = vmul.f32 %v3074, 1.442695
    %v3138 = vpow.pop %v3137
    %v3139 = vmul.f32 %v2937, %v3076
    %v3140 = vmul.f32 %v2938, %v3078
    %v3141 = vmul.f32 %v2939, %v3080
    %v3142 = vmul.f32 %v2940, %v3082
    %v3143 = vmul.f32 %v2941, %v3084
    %v3144 = vmul.f32 %v2942, %v3086
    %v3145 = vmul.f32 %v2943, %v3088
    %v3146 = vmul.f32 %v2944, %v3090
    %v3147 = vmul.f32 %v2945, %v3092
    %v3148 = vmul.f32 %v2946, %v3094
    %v3149 = vmul.f32 %v2947, %v3096
    %v3150 = vmul.f32 %v2948, %v3098
    %v3151 = vmul.f32 %v2949, %v3100
    %v3152 = vmul.f32 %v2950, %v3102
    %v3153 = vmul.f32 %v2951, %v3104
    %v3154 = vmul.f32 %v2952, %v3106
    %v3155 = vmul.f32 %v2953, %v3108
    %v3156 = vmul.f32 %v2954, %v3110
    %v3157 = vmul.f32 %v2955, %v3112
    %v3158 = vmul.f32 %v2956, %v3114
    %v3159 = vmul.f32 %v2957, %v3116
    %v3160 = vmul.f32 %v2958, %v3118
    %v3161 = vmul.f32 %v2959, %v3120
    %v3162 = vmul.f32 %v2960, %v3122
    %v3163 = vmul.f32 %v2961, %v3124
    %v3164 = vmul.f32 %v2962, %v3126
    %v3165 = vmul.f32 %v2963, %v3128
    %v3166 = vmul.f32 %v2964, %v3130
    %v3167 = vmul.f32 %v2965, %v3132
    %v3168 = vmul.f32 %v2966, %v3134
    %v3169 = vmul.f32 %v2967, %v3136
    %v3170 = vmul.f32 %v2968, %v3138
    %3203 = vrot.lane.b32.xlu0 %v3076, 32
    %v3204 = vpop.permute.xlu0 %3203
    %3205 = vrot.lane.b32.xlu0 %v3078, 32
    %v3206 = vpop.permute.xlu0 %3205
    %3207 = vrot.lane.b32.xlu0 %v3080, 32
    %v3208 = vpop.permute.xlu0 %3207
    %3209 = vrot.lane.b32.xlu0 %v3082, 32
    %v3210 = vpop.permute.xlu0 %3209
    %3211 = vrot.lane.b32.xlu0 %v3084, 32
    %v3212 = vpop.permute.xlu0 %3211
    %3213 = vrot.lane.b32.xlu0 %v3086, 32
    %v3214 = vpop.permute.xlu0 %3213
    %3215 = vrot.lane.b32.xlu0 %v3088, 32
    %v3216 = vpop.permute.xlu0 %3215
    %3217 = vrot.lane.b32.xlu0 %v3090, 32
    %v3218 = vpop.permute.xlu0 %3217
    %3219 = vrot.lane.b32.xlu0 %v3092, 32
    %v3220 = vpop.permute.xlu0 %3219
    %3221 = vrot.lane.b32.xlu0 %v3094, 32
    %v3222 = vpop.permute.xlu0 %3221
    %3223 = vrot.lane.b32.xlu0 %v3096, 32
    %v3224 = vpop.permute.xlu0 %3223
    %3225 = vrot.lane.b32.xlu0 %v3098, 32
    %v3226 = vpop.permute.xlu0 %3225
    %3227 = vrot.lane.b32.xlu0 %v3100, 32
    %v3228 = vpop.permute.xlu0 %3227
    %3229 = vrot.lane.b32.xlu0 %v3102, 32
    %v3230 = vpop.permute.xlu0 %3229
    %3231 = vrot.lane.b32.xlu0 %v3104, 32
    %v3232 = vpop.permute.xlu0 %3231
    %3233 = vrot.lane.b32.xlu0 %v3106, 32
    %v3234 = vpop.permute.xlu0 %3233
    %3235 = vrot.lane.b32.xlu0 %v3108, 32
    %v3236 = vpop.permute.xlu0 %3235
    %3237 = vrot.lane.b32.xlu0 %v3110, 32
    %v3238 = vpop.permute.xlu0 %3237
    %3239 = vrot.lane.b32.xlu0 %v3112, 32
    %v3240 = vpop.permute.xlu0 %3239
    %3241 = vrot.lane.b32.xlu0 %v3114, 32
    %v3242 = vpop.permute.xlu0 %3241
    %3243 = vrot.lane.b32.xlu0 %v3116, 32
    %v3244 = vpop.permute.xlu0 %3243
    %3245 = vrot.lane.b32.xlu0 %v3118, 32
    %v3246 = vpop.permute.xlu0 %3245
    %3247 = vrot.lane.b32.xlu0 %v3120, 32
    %v3248 = vpop.permute.xlu0 %3247
    %3249 = vrot.lane.b32.xlu0 %v3122, 32
    %v3250 = vpop.permute.xlu0 %3249
    %3251 = vrot.lane.b32.xlu0 %v3124, 32
    %v3252 = vpop.permute.xlu0 %3251
    %3253 = vrot.lane.b32.xlu0 %v3126, 32
    %v3254 = vpop.permute.xlu0 %3253
    %3255 = vrot.lane.b32.xlu0 %v3128, 32
    %v3256 = vpop.permute.xlu0 %3255
    %3257 = vrot.lane.b32.xlu0 %v3130, 32
    %v3258 = vpop.permute.xlu0 %3257
    %3259 = vrot.lane.b32.xlu0 %v3132, 32
    %v3260 = vpop.permute.xlu0 %3259
    %3261 = vrot.lane.b32.xlu0 %v3134, 32
    %v3262 = vpop.permute.xlu0 %3261
    %3263 = vrot.lane.b32.xlu0 %v3136, 32
    %v3264 = vpop.permute.xlu0 %3263
    %3265 = vrot.lane.b32.xlu0 %v3138, 32
    %v3266 = vpop.permute.xlu0 %3265
    %v3299 = vsel %vm884, %v3139, %v3204
    %v3300 = vsel %vm884, %v3140, %v3206
    %v3301 = vsel %vm884, %v3141, %v3208
    %v3302 = vsel %vm884, %v3142, %v3210
    %v3303 = vsel %vm884, %v3143, %v3212
    %v3304 = vsel %vm884, %v3144, %v3214
    %v3305 = vsel %vm884, %v3145, %v3216
    %v3306 = vsel %vm884, %v3146, %v3218
    %v3307 = vsel %vm884, %v3147, %v3220
    %v3308 = vsel %vm884, %v3148, %v3222
    %v3309 = vsel %vm884, %v3149, %v3224
    %v3310 = vsel %vm884, %v3150, %v3226
    %v3311 = vsel %vm884, %v3151, %v3228
    %v3312 = vsel %vm884, %v3152, %v3230
    %v3313 = vsel %vm884, %v3153, %v3232
    %v3314 = vsel %vm884, %v3154, %v3234
    %v3315 = vsel %vm884, %v3155, %v3236
    %v3316 = vsel %vm884, %v3156, %v3238
    %v3317 = vsel %vm884, %v3157, %v3240
    %v3318 = vsel %vm884, %v3158, %v3242
    %v3319 = vsel %vm884, %v3159, %v3244
    %v3320 = vsel %vm884, %v3160, %v3246
    %v3321 = vsel %vm884, %v3161, %v3248
    %v3322 = vsel %vm884, %v3162, %v3250
    %v3323 = vsel %vm884, %v3163, %v3252
    %v3324 = vsel %vm884, %v3164, %v3254
    %v3325 = vsel %vm884, %v3165, %v3256
    %v3326 = vsel %vm884, %v3166, %v3258
    %v3327 = vsel %vm884, %v3167, %v3260
    %v3328 = vsel %vm884, %v3168, %v3262
    %v3329 = vsel %vm884, %v3169, %v3264
    %v3330 = vsel %vm884, %v3170, %v3266
    %v3331 = vpack.c.bf16 %v3300, %v3299
    %v3332 = vpack.c.bf16 %v3302, %v3301
    %v3333 = vpack.c.bf16 %v3304, %v3303
    %v3334 = vpack.c.bf16 %v3306, %v3305
    %v3335 = vpack.c.bf16 %v3308, %v3307
    %v3336 = vpack.c.bf16 %v3310, %v3309
    %v3337 = vpack.c.bf16 %v3312, %v3311
    %v3338 = vpack.c.bf16 %v3314, %v3313
    %v3339 = vpack.c.bf16 %v3316, %v3315
    %v3340 = vpack.c.bf16 %v3318, %v3317
    %v3341 = vpack.c.bf16 %v3320, %v3319
    %v3342 = vpack.c.bf16 %v3322, %v3321
    %v3343 = vpack.c.bf16 %v3324, %v3323
    %v3344 = vpack.c.bf16 %v3326, %v3325
    %v3345 = vpack.c.bf16 %v3328, %v3327
    %v3346 = vpack.c.bf16 %v3330, %v3329
    %3347 = vmatprep.subr.bf16.mxu0 0
    %3348 = vmatpush1.bf16.msra.mxu0 %v3331
    %3349 = vmatprep.subr.bf16.mxu0 0
    %3350 = vmatpush1.bf16.msra.mxu0 %v3332
    %3351 = vmatprep.subr.bf16.mxu0 0
    %3352 = vmatpush1.bf16.msra.mxu0 %v3333
    %3353 = vmatprep.subr.bf16.mxu0 0
    %3354 = vmatpush1.bf16.msra.mxu0 %v3334
    %3355 = vmatprep.subr.bf16.mxu0 0
    %3356 = vmatpush1.bf16.msra.mxu0 %v3335
    %3357 = vmatprep.subr.bf16.mxu0 0
    %3358 = vmatpush1.bf16.msra.mxu0 %v3336
    %3359 = vmatprep.subr.bf16.mxu0 0
    %3360 = vmatpush1.bf16.msra.mxu0 %v3337
    %3361 = vmatprep.subr.bf16.mxu0 0
    %3362 = vmatpush1.bf16.msra.mxu0 %v3338
    %3363 = vmatprep.subr.bf16.mxu0 0
    %3364 = vmatpush1.bf16.msra.mxu0 0
    %3365 = vmatprep.subr.bf16.mxu0 0
    %3366 = vmatpush1.bf16.msra.mxu0 0
    %3367 = vmatprep.subr.bf16.mxu0 0
    %3368 = vmatpush1.bf16.msra.mxu0 0
    %3369 = vmatprep.subr.bf16.mxu0 0
    %3370 = vmatpush1.bf16.msra.mxu0 0
    %3371 = vmatprep.subr.bf16.mxu0 0
    %3372 = vmatpush1.bf16.msra.mxu0 0
    %3373 = vmatprep.subr.bf16.mxu0 0
    %3374 = vmatpush1.bf16.msra.mxu0 0
    %3375 = vmatprep.subr.bf16.mxu0 0
    %3376 = vmatpush1.bf16.msra.mxu0 0
    %3377 = vmatprep.subr.bf16.mxu0 0
    %3378 = vmatpush1.bf16.msra.mxu0 0
    %3379 = vmatprep.mubr.bf16.mxu0 0
    %3380 = vmatmul.mubr.bf16.gmra.mrb[0].mxu0 %v1295
    %v3381 = vpop.f32.mrb[0].mxu0
    %v3382 = vadd.f32 0.0, %v3381
    %v3383 = vpop.f32.mrb[0].mxu0
    %v3384 = vpop.f32.mrb[0].mxu0
    %v3385 = vadd.f32 0.0, %v3384
    %v3386 = vpop.f32.mrb[0].mxu0
    %3387 = vmatprep.mubr.bf16.mxu0 0
    %3388 = vmatmul.mubr.bf16.gmra.mrb[0].mxu0 %v1296
    %v3389 = vpop.f32.mrb[0].mxu0
    %v3390 = vadd.f32 0.0, %v3389
    %v3391 = vpop.f32.mrb[0].mxu0
    %v3392 = vpop.f32.mrb[0].mxu0
    %v3393 = vadd.f32 0.0, %v3392
    %v3394 = vpop.f32.mrb[0].mxu0
    %3395 = vmatprep.mubr.bf16.mxu0 0
    %3396 = vmatmul.mubr.bf16.gmra.mrb[0].mxu0 %v1297
    %v3397 = vpop.f32.mrb[0].mxu0
    %v3398 = vadd.f32 0.0, %v3397
    %v3399 = vpop.f32.mrb[0].mxu0
    %v3400 = vpop.f32.mrb[0].mxu0
    %v3401 = vadd.f32 0.0, %v3400
    %v3402 = vpop.f32.mrb[0].mxu0
    %3403 = vmatprep.mubr.bf16.mxu0 0
    %3404 = vmatmul.mubr.bf16.gmra.mrb[0].mxu0 %v1298
    %v3405 = vpop.f32.mrb[0].mxu0
    %v3406 = vadd.f32 0.0, %v3405
    %v3407 = vpop.f32.mrb[0].mxu0
    %v3408 = vpop.f32.mrb[0].mxu0
    %v3409 = vadd.f32 0.0, %v3408
    %v3410 = vpop.f32.mrb[0].mxu0
    %3411 = vmatprep.mubr.bf16.mxu0 0
    %3412 = vmatmul.mubr.bf16.gmra.mrb[0].mxu0 %v1299
    %v3413 = vpop.f32.mrb[0].mxu0
    %v3414 = vadd.f32 0.0, %v3413
    %v3415 = vpop.f32.mrb[0].mxu0
    %v3416 = vpop.f32.mrb[0].mxu0
    %v3417 = vadd.f32 0.0, %v3416
    %v3418 = vpop.f32.mrb[0].mxu0
    %3419 = vmatprep.mubr.bf16.mxu0 0
    %3420 = vmatmul.mubr.bf16.gmra.mrb[0].mxu0 %v1300
    %v3421 = vpop.f32.mrb[0].mxu0
    %v3422 = vadd.f32 0.0, %v3421
    %v3423 = vpop.f32.mrb[0].mxu0
    %v3424 = vpop.f32.mrb[0].mxu0
    %v3425 = vadd.f32 0.0, %v3424
    %v3426 = vpop.f32.mrb[0].mxu0
    %3427 = vmatprep.mubr.bf16.mxu0 0
    %3428 = vmatmul.mubr.bf16.gmra.mrb[0].mxu0 %v1301
    %v3429 = vpop.f32.mrb[0].mxu0
    %v3430 = vadd.f32 0.0, %v3429
    %v3431 = vpop.f32.mrb[0].mxu0
    %v3432 = vpop.f32.mrb[0].mxu0
    %v3433 = vadd.f32 0.0, %v3432
    %v3434 = vpop.f32.mrb[0].mxu0
    %3435 = vmatprep.mubr.bf16.mxu0 0
    %3436 = vmatmul.mubr.bf16.gmra.mrb[0].mxu0 %v1302
    %v3437 = vpop.f32.mrb[0].mxu0
    %v3438 = vadd.f32 0.0, %v3437
    %v3439 = vpop.f32.mrb[0].mxu0
    %v3440 = vpop.f32.mrb[0].mxu0
    %v3441 = vadd.f32 0.0, %v3440
    %v3442 = vpop.f32.mrb[0].mxu0
    %3443 = vdwg.mxu0
    %3444 = vmatprep.subr.bf16.mxu0 0
    %3445 = vmatpush1.bf16.msra.mxu0 %v3339
    %3446 = vmatprep.subr.bf16.mxu0 0
    %3447 = vmatpush1.bf16.msra.mxu0 %v3340
    %3448 = vmatprep.subr.bf16.mxu0 0
    %3449 = vmatpush1.bf16.msra.mxu0 %v3341
    %3450 = vmatprep.subr.bf16.mxu0 0
    %3451 = vmatpush1.bf16.msra.mxu0 %v3342
    %3452 = vmatprep.subr.bf16.mxu0 0
    %3453 = vmatpush1.bf16.msra.mxu0 %v3343
    %3454 = vmatprep.subr.bf16.mxu0 0
    %3455 = vmatpush1.bf16.msra.mxu0 %v3344
    %3456 = vmatprep.subr.bf16.mxu0 0
    %3457 = vmatpush1.bf16.msra.mxu0 %v3345
    %3458 = vmatprep.subr.bf16.mxu0 0
    %3459 = vmatpush1.bf16.msra.mxu0 %v3346
    %3460 = vmatprep.subr.bf16.mxu0 0
    %3461 = vmatpush1.bf16.msra.mxu0 0
    %3462 = vmatprep.subr.bf16.mxu0 0
    %3463 = vmatpush1.bf16.msra.mxu0 0
    %3464 = vmatprep.subr.bf16.mxu0 0
    %3465 = vmatpush1.bf16.msra.mxu0 0
    %3466 = vmatprep.subr.bf16.mxu0 0
    %3467 = vmatpush1.bf16.msra.mxu0 0
    %3468 = vmatprep.subr.bf16.mxu0 0
    %3469 = vmatpush1.bf16.msra.mxu0 0
    %3470 = vmatprep.subr.bf16.mxu0 0
    %3471 = vmatpush1.bf16.msra.mxu0 0
    %3472 = vmatprep.subr.bf16.mxu0 0
    %3473 = vmatpush1.bf16.msra.mxu0 0
    %3474 = vmatprep.subr.bf16.mxu0 0
    %3475 = vmatpush1.bf16.msra.mxu0 0
    %3476 = vmatprep.mubr.bf16.mxu0 0
    %3477 = vmatmul.mubr.bf16.gmra.mrb[0].mxu0 %v1440
    %v3478 = vpop.f32.mrb[0].mxu0
    %v3479 = vadd.f32 0.0, %v3478
    %v3480 = vpop.f32.mrb[0].mxu0
    %v3481 = vpop.f32.mrb[0].mxu0
    %v3482 = vadd.f32 0.0, %v3481
    %v3483 = vpop.f32.mrb[0].mxu0
    %3484 = vmatprep.mubr.bf16.mxu0 0
    %3485 = vmatmul.mubr.bf16.gmra.mrb[0].mxu0 %v1441
    %v3486 = vpop.f32.mrb[0].mxu0
    %v3487 = vadd.f32 0.0, %v3486
    %v3488 = vpop.f32.mrb[0].mxu0
    %v3489 = vpop.f32.mrb[0].mxu0
    %v3490 = vadd.f32 0.0, %v3489
    %v3491 = vpop.f32.mrb[0].mxu0
    %3492 = vmatprep.mubr.bf16.mxu0 0
    %3493 = vmatmul.mubr.bf16.gmra.mrb[0].mxu0 %v1442
    %v3494 = vpop.f32.mrb[0].mxu0
    %v3495 = vadd.f32 0.0, %v3494
    %v3496 = vpop.f32.mrb[0].mxu0
    %v3497 = vpop.f32.mrb[0].mxu0
    %v3498 = vadd.f32 0.0, %v3497
    %v3499 = vpop.f32.mrb[0].mxu0
    %3500 = vmatprep.mubr.bf16.mxu0 0
    %3501 = vmatmul.mubr.bf16.gmra.mrb[0].mxu0 %v1443
    %v3502 = vpop.f32.mrb[0].mxu0
    %v3503 = vadd.f32 0.0, %v3502
    %v3504 = vpop.f32.mrb[0].mxu0
    %v3505 = vpop.f32.mrb[0].mxu0
    %v3506 = vadd.f32 0.0, %v3505
    %v3507 = vpop.f32.mrb[0].mxu0
    %3508 = vmatprep.mubr.bf16.mxu0 0
    %3509 = vmatmul.mubr.bf16.gmra.mrb[0].mxu0 %v1444
    %v3510 = vpop.f32.mrb[0].mxu0
    %v3511 = vadd.f32 0.0, %v3510
    %v3512 = vpop.f32.mrb[0].mxu0
    %v3513 = vpop.f32.mrb[0].mxu0
    %v3514 = vadd.f32 0.0, %v3513
    %v3515 = vpop.f32.mrb[0].mxu0
    %3516 = vmatprep.mubr.bf16.mxu0 0
    %3517 = vmatmul.mubr.bf16.gmra.mrb[0].mxu0 %v1445
    %v3518 = vpop.f32.mrb[0].mxu0
    %v3519 = vadd.f32 0.0, %v3518
    %v3520 = vpop.f32.mrb[0].mxu0
    %v3521 = vpop.f32.mrb[0].mxu0
    %v3522 = vadd.f32 0.0, %v3521
    %v3523 = vpop.f32.mrb[0].mxu0
    %3524 = vmatprep.mubr.bf16.mxu0 0
    %3525 = vmatmul.mubr.bf16.gmra.mrb[0].mxu0 %v1446
    %v3526 = vpop.f32.mrb[0].mxu0
    %v3527 = vadd.f32 0.0, %v3526
    %v3528 = vpop.f32.mrb[0].mxu0
    %v3529 = vpop.f32.mrb[0].mxu0
    %v3530 = vadd.f32 0.0, %v3529
    %v3531 = vpop.f32.mrb[0].mxu0
    %3532 = vmatprep.mubr.bf16.mxu0 0
    %3533 = vmatmul.mubr.bf16.gmra.mrb[0].mxu0 %v1447
    %v3534 = vpop.f32.mrb[0].mxu0
    %v3535 = vadd.f32 0.0, %v3534
    %v3536 = vpop.f32.mrb[0].mxu0
    %v3537 = vpop.f32.mrb[0].mxu0
    %v3538 = vadd.f32 0.0, %v3537
    %v3539 = vpop.f32.mrb[0].mxu0
    %3540 = vdwg.mxu0
    %vm3541 = vcmp.gt.f32.partialorder %v3382, 0.0
    %vm3542 = vcmp.gt.f32.partialorder %v3385, 0.0
    %vm3543 = vcmp.gt.f32.partialorder %v3390, 0.0
    %vm3544 = vcmp.gt.f32.partialorder %v3393, 0.0
    %vm3545 = vcmp.gt.f32.partialorder %v3398, 0.0
    %vm3546 = vcmp.gt.f32.partialorder %v3401, 0.0
    %vm3547 = vcmp.gt.f32.partialorder %v3406, 0.0
    %vm3548 = vcmp.gt.f32.partialorder %v3409, 0.0
    %vm3549 = vcmp.gt.f32.partialorder %v3414, 0.0
    %vm3550 = vcmp.gt.f32.partialorder %v3417, 0.0
    %vm3551 = vcmp.gt.f32.partialorder %v3422, 0.0
    %vm3552 = vcmp.gt.f32.partialorder %v3425, 0.0
    %vm3553 = vcmp.gt.f32.partialorder %v3430, 0.0
    %vm3554 = vcmp.gt.f32.partialorder %v3433, 0.0
    %vm3555 = vcmp.gt.f32.partialorder %v3438, 0.0
    %vm3556 = vcmp.gt.f32.partialorder %v3441, 0.0
    %vm3557 = vcmp.gt.f32.partialorder %v3479, 0.0
    %vm3558 = vcmp.gt.f32.partialorder %v3482, 0.0
    %vm3559 = vcmp.gt.f32.partialorder %v3487, 0.0
    %vm3560 = vcmp.gt.f32.partialorder %v3490, 0.0
    %vm3561 = vcmp.gt.f32.partialorder %v3495, 0.0
    %vm3562 = vcmp.gt.f32.partialorder %v3498, 0.0
    %vm3563 = vcmp.gt.f32.partialorder %v3503, 0.0
    %vm3564 = vcmp.gt.f32.partialorder %v3506, 0.0
    %vm3565 = vcmp.gt.f32.partialorder %v3511, 0.0
    %vm3566 = vcmp.gt.f32.partialorder %v3514, 0.0
    %vm3567 = vcmp.gt.f32.partialorder %v3519, 0.0
    %vm3568 = vcmp.gt.f32.partialorder %v3522, 0.0
    %vm3569 = vcmp.gt.f32.partialorder %v3527, 0.0
    %vm3570 = vcmp.gt.f32.partialorder %v3530, 0.0
    %vm3571 = vcmp.gt.f32.partialorder %v3535, 0.0
    %vm3572 = vcmp.gt.f32.partialorder %v3538, 0.0
    %v3573 = vsel %vm3541, %v3382, 1.0
    %v3574 = vsel %vm3542, %v3385, 1.0
    %v3575 = vsel %vm3543, %v3390, 1.0
    %v3576 = vsel %vm3544, %v3393, 1.0
    %v3577 = vsel %vm3545, %v3398, 1.0
    %v3578 = vsel %vm3546, %v3401, 1.0
    %v3579 = vsel %vm3547, %v3406, 1.0
    %v3580 = vsel %vm3548, %v3409, 1.0
    %v3581 = vsel %vm3549, %v3414, 1.0
    %v3582 = vsel %vm3550, %v3417, 1.0
    %v3583 = vsel %vm3551, %v3422, 1.0
    %v3584 = vsel %vm3552, %v3425, 1.0
    %v3585 = vsel %vm3553, %v3430, 1.0
    %v3586 = vsel %vm3554, %v3433, 1.0
    %v3587 = vsel %vm3555, %v3438, 1.0
    %v3588 = vsel %vm3556, %v3441, 1.0
    %v3589 = vsel %vm3557, %v3479, 1.0
    %v3590 = vsel %vm3558, %v3482, 1.0
    %v3591 = vsel %vm3559, %v3487, 1.0
    %v3592 = vsel %vm3560, %v3490, 1.0
    %v3593 = vsel %vm3561, %v3495, 1.0
    %v3594 = vsel %vm3562, %v3498, 1.0
    %v3595 = vsel %vm3563, %v3503, 1.0
    %v3596 = vsel %vm3564, %v3506, 1.0
    %v3597 = vsel %vm3565, %v3511, 1.0
    %v3598 = vsel %vm3566, %v3514, 1.0
    %v3599 = vsel %vm3567, %v3519, 1.0
    %v3600 = vsel %vm3568, %v3522, 1.0
    %v3601 = vsel %vm3569, %v3527, 1.0
    %v3602 = vsel %vm3570, %v3530, 1.0
    %v3603 = vsel %vm3571, %v3535, 1.0
    %v3604 = vsel %vm3572, %v3538, 1.0
    %v3605 = vrcp.pop %v3573
    %v3606 = vrcp.pop %v3574
    %v3607 = vrcp.pop %v3575
    %v3608 = vrcp.pop %v3576
    %v3609 = vrcp.pop %v3577
    %v3610 = vrcp.pop %v3578
    %v3611 = vrcp.pop %v3579
    %v3612 = vrcp.pop %v3580
    %v3613 = vrcp.pop %v3581
    %v3614 = vrcp.pop %v3582
    %v3615 = vrcp.pop %v3583
    %v3616 = vrcp.pop %v3584
    %v3617 = vrcp.pop %v3585
    %v3618 = vrcp.pop %v3586
    %v3619 = vrcp.pop %v3587
    %v3620 = vrcp.pop %v3588
    %v3621 = vrcp.pop %v3589
    %v3622 = vrcp.pop %v3590
    %v3623 = vrcp.pop %v3591
    %v3624 = vrcp.pop %v3592
    %v3625 = vrcp.pop %v3593
    %v3626 = vrcp.pop %v3594
    %v3627 = vrcp.pop %v3595
    %v3628 = vrcp.pop %v3596
    %v3629 = vrcp.pop %v3597
    %v3630 = vrcp.pop %v3598
    %v3631 = vrcp.pop %v3599
    %v3632 = vrcp.pop %v3600
    %v3633 = vrcp.pop %v3601
    %v3634 = vrcp.pop %v3602
    %v3635 = vrcp.pop %v3603
    %v3636 = vrcp.pop %v3604
    %3669 = vrot.lane.b32.xlu0 %v3605, 96
    %v3670 = vpop.permute.xlu0 %3669
    %3671 = vrot.lane.b32.xlu0 %v3606, 96
    %v3672 = vpop.permute.xlu0 %3671
    %3673 = vrot.lane.b32.xlu0 %v3607, 96
    %v3674 = vpop.permute.xlu0 %3673
    %3675 = vrot.lane.b32.xlu0 %v3608, 96
    %v3676 = vpop.permute.xlu0 %3675
    %3677 = vrot.lane.b32.xlu0 %v3609, 96
    %v3678 = vpop.permute.xlu0 %3677
    %3679 = vrot.lane.b32.xlu0 %v3610, 96
    %v3680 = vpop.permute.xlu0 %3679
    %3681 = vrot.lane.b32.xlu0 %v3611, 96
    %v3682 = vpop.permute.xlu0 %3681
    %3683 = vrot.lane.b32.xlu0 %v3612, 96
    %v3684 = vpop.permute.xlu0 %3683
    %3685 = vrot.lane.b32.xlu0 %v3613, 96
    %v3686 = vpop.permute.xlu0 %3685
    %3687 = vrot.lane.b32.xlu0 %v3614, 96
    %v3688 = vpop.permute.xlu0 %3687
    %3689 = vrot.lane.b32.xlu0 %v3615, 96
    %v3690 = vpop.permute.xlu0 %3689
    %3691 = vrot.lane.b32.xlu0 %v3616, 96
    %v3692 = vpop.permute.xlu0 %3691
    %3693 = vrot.lane.b32.xlu0 %v3617, 96
    %v3694 = vpop.permute.xlu0 %3693
    %3695 = vrot.lane.b32.xlu0 %v3618, 96
    %v3696 = vpop.permute.xlu0 %3695
    %3697 = vrot.lane.b32.xlu0 %v3619, 96
    %v3698 = vpop.permute.xlu0 %3697
    %3699 = vrot.lane.b32.xlu0 %v3620, 96
    %v3700 = vpop.permute.xlu0 %3699
    %3701 = vrot.lane.b32.xlu0 %v3621, 96
    %v3702 = vpop.permute.xlu0 %3701
    %3703 = vrot.lane.b32.xlu0 %v3622, 96
    %v3704 = vpop.permute.xlu0 %3703
    %3705 = vrot.lane.b32.xlu0 %v3623, 96
    %v3706 = vpop.permute.xlu0 %3705
    %3707 = vrot.lane.b32.xlu0 %v3624, 96
    %v3708 = vpop.permute.xlu0 %3707
    %3709 = vrot.lane.b32.xlu0 %v3625, 96
    %v3710 = vpop.permute.xlu0 %3709
    %3711 = vrot.lane.b32.xlu0 %v3626, 96
    %v3712 = vpop.permute.xlu0 %3711
    %3713 = vrot.lane.b32.xlu0 %v3627, 96
    %v3714 = vpop.permute.xlu0 %3713
    %3715 = vrot.lane.b32.xlu0 %v3628, 96
    %v3716 = vpop.permute.xlu0 %3715
    %3717 = vrot.lane.b32.xlu0 %v3629, 96
    %v3718 = vpop.permute.xlu0 %3717
    %3719 = vrot.lane.b32.xlu0 %v3630, 96
    %v3720 = vpop.permute.xlu0 %3719
    %3721 = vrot.lane.b32.xlu0 %v3631, 96
    %v3722 = vpop.permute.xlu0 %3721
    %3723 = vrot.lane.b32.xlu0 %v3632, 96
    %v3724 = vpop.permute.xlu0 %3723
    %3725 = vrot.lane.b32.xlu0 %v3633, 96
    %v3726 = vpop.permute.xlu0 %3725
    %3727 = vrot.lane.b32.xlu0 %v3634, 96
    %v3728 = vpop.permute.xlu0 %3727
    %3729 = vrot.lane.b32.xlu0 %v3635, 96
    %v3730 = vpop.permute.xlu0 %3729
    %3731 = vrot.lane.b32.xlu0 %v3636, 96
    %v3732 = vpop.permute.xlu0 %3731
    %v3765 = vmul.f32 %v3382, %v3670
    %v3766 = vmul.f32 %v3385, %v3672
    %v3767 = vmul.f32 %v3390, %v3674
    %v3768 = vmul.f32 %v3393, %v3676
    %v3769 = vmul.f32 %v3398, %v3678
    %v3770 = vmul.f32 %v3401, %v3680
    %v3771 = vmul.f32 %v3406, %v3682
    %v3772 = vmul.f32 %v3409, %v3684
    %v3773 = vmul.f32 %v3414, %v3686
    %v3774 = vmul.f32 %v3417, %v3688
    %v3775 = vmul.f32 %v3422, %v3690
    %v3776 = vmul.f32 %v3425, %v3692
    %v3777 = vmul.f32 %v3430, %v3694
    %v3778 = vmul.f32 %v3433, %v3696
    %v3779 = vmul.f32 %v3438, %v3698
    %v3780 = vmul.f32 %v3441, %v3700
    %v3781 = vmul.f32 %v3479, %v3702
    %v3782 = vmul.f32 %v3482, %v3704
    %v3783 = vmul.f32 %v3487, %v3706
    %v3784 = vmul.f32 %v3490, %v3708
    %v3785 = vmul.f32 %v3495, %v3710
    %v3786 = vmul.f32 %v3498, %v3712
    %v3787 = vmul.f32 %v3503, %v3714
    %v3788 = vmul.f32 %v3506, %v3716
    %v3789 = vmul.f32 %v3511, %v3718
    %v3790 = vmul.f32 %v3514, %v3720
    %v3791 = vmul.f32 %v3519, %v3722
    %v3792 = vmul.f32 %v3522, %v3724
    %v3793 = vmul.f32 %v3527, %v3726
    %v3794 = vmul.f32 %v3530, %v3728
    %v3795 = vmul.f32 %v3535, %v3730
    %v3796 = vmul.f32 %v3538, %v3732
    %v3797 = vadd.f32 %v3765, %v2650
    %v3798 = vadd.f32 %v3766, %v2651
    %v3799 = vadd.f32 %v3767, %v2652
    %v3800 = vadd.f32 %v3768, %v2653
    %v3801 = vadd.f32 %v3769, %v2654
    %v3802 = vadd.f32 %v3770, %v2655
    %v3803 = vadd.f32 %v3771, %v2656
    %v3804 = vadd.f32 %v3772, %v2657
    %v3805 = vadd.f32 %v3773, %v2658
    %v3806 = vadd.f32 %v3774, %v2659
    %v3807 = vadd.f32 %v3775, %v2660
    %v3808 = vadd.f32 %v3776, %v2661
    %v3809 = vadd.f32 %v3777, %v2662
    %v3810 = vadd.f32 %v3778, %v2663
    %v3811 = vadd.f32 %v3779, %v2664
    %v3812 = vadd.f32 %v3780, %v2665
    %v3813 = vadd.f32 %v3781, %v2666
    %v3814 = vadd.f32 %v3782, %v2667
    %v3815 = vadd.f32 %v3783, %v2668
    %v3816 = vadd.f32 %v3784, %v2669
    %v3817 = vadd.f32 %v3785, %v2670
    %v3818 = vadd.f32 %v3786, %v2671
    %v3819 = vadd.f32 %v3787, %v2672
    %v3820 = vadd.f32 %v3788, %v2673
    %v3821 = vadd.f32 %v3789, %v2674
    %v3822 = vadd.f32 %v3790, %v2675
    %v3823 = vadd.f32 %v3791, %v2676
    %v3824 = vadd.f32 %v3792, %v2677
    %v3825 = vadd.f32 %v3793, %v2678
    %v3826 = vadd.f32 %v3794, %v2679
    %v3827 = vadd.f32 %v3795, %v2680
    %v3828 = vadd.f32 %v3796, %v2681
    %v3830 = vlaneseq
    %v3831 = vshrl.u32 %v3830, 7
    %v3832 = vsub.s32 0, %v3831
    %v3833 = vrot.slane %v2686, %v3832
    %v3836 = vsel %vm884, %v3797, 0
    %v3839 = vsel %vm884, %v3798, 0
    %v3842 = vsel %vm884, %v3799, 0
    %v3845 = vsel %vm884, %v3800, 0
    %v3848 = vsel %vm884, %v3801, 0
    %v3851 = vsel %vm884, %v3802, 0
    %v3854 = vsel %vm884, %v3803, 0
    %v3857 = vsel %vm884, %v3804, 0
    %v3860 = vsel %vm884, %v3805, 0
    %v3863 = vsel %vm884, %v3806, 0
    %v3866 = vsel %vm884, %v3807, 0
    %v3869 = vsel %vm884, %v3808, 0
    %v3872 = vsel %vm884, %v3809, 0
    %v3875 = vsel %vm884, %v3810, 0
    %v3878 = vsel %vm884, %v3811, 0
    %v3881 = vsel %vm884, %v3812, 0
    %v3884 = vsel %vm884, %v3813, 0
    %v3887 = vsel %vm884, %v3814, 0
    %v3890 = vsel %vm884, %v3815, 0
    %v3893 = vsel %vm884, %v3816, 0
    %v3896 = vsel %vm884, %v3817, 0
    %v3899 = vsel %vm884, %v3818, 0
    %v3902 = vsel %vm884, %v3819, 0
    %v3905 = vsel %vm884, %v3820, 0
    %v3908 = vsel %vm884, %v3821, 0
    %v3911 = vsel %vm884, %v3822, 0
    %v3914 = vsel %vm884, %v3823, 0
    %v3917 = vsel %vm884, %v3824, 0
    %v3920 = vsel %vm884, %v3825, 0
    %v3923 = vsel %vm884, %v3826, 0
    %v3926 = vsel %vm884, %v3827, 0
    %v3929 = vsel %vm884, %v3828, 0
    %3931 = vmatprep.subr.mxu0 0.0
    %3932 = vmatpush1.msra.mxu0 %v2682
    %3933 = vmatprep.subr.mxu0 0.0
    %3934 = vmatpush1.msra.mxu0 %v2683
    %3935 = vmatprep.subr.mxu0 0.0
    %3936 = vmatpush1.msra.mxu0 %v2684
    %3937 = vmatprep.subr.mxu0 0.0
    %3938 = vmatpush1.msra.mxu0 %v2685
    %3939 = vmatprep.subr.mxu0 0.0
    %3940 = vmatpush1.msra.mxu0 0.0
    %3941 = vmatprep.subr.mxu0 0.0
    %3942 = vmatpush1.msra.mxu0 0.0
    %3943 = vmatprep.subr.mxu0 0.0
    %3944 = vmatpush1.msra.mxu0 0.0
    %3945 = vmatprep.subr.mxu0 0.0
    %3946 = vmatpush1.msra.mxu0 0.0
    %3947 = vmatprep.subr.mxu0 0.0
    %3948 = vmatpush1.msra.mxu0 0.0
    %3949 = vmatprep.subr.mxu0 0.0
    %3950 = vmatpush1.msra.mxu0 0.0
    %3951 = vmatprep.subr.mxu0 0.0
    %3952 = vmatpush1.msra.mxu0 0.0
    %3953 = vmatprep.subr.mxu0 0.0
    %3954 = vmatpush1.msra.mxu0 0.0
    %3955 = vmatprep.subr.mxu0 0.0
    %3956 = vmatpush1.msra.mxu0 0.0
    %3957 = vmatprep.subr.mxu0 0.0
    %3958 = vmatpush1.msra.mxu0 0.0
    %3959 = vmatprep.subr.mxu0 0.0
    %3960 = vmatpush1.msra.mxu0 0.0
    %3961 = vmatprep.subr.mxu0 0.0
    %3962 = vmatpush1.msra.mxu0 0.0
    %3963 = vmatprep.subr.mxu0 0.0
    %3964 = vmatpush1.msra.mxu0 0.0
    %3965 = vmatprep.subr.mxu0 0.0
    %3966 = vmatpush1.msra.mxu0 0.0
    %3967 = vmatprep.subr.mxu0 0.0
    %3968 = vmatpush1.msra.mxu0 0.0
    %3969 = vmatprep.subr.mxu0 0.0
    %3970 = vmatpush1.msra.mxu0 0.0
    %3971 = vmatprep.subr.mxu0 0.0
    %3972 = vmatpush1.msra.mxu0 0.0
    %3973 = vmatprep.subr.mxu0 0.0
    %3974 = vmatpush1.msra.mxu0 0.0
    %3975 = vmatprep.subr.mxu0 0.0
    %3976 = vmatpush1.msra.mxu0 0.0
    %3977 = vmatprep.subr.mxu0 0.0
    %3978 = vmatpush1.msra.mxu0 0.0
    %3979 = vmatprep.subr.mxu0 0.0
    %3980 = vmatpush1.msra.mxu0 0.0
    %3981 = vmatprep.subr.mxu0 0.0
    %3982 = vmatpush1.msra.mxu0 0.0
    %3983 = vmatprep.subr.mxu0 0.0
    %3984 = vmatpush1.msra.mxu0 0.0
    %3985 = vmatprep.subr.mxu0 0.0
    %3986 = vmatpush1.msra.mxu0 0.0
    %3987 = vmatprep.subr.mxu0 0.0
    %3988 = vmatpush1.msra.mxu0 0.0
    %3989 = vmatprep.subr.mxu0 0.0
    %3990 = vmatpush1.msra.mxu0 0.0
    %3991 = vmatprep.subr.mxu0 0.0
    %3992 = vmatpush1.msra.mxu0 0.0
    %3993 = vmatprep.subr.mxu0 0.0
    %3994 = vmatpush1.msra.mxu0 0.0
    %3995 = vmatprep.mubr.f32.mxu0 0.0
    %3996 = vmatmul.mubr.f32.gmra.mrb[0].mxu0 %v3836
    %v3997 = vpop.f32.mrb[0].mxu0
    %v3998 = vadd.f32 %v3833, %v3997
    %v3999 = vpop.f32.mrb[0].mxu0
    %4000 = vmatprep.mubr.f32.mxu0 0.0
    %4001 = vmatmul.mubr.f32.gmra.mrb[0].mxu0 %v3839
    %v4002 = vpop.f32.mrb[0].mxu0
    %v4003 = vadd.f32 %v3833, %v4002
    %v4004 = vpop.f32.mrb[0].mxu0
    %4005 = vmatprep.mubr.f32.mxu0 0.0
    %4006 = vmatmul.mubr.f32.gmra.mrb[0].mxu0 %v3842
    %v4007 = vpop.f32.mrb[0].mxu0
    %v4008 = vadd.f32 %v3833, %v4007
    %v4009 = vpop.f32.mrb[0].mxu0
    %4010 = vmatprep.mubr.f32.mxu0 0.0
    %4011 = vmatmul.mubr.f32.gmra.mrb[0].mxu0 %v3845
    %v4012 = vpop.f32.mrb[0].mxu0
    %v4013 = vadd.f32 %v3833, %v4012
    %v4014 = vpop.f32.mrb[0].mxu0
    %4015 = vmatprep.mubr.f32.mxu0 0.0
    %4016 = vmatmul.mubr.f32.gmra.mrb[0].mxu0 %v3848
    %v4017 = vpop.f32.mrb[0].mxu0
    %v4018 = vadd.f32 %v3833, %v4017
    %v4019 = vpop.f32.mrb[0].mxu0
    %4020 = vmatprep.mubr.f32.mxu0 0.0
    %4021 = vmatmul.mubr.f32.gmra.mrb[0].mxu0 %v3851
    %v4022 = vpop.f32.mrb[0].mxu0
    %v4023 = vadd.f32 %v3833, %v4022
    %v4024 = vpop.f32.mrb[0].mxu0
    %4025 = vmatprep.mubr.f32.mxu0 0.0
    %4026 = vmatmul.mubr.f32.gmra.mrb[0].mxu0 %v3854
    %v4027 = vpop.f32.mrb[0].mxu0
    %v4028 = vadd.f32 %v3833, %v4027
    %v4029 = vpop.f32.mrb[0].mxu0
    %4030 = vmatprep.mubr.f32.mxu0 0.0
    %4031 = vmatmul.mubr.f32.gmra.mrb[0].mxu0 %v3857
    %v4032 = vpop.f32.mrb[0].mxu0
    %v4033 = vadd.f32 %v3833, %v4032
    %v4034 = vpop.f32.mrb[0].mxu0
    %4035 = vmatprep.mubr.f32.mxu0 0.0
    %4036 = vmatmul.mubr.f32.gmra.mrb[0].mxu0 %v3860
    %v4037 = vpop.f32.mrb[0].mxu0
    %v4038 = vadd.f32 %v3833, %v4037
    %v4039 = vpop.f32.mrb[0].mxu0
    %4040 = vmatprep.mubr.f32.mxu0 0.0
    %4041 = vmatmul.mubr.f32.gmra.mrb[0].mxu0 %v3863
    %v4042 = vpop.f32.mrb[0].mxu0
    %v4043 = vadd.f32 %v3833, %v4042
    %v4044 = vpop.f32.mrb[0].mxu0
    %4045 = vmatprep.mubr.f32.mxu0 0.0
    %4046 = vmatmul.mubr.f32.gmra.mrb[0].mxu0 %v3866
    %v4047 = vpop.f32.mrb[0].mxu0
    %v4048 = vadd.f32 %v3833, %v4047
    %v4049 = vpop.f32.mrb[0].mxu0
    %4050 = vmatprep.mubr.f32.mxu0 0.0
    %4051 = vmatmul.mubr.f32.gmra.mrb[0].mxu0 %v3869
    %v4052 = vpop.f32.mrb[0].mxu0
    %v4053 = vadd.f32 %v3833, %v4052
    %v4054 = vpop.f32.mrb[0].mxu0
    %4055 = vmatprep.mubr.f32.mxu0 0.0
    %4056 = vmatmul.mubr.f32.gmra.mrb[0].mxu0 %v3872
    %v4057 = vpop.f32.mrb[0].mxu0
    %v4058 = vadd.f32 %v3833, %v4057
    %v4059 = vpop.f32.mrb[0].mxu0
    %4060 = vmatprep.mubr.f32.mxu0 0.0
    %4061 = vmatmul.mubr.f32.gmra.mrb[0].mxu0 %v3875
    %v4062 = vpop.f32.mrb[0].mxu0
    %v4063 = vadd.f32 %v3833, %v4062
    %v4064 = vpop.f32.mrb[0].mxu0
    %4065 = vmatprep.mubr.f32.mxu0 0.0
    %4066 = vmatmul.mubr.f32.gmra.mrb[0].mxu0 %v3878
    %v4067 = vpop.f32.mrb[0].mxu0
    %v4068 = vadd.f32 %v3833, %v4067
    %v4069 = vpop.f32.mrb[0].mxu0
    %4070 = vmatprep.mubr.f32.mxu0 0.0
    %4071 = vmatmul.mubr.f32.gmra.mrb[0].mxu0 %v3881
    %v4072 = vpop.f32.mrb[0].mxu0
    %v4073 = vadd.f32 %v3833, %v4072
    %v4074 = vpop.f32.mrb[0].mxu0
    %4075 = vmatprep.mubr.f32.mxu0 0.0
    %4076 = vmatmul.mubr.f32.gmra.mrb[0].mxu0 %v3884
    %v4077 = vpop.f32.mrb[0].mxu0
    %v4078 = vadd.f32 %v3833, %v4077
    %v4079 = vpop.f32.mrb[0].mxu0
    %4080 = vmatprep.mubr.f32.mxu0 0.0
    %4081 = vmatmul.mubr.f32.gmra.mrb[0].mxu0 %v3887
    %v4082 = vpop.f32.mrb[0].mxu0
    %v4083 = vadd.f32 %v3833, %v4082
    %v4084 = vpop.f32.mrb[0].mxu0
    %4085 = vmatprep.mubr.f32.mxu0 0.0
    %4086 = vmatmul.mubr.f32.gmra.mrb[0].mxu0 %v3890
    %v4087 = vpop.f32.mrb[0].mxu0
    %v4088 = vadd.f32 %v3833, %v4087
    %v4089 = vpop.f32.mrb[0].mxu0
    %4090 = vmatprep.mubr.f32.mxu0 0.0
    %4091 = vmatmul.mubr.f32.gmra.mrb[0].mxu0 %v3893
    %v4092 = vpop.f32.mrb[0].mxu0
    %v4093 = vadd.f32 %v3833, %v4092
    %v4094 = vpop.f32.mrb[0].mxu0
    %4095 = vmatprep.mubr.f32.mxu0 0.0
    %4096 = vmatmul.mubr.f32.gmra.mrb[0].mxu0 %v3896
    %v4097 = vpop.f32.mrb[0].mxu0
    %v4098 = vadd.f32 %v3833, %v4097
    %v4099 = vpop.f32.mrb[0].mxu0
    %4100 = vmatprep.mubr.f32.mxu0 0.0
    %4101 = vmatmul.mubr.f32.gmra.mrb[0].mxu0 %v3899
    %v4102 = vpop.f32.mrb[0].mxu0
    %v4103 = vadd.f32 %v3833, %v4102
    %v4104 = vpop.f32.mrb[0].mxu0
    %4105 = vmatprep.mubr.f32.mxu0 0.0
    %4106 = vmatmul.mubr.f32.gmra.mrb[0].mxu0 %v3902
    %v4107 = vpop.f32.mrb[0].mxu0
    %v4108 = vadd.f32 %v3833, %v4107
    %v4109 = vpop.f32.mrb[0].mxu0
    %4110 = vmatprep.mubr.f32.mxu0 0.0
    %4111 = vmatmul.mubr.f32.gmra.mrb[0].mxu0 %v3905
    %v4112 = vpop.f32.mrb[0].mxu0
    %v4113 = vadd.f32 %v3833, %v4112
    %v4114 = vpop.f32.mrb[0].mxu0
    %4115 = vmatprep.mubr.f32.mxu0 0.0
    %4116 = vmatmul.mubr.f32.gmra.mrb[0].mxu0 %v3908
    %v4117 = vpop.f32.mrb[0].mxu0
    %v4118 = vadd.f32 %v3833, %v4117
    %v4119 = vpop.f32.mrb[0].mxu0
    %4120 = vmatprep.mubr.f32.mxu0 0.0
    %4121 = vmatmul.mubr.f32.gmra.mrb[0].mxu0 %v3911
    %v4122 = vpop.f32.mrb[0].mxu0
    %v4123 = vadd.f32 %v3833, %v4122
    %v4124 = vpop.f32.mrb[0].mxu0
    %4125 = vmatprep.mubr.f32.mxu0 0.0
    %4126 = vmatmul.mubr.f32.gmra.mrb[0].mxu0 %v3914
    %v4127 = vpop.f32.mrb[0].mxu0
    %v4128 = vadd.f32 %v3833, %v4127
    %v4129 = vpop.f32.mrb[0].mxu0
    %4130 = vmatprep.mubr.f32.mxu0 0.0
    %4131 = vmatmul.mubr.f32.gmra.mrb[0].mxu0 %v3917
    %v4132 = vpop.f32.mrb[0].mxu0
    %v4133 = vadd.f32 %v3833, %v4132
    %v4134 = vpop.f32.mrb[0].mxu0
    %4135 = vmatprep.mubr.f32.mxu0 0.0
    %4136 = vmatmul.mubr.f32.gmra.mrb[0].mxu0 %v3920
    %v4137 = vpop.f32.mrb[0].mxu0
    %v4138 = vadd.f32 %v3833, %v4137
    %v4139 = vpop.f32.mrb[0].mxu0
    %4140 = vmatprep.mubr.f32.mxu0 0.0
    %4141 = vmatmul.mubr.f32.gmra.mrb[0].mxu0 %v3923
    %v4142 = vpop.f32.mrb[0].mxu0
    %v4143 = vadd.f32 %v3833, %v4142
    %v4144 = vpop.f32.mrb[0].mxu0
    %4145 = vmatprep.mubr.f32.mxu0 0.0
    %4146 = vmatmul.mubr.f32.gmra.mrb[0].mxu0 %v3926
    %v4147 = vpop.f32.mrb[0].mxu0
    %v4148 = vadd.f32 %v3833, %v4147
    %v4149 = vpop.f32.mrb[0].mxu0
    %4150 = vmatprep.mubr.f32.mxu0 0.0
    %4151 = vmatmul.mubr.f32.gmra.mrb[0].mxu0 %v3929
    %v4152 = vpop.f32.mrb[0].mxu0
    %v4153 = vadd.f32 %v3833, %v4152
    %v4154 = vpop.f32.mrb[0].mxu0
    %4155 = vdwg.mxu0
    %v4156 = vmax.f32 %v3998, 0.0
    %v4157 = vmax.f32 %v4003, 0.0
    %v4158 = vmax.f32 %v4008, 0.0
    %v4159 = vmax.f32 %v4013, 0.0
    %v4160 = vmax.f32 %v4018, 0.0
    %v4161 = vmax.f32 %v4023, 0.0
    %v4162 = vmax.f32 %v4028, 0.0
    %v4163 = vmax.f32 %v4033, 0.0
    %v4164 = vmax.f32 %v4038, 0.0
    %v4165 = vmax.f32 %v4043, 0.0
    %v4166 = vmax.f32 %v4048, 0.0
    %v4167 = vmax.f32 %v4053, 0.0
    %v4168 = vmax.f32 %v4058, 0.0
    %v4169 = vmax.f32 %v4063, 0.0
    %v4170 = vmax.f32 %v4068, 0.0
    %v4171 = vmax.f32 %v4073, 0.0
    %v4172 = vmax.f32 %v4078, 0.0
    %v4173 = vmax.f32 %v4083, 0.0
    %v4174 = vmax.f32 %v4088, 0.0
    %v4175 = vmax.f32 %v4093, 0.0
    %v4176 = vmax.f32 %v4098, 0.0
    %v4177 = vmax.f32 %v4103, 0.0
    %v4178 = vmax.f32 %v4108, 0.0
    %v4179 = vmax.f32 %v4113, 0.0
    %v4180 = vmax.f32 %v4118, 0.0
    %v4181 = vmax.f32 %v4123, 0.0
    %v4182 = vmax.f32 %v4128, 0.0
    %v4183 = vmax.f32 %v4133, 0.0
    %v4184 = vmax.f32 %v4138, 0.0
    %v4185 = vmax.f32 %v4143, 0.0
    %v4186 = vmax.f32 %v4148, 0.0
    %v4187 = vmax.f32 %v4153, 0.0
    %v4189 = vsel %vm2328, %v4156, 0
    %v4192 = vsel %vm2328, %v4157, 0
    %v4195 = vsel %vm2328, %v4158, 0
    %v4198 = vsel %vm2328, %v4159, 0
    %v4201 = vsel %vm2328, %v4160, 0
    %v4204 = vsel %vm2328, %v4161, 0
    %v4207 = vsel %vm2328, %v4162, 0
    %v4210 = vsel %vm2328, %v4163, 0
    %v4213 = vsel %vm2328, %v4164, 0
    %v4216 = vsel %vm2328, %v4165, 0
    %v4219 = vsel %vm2328, %v4166, 0
    %v4222 = vsel %vm2328, %v4167, 0
    %v4225 = vsel %vm2328, %v4168, 0
    %v4228 = vsel %vm2328, %v4169, 0
    %v4231 = vsel %vm2328, %v4170, 0
    %v4234 = vsel %vm2328, %v4171, 0
    %v4237 = vsel %vm2328, %v4172, 0
    %v4240 = vsel %vm2328, %v4173, 0
    %v4243 = vsel %vm2328, %v4174, 0
    %v4246 = vsel %vm2328, %v4175, 0
    %v4249 = vsel %vm2328, %v4176, 0
    %v4252 = vsel %vm2328, %v4177, 0
    %v4255 = vsel %vm2328, %v4178, 0
    %v4258 = vsel %vm2328, %v4179, 0
    %v4261 = vsel %vm2328, %v4180, 0
    %v4264 = vsel %vm2328, %v4181, 0
    %v4267 = vsel %vm2328, %v4182, 0
    %v4270 = vsel %vm2328, %v4183, 0
    %v4273 = vsel %vm2328, %v4184, 0
    %v4276 = vsel %vm2328, %v4185, 0
    %v4279 = vsel %vm2328, %v4186, 0
    %v4282 = vsel %vm2328, %v4187, 0
    %4284 = vmatprep.subr.mxu0 0.0
    %4285 = vmatpush1.msra.mxu0 %v2687
    %4286 = vmatprep.subr.mxu0 0.0
    %4287 = vmatpush1.msra.mxu0 %v2688
    %4288 = vmatprep.subr.mxu0 0.0
    %4289 = vmatpush1.msra.mxu0 %v2689
    %4290 = vmatprep.subr.mxu0 0.0
    %4291 = vmatpush1.msra.mxu0 %v2690
    %4292 = vmatprep.subr.mxu0 0.0
    %4293 = vmatpush1.msra.mxu0 %v2691
    %4294 = vmatprep.subr.mxu0 0.0
    %4295 = vmatpush1.msra.mxu0 %v2692
    %4296 = vmatprep.subr.mxu0 0.0
    %4297 = vmatpush1.msra.mxu0 %v2693
    %4298 = vmatprep.subr.mxu0 0.0
    %4299 = vmatpush1.msra.mxu0 %v2694
    %4300 = vmatprep.subr.mxu0 0.0
    %4301 = vmatpush1.msra.mxu0 0.0
    %4302 = vmatprep.subr.mxu0 0.0
    %4303 = vmatpush1.msra.mxu0 0.0
    %4304 = vmatprep.subr.mxu0 0.0
    %4305 = vmatpush1.msra.mxu0 0.0
    %4306 = vmatprep.subr.mxu0 0.0
    %4307 = vmatpush1.msra.mxu0 0.0
    %4308 = vmatprep.subr.mxu0 0.0
    %4309 = vmatpush1.msra.mxu0 0.0
    %4310 = vmatprep.subr.mxu0 0.0
    %4311 = vmatpush1.msra.mxu0 0.0
    %4312 = vmatprep.subr.mxu0 0.0
    %4313 = vmatpush1.msra.mxu0 0.0
    %4314 = vmatprep.subr.mxu0 0.0
    %4315 = vmatpush1.msra.mxu0 0.0
    %4316 = vmatprep.subr.mxu0 0.0
    %4317 = vmatpush1.msra.mxu0 0.0
    %4318 = vmatprep.subr.mxu0 0.0
    %4319 = vmatpush1.msra.mxu0 0.0
    %4320 = vmatprep.subr.mxu0 0.0
    %4321 = vmatpush1.msra.mxu0 0.0
    %4322 = vmatprep.subr.mxu0 0.0
    %4323 = vmatpush1.msra.mxu0 0.0
    %4324 = vmatprep.subr.mxu0 0.0
    %4325 = vmatpush1.msra.mxu0 0.0
    %4326 = vmatprep.subr.mxu0 0.0
    %4327 = vmatpush1.msra.mxu0 0.0
    %4328 = vmatprep.subr.mxu0 0.0
    %4329 = vmatpush1.msra.mxu0 0.0
    %4330 = vmatprep.subr.mxu0 0.0
    %4331 = vmatpush1.msra.mxu0 0.0
    %4332 = vmatprep.subr.mxu0 0.0
    %4333 = vmatpush1.msra.mxu0 0.0
    %4334 = vmatprep.subr.mxu0 0.0
    %4335 = vmatpush1.msra.mxu0 0.0
    %4336 = vmatprep.subr.mxu0 0.0
    %4337 = vmatpush1.msra.mxu0 0.0
    %4338 = vmatprep.subr.mxu0 0.0
    %4339 = vmatpush1.msra.mxu0 0.0
    %4340 = vmatprep.subr.mxu0 0.0
    %4341 = vmatpush1.msra.mxu0 0.0
    %4342 = vmatprep.subr.mxu0 0.0
    %4343 = vmatpush1.msra.mxu0 0.0
    %4344 = vmatprep.subr.mxu0 0.0
    %4345 = vmatpush1.msra.mxu0 0.0
    %4346 = vmatprep.subr.mxu0 0.0
    %4347 = vmatpush1.msra.mxu0 0.0
    %4348 = vmatprep.mubr.f32.mxu0 0.0
    %4349 = vmatmul.mubr.f32.gmra.mrb[0].mxu0 %v4189
    %v4350 = vpop.f32.mrb[0].mxu0
    %v4351 = vadd.f32 0.0, %v4350
    %v4352 = vpop.f32.mrb[0].mxu0
    %4353 = vmatprep.mubr.f32.mxu0 0.0
    %4354 = vmatmul.mubr.f32.gmra.mrb[0].mxu0 %v4192
    %v4355 = vpop.f32.mrb[0].mxu0
    %v4356 = vadd.f32 0.0, %v4355
    %v4357 = vpop.f32.mrb[0].mxu0
    %4358 = vmatprep.mubr.f32.mxu0 0.0
    %4359 = vmatmul.mubr.f32.gmra.mrb[0].mxu0 %v4195
    %v4360 = vpop.f32.mrb[0].mxu0
    %v4361 = vadd.f32 0.0, %v4360
    %v4362 = vpop.f32.mrb[0].mxu0
    %4363 = vmatprep.mubr.f32.mxu0 0.0
    %4364 = vmatmul.mubr.f32.gmra.mrb[0].mxu0 %v4198
    %v4365 = vpop.f32.mrb[0].mxu0
    %v4366 = vadd.f32 0.0, %v4365
    %v4367 = vpop.f32.mrb[0].mxu0
    %4368 = vmatprep.mubr.f32.mxu0 0.0
    %4369 = vmatmul.mubr.f32.gmra.mrb[0].mxu0 %v4201
    %v4370 = vpop.f32.mrb[0].mxu0
    %v4371 = vadd.f32 0.0, %v4370
    %v4372 = vpop.f32.mrb[0].mxu0
    %4373 = vmatprep.mubr.f32.mxu0 0.0
    %4374 = vmatmul.mubr.f32.gmra.mrb[0].mxu0 %v4204
    %v4375 = vpop.f32.mrb[0].mxu0
    %v4376 = vadd.f32 0.0, %v4375
    %v4377 = vpop.f32.mrb[0].mxu0
    %4378 = vmatprep.mubr.f32.mxu0 0.0
    %4379 = vmatmul.mubr.f32.gmra.mrb[0].mxu0 %v4207
    %v4380 = vpop.f32.mrb[0].mxu0
    %v4381 = vadd.f32 0.0, %v4380
    %v4382 = vpop.f32.mrb[0].mxu0
    %4383 = vmatprep.mubr.f32.mxu0 0.0
    %4384 = vmatmul.mubr.f32.gmra.mrb[0].mxu0 %v4210
    %v4385 = vpop.f32.mrb[0].mxu0
    %v4386 = vadd.f32 0.0, %v4385
    %v4387 = vpop.f32.mrb[0].mxu0
    %4388 = vmatprep.mubr.f32.mxu0 0.0
    %4389 = vmatmul.mubr.f32.gmra.mrb[0].mxu0 %v4213
    %v4390 = vpop.f32.mrb[0].mxu0
    %v4391 = vadd.f32 0.0, %v4390
    %v4392 = vpop.f32.mrb[0].mxu0
    %4393 = vmatprep.mubr.f32.mxu0 0.0
    %4394 = vmatmul.mubr.f32.gmra.mrb[0].mxu0 %v4216
    %v4395 = vpop.f32.mrb[0].mxu0
    %v4396 = vadd.f32 0.0, %v4395
    %v4397 = vpop.f32.mrb[0].mxu0
    %4398 = vmatprep.mubr.f32.mxu0 0.0
    %4399 = vmatmul.mubr.f32.gmra.mrb[0].mxu0 %v4219
    %v4400 = vpop.f32.mrb[0].mxu0
    %v4401 = vadd.f32 0.0, %v4400
    %v4402 = vpop.f32.mrb[0].mxu0
    %4403 = vmatprep.mubr.f32.mxu0 0.0
    %4404 = vmatmul.mubr.f32.gmra.mrb[0].mxu0 %v4222
    %v4405 = vpop.f32.mrb[0].mxu0
    %v4406 = vadd.f32 0.0, %v4405
    %v4407 = vpop.f32.mrb[0].mxu0
    %4408 = vmatprep.mubr.f32.mxu0 0.0
    %4409 = vmatmul.mubr.f32.gmra.mrb[0].mxu0 %v4225
    %v4410 = vpop.f32.mrb[0].mxu0
    %v4411 = vadd.f32 0.0, %v4410
    %v4412 = vpop.f32.mrb[0].mxu0
    %4413 = vmatprep.mubr.f32.mxu0 0.0
    %4414 = vmatmul.mubr.f32.gmra.mrb[0].mxu0 %v4228
    %v4415 = vpop.f32.mrb[0].mxu0
    %v4416 = vadd.f32 0.0, %v4415
    %v4417 = vpop.f32.mrb[0].mxu0
    %4418 = vmatprep.mubr.f32.mxu0 0.0
    %4419 = vmatmul.mubr.f32.gmra.mrb[0].mxu0 %v4231
    %v4420 = vpop.f32.mrb[0].mxu0
    %v4421 = vadd.f32 0.0, %v4420
    %v4422 = vpop.f32.mrb[0].mxu0
    %4423 = vmatprep.mubr.f32.mxu0 0.0
    %4424 = vmatmul.mubr.f32.gmra.mrb[0].mxu0 %v4234
    %v4425 = vpop.f32.mrb[0].mxu0
    %v4426 = vadd.f32 0.0, %v4425
    %v4427 = vpop.f32.mrb[0].mxu0
    %4428 = vmatprep.mubr.f32.mxu0 0.0
    %4429 = vmatmul.mubr.f32.gmra.mrb[0].mxu0 %v4237
    %v4430 = vpop.f32.mrb[0].mxu0
    %v4431 = vadd.f32 0.0, %v4430
    %v4432 = vpop.f32.mrb[0].mxu0
    %4433 = vmatprep.mubr.f32.mxu0 0.0
    %4434 = vmatmul.mubr.f32.gmra.mrb[0].mxu0 %v4240
    %v4435 = vpop.f32.mrb[0].mxu0
    %v4436 = vadd.f32 0.0, %v4435
    %v4437 = vpop.f32.mrb[0].mxu0
    %4438 = vmatprep.mubr.f32.mxu0 0.0
    %4439 = vmatmul.mubr.f32.gmra.mrb[0].mxu0 %v4243
    %v4440 = vpop.f32.mrb[0].mxu0
    %v4441 = vadd.f32 0.0, %v4440
    %v4442 = vpop.f32.mrb[0].mxu0
    %4443 = vmatprep.mubr.f32.mxu0 0.0
    %4444 = vmatmul.mubr.f32.gmra.mrb[0].mxu0 %v4246
    %v4445 = vpop.f32.mrb[0].mxu0
    %v4446 = vadd.f32 0.0, %v4445
    %v4447 = vpop.f32.mrb[0].mxu0
    %4448 = vmatprep.mubr.f32.mxu0 0.0
    %4449 = vmatmul.mubr.f32.gmra.mrb[0].mxu0 %v4249
    %v4450 = vpop.f32.mrb[0].mxu0
    %v4451 = vadd.f32 0.0, %v4450
    %v4452 = vpop.f32.mrb[0].mxu0
    %4453 = vmatprep.mubr.f32.mxu0 0.0
    %4454 = vmatmul.mubr.f32.gmra.mrb[0].mxu0 %v4252
    %v4455 = vpop.f32.mrb[0].mxu0
    %v4456 = vadd.f32 0.0, %v4455
    %v4457 = vpop.f32.mrb[0].mxu0
    %4458 = vmatprep.mubr.f32.mxu0 0.0
    %4459 = vmatmul.mubr.f32.gmra.mrb[0].mxu0 %v4255
    %v4460 = vpop.f32.mrb[0].mxu0
    %v4461 = vadd.f32 0.0, %v4460
    %v4462 = vpop.f32.mrb[0].mxu0
    %4463 = vmatprep.mubr.f32.mxu0 0.0
    %4464 = vmatmul.mubr.f32.gmra.mrb[0].mxu0 %v4258
    %v4465 = vpop.f32.mrb[0].mxu0
    %v4466 = vadd.f32 0.0, %v4465
    %v4467 = vpop.f32.mrb[0].mxu0
    %4468 = vmatprep.mubr.f32.mxu0 0.0
    %4469 = vmatmul.mubr.f32.gmra.mrb[0].mxu0 %v4261
    %v4470 = vpop.f32.mrb[0].mxu0
    %v4471 = vadd.f32 0.0, %v4470
    %v4472 = vpop.f32.mrb[0].mxu0
    %4473 = vmatprep.mubr.f32.mxu0 0.0
    %4474 = vmatmul.mubr.f32.gmra.mrb[0].mxu0 %v4264
    %v4475 = vpop.f32.mrb[0].mxu0
    %v4476 = vadd.f32 0.0, %v4475
    %v4477 = vpop.f32.mrb[0].mxu0
    %4478 = vmatprep.mubr.f32.mxu0 0.0
    %4479 = vmatmul.mubr.f32.gmra.mrb[0].mxu0 %v4267
    %v4480 = vpop.f32.mrb[0].mxu0
    %v4481 = vadd.f32 0.0, %v4480
    %v4482 = vpop.f32.mrb[0].mxu0
    %4483 = vmatprep.mubr.f32.mxu0 0.0
    %4484 = vmatmul.mubr.f32.gmra.mrb[0].mxu0 %v4270
    %v4485 = vpop.f32.mrb[0].mxu0
    %v4486 = vadd.f32 0.0, %v4485
    %v4487 = vpop.f32.mrb[0].mxu0
    %4488 = vmatprep.mubr.f32.mxu0 0.0
    %4489 = vmatmul.mubr.f32.gmra.mrb[0].mxu0 %v4273
    %v4490 = vpop.f32.mrb[0].mxu0
    %v4491 = vadd.f32 0.0, %v4490
    %v4492 = vpop.f32.mrb[0].mxu0
    %4493 = vmatprep.mubr.f32.mxu0 0.0
    %4494 = vmatmul.mubr.f32.gmra.mrb[0].mxu0 %v4276
    %v4495 = vpop.f32.mrb[0].mxu0
    %v4496 = vadd.f32 0.0, %v4495
    %v4497 = vpop.f32.mrb[0].mxu0
    %4498 = vmatprep.mubr.f32.mxu0 0.0
    %4499 = vmatmul.mubr.f32.gmra.mrb[0].mxu0 %v4279
    %v4500 = vpop.f32.mrb[0].mxu0
    %v4501 = vadd.f32 0.0, %v4500
    %v4502 = vpop.f32.mrb[0].mxu0
    %4503 = vmatprep.mubr.f32.mxu0 0.0
    %4504 = vmatmul.mubr.f32.gmra.mrb[0].mxu0 %v4282
    %v4505 = vpop.f32.mrb[0].mxu0
    %v4506 = vadd.f32 0.0, %v4505
    %v4507 = vpop.f32.mrb[0].mxu0
    %4508 = vdwg.mxu0
    %v4509 = vmax.f32 %v4351, 0.0
    %v4510 = vmax.f32 %v4356, 0.0
    %v4511 = vmax.f32 %v4361, 0.0
    %v4512 = vmax.f32 %v4366, 0.0
    %v4513 = vmax.f32 %v4371, 0.0
    %v4514 = vmax.f32 %v4376, 0.0
    %v4515 = vmax.f32 %v4381, 0.0
    %v4516 = vmax.f32 %v4386, 0.0
    %v4517 = vmax.f32 %v4391, 0.0
    %v4518 = vmax.f32 %v4396, 0.0
    %v4519 = vmax.f32 %v4401, 0.0
    %v4520 = vmax.f32 %v4406, 0.0
    %v4521 = vmax.f32 %v4411, 0.0
    %v4522 = vmax.f32 %v4416, 0.0
    %v4523 = vmax.f32 %v4421, 0.0
    %v4524 = vmax.f32 %v4426, 0.0
    %v4525 = vmax.f32 %v4431, 0.0
    %v4526 = vmax.f32 %v4436, 0.0
    %v4527 = vmax.f32 %v4441, 0.0
    %v4528 = vmax.f32 %v4446, 0.0
    %v4529 = vmax.f32 %v4451, 0.0
    %v4530 = vmax.f32 %v4456, 0.0
    %v4531 = vmax.f32 %v4461, 0.0
    %v4532 = vmax.f32 %v4466, 0.0
    %v4533 = vmax.f32 %v4471, 0.0
    %v4534 = vmax.f32 %v4476, 0.0
    %v4535 = vmax.f32 %v4481, 0.0
    %v4536 = vmax.f32 %v4486, 0.0
    %v4537 = vmax.f32 %v4491, 0.0
    %v4538 = vmax.f32 %v4496, 0.0
    %v4539 = vmax.f32 %v4501, 0.0
    %v4540 = vmax.f32 %v4506, 0.0
    %4542 = vset.pattern.permute.xlu0 0
    %4543 = vperm.xlu0 %4542, %v110
    %v4544 = vpop.permute.xlu0 %4543
    %4547 = vset.pattern.permute.xlu0 0
    %4548 = vperm.xlu0 %4547, %v111
    %v4549 = vpop.permute.xlu0 %4548
    %4552 = vset.pattern.permute.xlu0 0
    %4553 = vperm.xlu0 %4552, %v112
    %v4554 = vpop.permute.xlu0 %4553
    %4557 = vset.pattern.permute.xlu0 0
    %4558 = vperm.xlu0 %4557, %v113
    %v4559 = vpop.permute.xlu0 %4558
    %4562 = vset.pattern.permute.xlu0 0
    %4563 = vperm.xlu0 %4562, %v114
    %v4564 = vpop.permute.xlu0 %4563
    %4567 = vset.pattern.permute.xlu0 0
    %4568 = vperm.xlu0 %4567, %v115
    %v4569 = vpop.permute.xlu0 %4568
    %4572 = vset.pattern.permute.xlu0 0
    %4573 = vperm.xlu0 %4572, %v116
    %v4574 = vpop.permute.xlu0 %4573
    %4577 = vset.pattern.permute.xlu0 0
    %4578 = vperm.xlu0 %4577, %v117
    %v4579 = vpop.permute.xlu0 %4578
    %4582 = vset.pattern.permute.xlu0 0
    %4583 = vperm.xlu0 %4582, %v118
    %v4584 = vpop.permute.xlu0 %4583
    %4587 = vset.pattern.permute.xlu0 0
    %4588 = vperm.xlu0 %4587, %v119
    %v4589 = vpop.permute.xlu0 %4588
    %4592 = vset.pattern.permute.xlu0 0
    %4593 = vperm.xlu0 %4592, %v120
    %v4594 = vpop.permute.xlu0 %4593
    %4597 = vset.pattern.permute.xlu0 0
    %4598 = vperm.xlu0 %4597, %v121
    %v4599 = vpop.permute.xlu0 %4598
    %4602 = vset.pattern.permute.xlu0 0
    %4603 = vperm.xlu0 %4602, %v122
    %v4604 = vpop.permute.xlu0 %4603
    %4607 = vset.pattern.permute.xlu0 0
    %4608 = vperm.xlu0 %4607, %v123
    %v4609 = vpop.permute.xlu0 %4608
    %4612 = vset.pattern.permute.xlu0 0
    %4613 = vperm.xlu0 %4612, %v124
    %v4614 = vpop.permute.xlu0 %4613
    %4617 = vset.pattern.permute.xlu0 0
    %4618 = vperm.xlu0 %4617, %v125
    %v4619 = vpop.permute.xlu0 %4618
    %4622 = vset.pattern.permute.xlu0 0
    %4623 = vperm.xlu0 %4622, %v126
    %v4624 = vpop.permute.xlu0 %4623
    %4627 = vset.pattern.permute.xlu0 0
    %4628 = vperm.xlu0 %4627, %v127
    %v4629 = vpop.permute.xlu0 %4628
    %4632 = vset.pattern.permute.xlu0 0
    %4633 = vperm.xlu0 %4632, %v128
    %v4634 = vpop.permute.xlu0 %4633
    %4637 = vset.pattern.permute.xlu0 0
    %4638 = vperm.xlu0 %4637, %v129
    %v4639 = vpop.permute.xlu0 %4638
    %4642 = vset.pattern.permute.xlu0 0
    %4643 = vperm.xlu0 %4642, %v130
    %v4644 = vpop.permute.xlu0 %4643
    %4647 = vset.pattern.permute.xlu0 0
    %4648 = vperm.xlu0 %4647, %v131
    %v4649 = vpop.permute.xlu0 %4648
    %4652 = vset.pattern.permute.xlu0 0
    %4653 = vperm.xlu0 %4652, %v132
    %v4654 = vpop.permute.xlu0 %4653
    %4657 = vset.pattern.permute.xlu0 0
    %4658 = vperm.xlu0 %4657, %v133
    %v4659 = vpop.permute.xlu0 %4658
    %4662 = vset.pattern.permute.xlu0 0
    %4663 = vperm.xlu0 %4662, %v134
    %v4664 = vpop.permute.xlu0 %4663
    %4667 = vset.pattern.permute.xlu0 0
    %4668 = vperm.xlu0 %4667, %v135
    %v4669 = vpop.permute.xlu0 %4668
    %4672 = vset.pattern.permute.xlu0 0
    %4673 = vperm.xlu0 %4672, %v136
    %v4674 = vpop.permute.xlu0 %4673
    %4677 = vset.pattern.permute.xlu0 0
    %4678 = vperm.xlu0 %4677, %v137
    %v4679 = vpop.permute.xlu0 %4678
    %4682 = vset.pattern.permute.xlu0 0
    %4683 = vperm.xlu0 %4682, %v138
    %v4684 = vpop.permute.xlu0 %4683
    %4687 = vset.pattern.permute.xlu0 0
    %4688 = vperm.xlu0 %4687, %v139
    %v4689 = vpop.permute.xlu0 %4688
    %4692 = vset.pattern.permute.xlu0 0
    %4693 = vperm.xlu0 %4692, %v140
    %v4694 = vpop.permute.xlu0 %4693
    %4697 = vset.pattern.permute.xlu0 0
    %4698 = vperm.xlu0 %4697, %v141
    %v4699 = vpop.permute.xlu0 %4698
    %v4701 = vmul.f32 %v4544, %v4509
    %v4702 = vmul.f32 %v4549, %v4510
    %v4703 = vmul.f32 %v4554, %v4511
    %v4704 = vmul.f32 %v4559, %v4512
    %v4705 = vmul.f32 %v4564, %v4513
    %v4706 = vmul.f32 %v4569, %v4514
    %v4707 = vmul.f32 %v4574, %v4515
    %v4708 = vmul.f32 %v4579, %v4516
    %v4709 = vmul.f32 %v4584, %v4517
    %v4710 = vmul.f32 %v4589, %v4518
    %v4711 = vmul.f32 %v4594, %v4519
    %v4712 = vmul.f32 %v4599, %v4520
    %v4713 = vmul.f32 %v4604, %v4521
    %v4714 = vmul.f32 %v4609, %v4522
    %v4715 = vmul.f32 %v4614, %v4523
    %v4716 = vmul.f32 %v4619, %v4524
    %v4717 = vmul.f32 %v4624, %v4525
    %v4718 = vmul.f32 %v4629, %v4526
    %v4719 = vmul.f32 %v4634, %v4527
    %v4720 = vmul.f32 %v4639, %v4528
    %v4721 = vmul.f32 %v4644, %v4529
    %v4722 = vmul.f32 %v4649, %v4530
    %v4723 = vmul.f32 %v4654, %v4531
    %v4724 = vmul.f32 %v4659, %v4532
    %v4725 = vmul.f32 %v4664, %v4533
    %v4726 = vmul.f32 %v4669, %v4534
    %v4727 = vmul.f32 %v4674, %v4535
    %v4728 = vmul.f32 %v4679, %v4536
    %v4729 = vmul.f32 %v4684, %v4537
    %v4730 = vmul.f32 %v4689, %v4538
    %v4731 = vmul.f32 %v4694, %v4539
    %v4732 = vmul.f32 %v4699, %v4540
    %v4733 = vsel %vm884, %v4701, 0.0
    %v4734 = vsel %vm884, %v4702, 0.0
    %v4735 = vadd.f32 %v4733, %v4734
    %v4736 = vsel %vm884, %v4703, 0.0
    %v4737 = vadd.f32 %v4735, %v4736
    %v4738 = vsel %vm884, %v4704, 0.0
    %v4739 = vadd.f32 %v4737, %v4738
    %v4740 = vsel %vm884, %v4705, 0.0
    %v4741 = vadd.f32 %v4739, %v4740
    %v4742 = vsel %vm884, %v4706, 0.0
    %v4743 = vadd.f32 %v4741, %v4742
    %v4744 = vsel %vm884, %v4707, 0.0
    %v4745 = vadd.f32 %v4743, %v4744
    %v4746 = vsel %vm884, %v4708, 0.0
    %v4747 = vadd.f32 %v4745, %v4746
    %v4748 = vsel %vm884, %v4709, 0.0
    %v4749 = vadd.f32 %v4747, %v4748
    %v4750 = vsel %vm884, %v4710, 0.0
    %v4751 = vadd.f32 %v4749, %v4750
    %v4752 = vsel %vm884, %v4711, 0.0
    %v4753 = vadd.f32 %v4751, %v4752
    %v4754 = vsel %vm884, %v4712, 0.0
    %v4755 = vadd.f32 %v4753, %v4754
    %v4756 = vsel %vm884, %v4713, 0.0
    %v4757 = vadd.f32 %v4755, %v4756
    %v4758 = vsel %vm884, %v4714, 0.0
    %v4759 = vadd.f32 %v4757, %v4758
    %v4760 = vsel %vm884, %v4715, 0.0
    %v4761 = vadd.f32 %v4759, %v4760
    %v4762 = vsel %vm884, %v4716, 0.0
    %v4763 = vadd.f32 %v4761, %v4762
    %v4764 = vrot.slane %v4763, 4
    %v4765 = vadd.f32 %v4763, %v4764
    %v4766 = vrot.slane %v4765, 2
    %v4767 = vadd.f32 %v4765, %v4766
    %v4768 = vrot.slane %v4767, 1
    %v4769 = vadd.f32 %v4767, %v4768
    %v4770 = vsel %vm884, %v4717, 0.0
    %v4771 = vsel %vm884, %v4718, 0.0
    %v4772 = vadd.f32 %v4770, %v4771
    %v4773 = vsel %vm884, %v4719, 0.0
    %v4774 = vadd.f32 %v4772, %v4773
    %v4775 = vsel %vm884, %v4720, 0.0
    %v4776 = vadd.f32 %v4774, %v4775
    %v4777 = vsel %vm884, %v4721, 0.0
    %v4778 = vadd.f32 %v4776, %v4777
    %v4779 = vsel %vm884, %v4722, 0.0
    %v4780 = vadd.f32 %v4778, %v4779
    %v4781 = vsel %vm884, %v4723, 0.0
    %v4782 = vadd.f32 %v4780, %v4781
    %v4783 = vsel %vm884, %v4724, 0.0
    %v4784 = vadd.f32 %v4782, %v4783
    %v4785 = vsel %vm884, %v4725, 0.0
    %v4786 = vadd.f32 %v4784, %v4785
    %v4787 = vsel %vm884, %v4726, 0.0
    %v4788 = vadd.f32 %v4786, %v4787
    %v4789 = vsel %vm884, %v4727, 0.0
    %v4790 = vadd.f32 %v4788, %v4789
    %v4791 = vsel %vm884, %v4728, 0.0
    %v4792 = vadd.f32 %v4790, %v4791
    %v4793 = vsel %vm884, %v4729, 0.0
    %v4794 = vadd.f32 %v4792, %v4793
    %v4795 = vsel %vm884, %v4730, 0.0
    %v4796 = vadd.f32 %v4794, %v4795
    %v4797 = vsel %vm884, %v4731, 0.0
    %v4798 = vadd.f32 %v4796, %v4797
    %v4799 = vsel %vm884, %v4732, 0.0
    %v4800 = vadd.f32 %v4798, %v4799
    %v4801 = vrot.slane %v4800, 4
    %v4802 = vadd.f32 %v4800, %v4801
    %v4803 = vrot.slane %v4802, 2
    %v4804 = vadd.f32 %v4802, %v4803
    %v4805 = vrot.slane %v4804, 1
    %v4806 = vadd.f32 %v4804, %v4805
    %v4807 = vld [vmem:[%s11] sm:$0xff]
    %v4808 = vld [vmem:[%s11 + $0x8] sm:$0xff]
    %v4809 = vld [vmem:[%s11 + $0x10] sm:$0xff]
    %v4810 = vld [vmem:[%s11 + $0x18] sm:$0xff]
    %v4811 = vld [vmem:[%s12] sm:$0x1]
    %v4813 = vlaneseq
    %v4814 = vshrl.u32 %v4813, 7
    %v4815 = vsub.s32 0, %v4814
    %v4816 = vrot.slane %v4811, %v4815
    %vm4820 = vcmask 1041409
    %v4821 = vsel %vm4820, %v4806, %v4769
    %v4822 = vsel %vm884, %v4821, 0
    %4824 = vmatprep.subr.mxu0 0.0
    %4825 = vmatpush1.msra.mxu0 %v4807
    %4826 = vmatprep.subr.mxu0 0.0
    %4827 = vmatpush1.msra.mxu0 %v4808
    %4828 = vmatprep.subr.mxu0 0.0
    %4829 = vmatpush1.msra.mxu0 %v4809
    %4830 = vmatprep.subr.mxu0 0.0
    %4831 = vmatpush1.msra.mxu0 %v4810
    %4832 = vmatprep.subr.mxu0 0.0
    %4833 = vmatpush1.msra.mxu0 0.0
    %4834 = vmatprep.subr.mxu0 0.0
    %4835 = vmatpush1.msra.mxu0 0.0
    %4836 = vmatprep.subr.mxu0 0.0
    %4837 = vmatpush1.msra.mxu0 0.0
    %4838 = vmatprep.subr.mxu0 0.0
    %4839 = vmatpush1.msra.mxu0 0.0
    %4840 = vmatprep.subr.mxu0 0.0
    %4841 = vmatpush1.msra.mxu0 0.0
    %4842 = vmatprep.subr.mxu0 0.0
    %4843 = vmatpush1.msra.mxu0 0.0
    %4844 = vmatprep.subr.mxu0 0.0
    %4845 = vmatpush1.msra.mxu0 0.0
    %4846 = vmatprep.subr.mxu0 0.0
    %4847 = vmatpush1.msra.mxu0 0.0
    %4848 = vmatprep.subr.mxu0 0.0
    %4849 = vmatpush1.msra.mxu0 0.0
    %4850 = vmatprep.subr.mxu0 0.0
    %4851 = vmatpush1.msra.mxu0 0.0
    %4852 = vmatprep.subr.mxu0 0.0
    %4853 = vmatpush1.msra.mxu0 0.0
    %4854 = vmatprep.subr.mxu0 0.0
    %4855 = vmatpush1.msra.mxu0 0.0
    %4856 = vmatprep.subr.mxu0 0.0
    %4857 = vmatpush1.msra.mxu0 0.0
    %4858 = vmatprep.subr.mxu0 0.0
    %4859 = vmatpush1.msra.mxu0 0.0
    %4860 = vmatprep.subr.mxu0 0.0
    %4861 = vmatpush1.msra.mxu0 0.0
    %4862 = vmatprep.subr.mxu0 0.0
    %4863 = vmatpush1.msra.mxu0 0.0
    %4864 = vmatprep.subr.mxu0 0.0
    %4865 = vmatpush1.msra.mxu0 0.0
    %4866 = vmatprep.subr.mxu0 0.0
    %4867 = vmatpush1.msra.mxu0 0.0
    %4868 = vmatprep.subr.mxu0 0.0
    %4869 = vmatpush1.msra.mxu0 0.0
    %4870 = vmatprep.subr.mxu0 0.0
    %4871 = vmatpush1.msra.mxu0 0.0
    %4872 = vmatprep.subr.mxu0 0.0
    %4873 = vmatpush1.msra.mxu0 0.0
    %4874 = vmatprep.subr.mxu0 0.0
    %4875 = vmatpush1.msra.mxu0 0.0
    %4876 = vmatprep.subr.mxu0 0.0
    %4877 = vmatpush1.msra.mxu0 0.0
    %4878 = vmatprep.subr.mxu0 0.0
    %4879 = vmatpush1.msra.mxu0 0.0
    %4880 = vmatprep.subr.mxu0 0.0
    %4881 = vmatpush1.msra.mxu0 0.0
    %4882 = vmatprep.subr.mxu0 0.0
    %4883 = vmatpush1.msra.mxu0 0.0
    %4884 = vmatprep.subr.mxu0 0.0
    %4885 = vmatpush1.msra.mxu0 0.0
    %4886 = vmatprep.subr.mxu0 0.0
    %4887 = vmatpush1.msra.mxu0 0.0
    %4888 = vmatprep.mubr.f32.mxu0 0.0
    %4889 = vmatmul.mubr.f32.gmra.mrb[0].mxu0 %v4822
    %v4890 = vpop.f32.mrb[0].mxu0
    %v4891 = vadd.f32 %v4816, %v4890
    %v4892 = vpop.f32.mrb[0].mxu0
    %4893 = vdwg.mxu0
    %4894 = vst [vmem:[#allocation2] sm:$0x3] %v4891
    // Predicated region
    $region54: #{tpu_custom_call.1} parent=1 // pred_check
      _
    $region55: #{tpu_custom_call.1} parent=1 // pred_check_branch
      %4896 = sbr.rel (0) target = $region57
    $region56: #{tpu_custom_call.1} parent=1 // pred_region
      %s4898 = ssub.s32 32, 32
      %4899 = vsyncadd [#allocation3], %s4898
      %s4901 = sshll.u32 [#allocation2], 4
      %s4902 = int_to_ptr.vmem [resolvable:$true] %s4901
      %4904 = dma.vmem_to_hbm [thread:$0]  %s4902, 32, %s13, [#allocation3]
    $region57: #{tpu_custom_call.1} parent=1 // pred_fallthru
      _
    // Predicated region
    $region58: #{tpu_custom_call.1} parent=1 // pred_check
      _
    $region59: #{tpu_custom_call.1} parent=1 // pred_check_branch
      %4906 = sbr.rel (0) target = $region61
    $region60: #{tpu_custom_call.1} parent=1 // pred_region
      %4907 = dma.done [#allocation3], 32
    $region61: #{tpu_custom_call.1} parent=1 // pred_fallthru
      _
    %4908 = vsyncpa [#allocation3], 1

</llo_original>
